<compile_context>
chip_gen: v7x
topology: tpu7x:2x2x1
jax: 0.10.0
libtpu: 0.0.40
codegen_flags: <defaults>
</compile_context>

<pallas_src>
import jax
import jax.numpy as jnp
from jax.experimental import pallas as pl
from jax.experimental.pallas import tpu as pltpu

LANE = 128


def _round_up(x, m):
    return (x + m - 1) // m * m


def _ceil_div(a, b):
    return -(-a // b)


def _tile_rows(M, tm_max):
    """Pick (TM, steps, Mp): >=2 grid steps (v7x 2nd core / pipelining),
    TM a multiple of 8, Mp = steps*TM so every block store is dense."""
    steps = max(2, _ceil_div(M, tm_max))
    TM = _round_up(_ceil_div(M, steps), 8)
    steps = max(2, _ceil_div(M, TM))
    return TM, steps, TM * steps


# ----------------------------- Pallas kernels ------------------------------

def _conv_pool_kernel(x_ref, w_ref, b_ref, o_ref):
    # x: (4, TM, Kp) bf16 -- the 4 pooling quadrants for TM pooled output rows
    # w: (Kp, Np) bf16, b: (1, Np) f32, o: (TM, Np) bf16
    _, tm, kp = x_ref.shape
    # Single long-M matmul keeps the MXU pipeline fed (no 4 push/drain bursts).
    # The reshape only merges leading dims (tm % 8 == 0) -> no relayout.
    x = x_ref[...].reshape(4 * tm, kp)
    acc = jnp.dot(x, w_ref[...], preferred_element_type=jnp.float32)  # (4*TM, Np)
    # Quadrant max first; bias + ReLU hoisted out of the per-quadrant path.
    mx = jnp.maximum(jnp.maximum(acc[0 * tm:1 * tm], acc[1 * tm:2 * tm]),
                     jnp.maximum(acc[2 * tm:3 * tm], acc[3 * tm:4 * tm]))
    o_ref[...] = jnp.maximum(mx + b_ref[...], 0.0).astype(o_ref.dtype)


def _fc_head_kernel(x_ref, w1_ref, b1_ref, w2_ref, b2_ref, w3_ref, b3_ref,
                    o_ref):
    # Fused fc1 -> ReLU -> fc2 -> ReLU -> fc3 (all weights lane-padded).
    h = jnp.dot(x_ref[...], w1_ref[...], preferred_element_type=jnp.float32)
    h = jnp.maximum(h + b1_ref[...], 0.0)
    h = jnp.dot(h.astype(jnp.bfloat16), w2_ref[...],
                preferred_element_type=jnp.float32)
    h = jnp.maximum(h + b2_ref[...], 0.0)
    h = jnp.dot(h.astype(jnp.bfloat16), w3_ref[...],
                preferred_element_type=jnp.float32)
    o_ref[...] = h + b3_ref[...]


# --------------------------- Pallas call wrappers ---------------------------

def conv_relu_pool(cols_q, w_pad, b_pad, *, tm_max=1024):
    """cols_q: (4, M, Kp) bf16; w_pad: (Kp, Np) bf16; b_pad: (1, Np) f32.
    Returns (M, Np) bf16 = 2x2-maxpool(relu(conv)) with channels lane-padded."""
    _, M, Kp = cols_q.shape
    Np = w_pad.shape[1]
    TM, steps, Mp = _tile_rows(M, tm_max)
    if Mp != M:
        cols_q = jnp.pad(cols_q, ((0, 0), (0, Mp - M), (0, 0)))
    out = pl.pallas_call(
        _conv_pool_kernel,
        out_shape=jax.ShapeDtypeStruct((Mp, Np), jnp.bfloat16),
        grid=(steps,),
        in_specs=[
            pl.BlockSpec((4, TM, Kp), lambda i: (0, i, 0)),
            pl.BlockSpec((Kp, Np), lambda i: (0, 0)),
            pl.BlockSpec((1, Np), lambda i: (0, 0)),
        ],
        out_specs=pl.BlockSpec((TM, Np), lambda i: (i, 0)),
        compiler_params=pltpu.CompilerParams(
            dimension_semantics=("parallel",)),
    )(cols_q, w_pad, b_pad)
    return out[:M]


def fc_head(x_flat, w1, b1, w2, b2, w3, b3, *, tm_max=512):
    """x_flat: (M, Kp) bf16, weights bf16 / biases f32 already lane-padded."""
    M, Kp = x_flat.shape
    Np = w3.shape[1]
    TM, steps, Mp = _tile_rows(M, tm_max)
    if Mp != M:
        x_flat = jnp.pad(x_flat, ((0, Mp - M), (0, 0)))
    out = pl.pallas_call(
        _fc_head_kernel,
        out_shape=jax.ShapeDtypeStruct((Mp, Np), jnp.float32),
        grid=(steps,),
        in_specs=[
            pl.BlockSpec((TM, Kp), lambda i: (i, 0)),
            pl.BlockSpec(w1.shape, lambda i: (0, 0)),
            pl.BlockSpec(b1.shape, lambda i: (0, 0)),
            pl.BlockSpec(w2.shape, lambda i: (0, 0)),
            pl.BlockSpec(b2.shape, lambda i: (0, 0)),
            pl.BlockSpec(w3.shape, lambda i: (0, 0)),
            pl.BlockSpec(b3.shape, lambda i: (0, 0)),
        ],
        out_specs=pl.BlockSpec((TM, Np), lambda i: (i, 0)),
        compiler_params=pltpu.CompilerParams(
            dimension_semantics=("parallel",)),
    )(x_flat, w1, b1, w2, b2, w3, b3)
    return out[:M]


# ------------------------------ JAX glue ----------------------------------

def im2col_pooled(x, k, k_pad):
    """x: (B, H, W, C). Returns cols of shape (4, B*Hp*Wp, k_pad) where the
    leading axis indexes the 2x2 pooling quadrant (dh, dw) and the column
    order is (kh, kw, c), zero-padded up to k_pad columns."""
    B, H, W, C = x.shape
    Ho, Wo = H - k + 1, W - k + 1
    Hp, Wp = Ho // 2, Wo // 2
    K = k * k * C
    pad = k_pad - K
    quads = []
    for dh in (0, 1):
        for dw in (0, 1):
            patches = [
                x[:, dh + kh: dh + kh + 2 * Hp: 2,
                     dw + kw: dw + kw + 2 * Wp: 2, :]
                for kh in range(k) for kw in range(k)
            ]
            if pad:
                patches.append(jnp.zeros((B, Hp, Wp, pad), x.dtype))
            quads.append(
                jnp.concatenate(patches, axis=-1).reshape(B * Hp * Wp, k_pad))
    return jnp.stack(quads, axis=0), (B, Hp, Wp)


# -------------------------- one-time weight packing -------------------------

def conv_w_to_mat(w, k_pad, n_pad):
    """PyTorch conv weight (O, C, KH, KW) -> (k_pad, n_pad) bf16, matching the
    im2col (kh, kw, c) column order; zero-padded rows/cols."""
    O, C, KH, KW = w.shape
    m = jnp.transpose(w, (2, 3, 1, 0)).reshape(KH * KW * C, O)
    m = jnp.pad(m, ((0, k_pad - KH * KW * C), (0, n_pad - O)))
    return m.astype(jnp.bfloat16)


def fc_w_to_mat(w, k_pad, n_pad):
    """PyTorch Linear weight (out, in) -> (k_pad, n_pad) bf16, zero-padded."""
    m = jnp.transpose(w)
    m = jnp.pad(m, ((0, k_pad - m.shape[0]), (0, n_pad - m.shape[1])))
    return m.astype(jnp.bfloat16)


def fc1_w_to_mat_nhwc(w, k_pad, n_pad):
    """fc1 weight (120, 400) with torch NCHW-flatten columns (c*25 + h*5 + w)
    re-ordered to NHWC row order ((h*5 + w)*16 + c), so the conv2 activation
    can be fed NHWC-flat without a relayout transpose."""
    O = w.shape[0]
    m = w.reshape(O, 16, 5, 5)                       # (out, c, h, w)
    m = jnp.transpose(m, (2, 3, 1, 0)).reshape(16 * 5 * 5, O)  # rows (h, w, c)
    m = jnp.pad(m, ((0, k_pad - 16 * 5 * 5), (0, n_pad - O)))
    return m.astype(jnp.bfloat16)


def pad_bias(b, n_pad):
    return jnp.pad(b, ((0, n_pad - b.shape[0]),)).reshape(1, n_pad).astype(
        jnp.float32)


def pack_params(p):
    """Pack PyTorch-layout params into padded bf16 MXU operands, ONCE."""
    k1p = _round_up(5 * 5 * 3, LANE)       # 75  -> 128
    k2p = _round_up(5 * 5 * 10, LANE)      # 250 -> 256
    kf = _round_up(16 * 5 * 5, LANE)       # 400 -> 512
    return {
        "c1w": conv_w_to_mat(p["conv1_w"], k1p, LANE),
        "c1b": pad_bias(p["conv1_b"], LANE),
        "c2w": conv_w_to_mat(p["conv2_w"], k2p, LANE),
        "c2b": pad_bias(p["conv2_b"], LANE),
        "f1w": fc1_w_to_mat_nhwc(p["fc1_w"], kf, LANE),
        "f1b": pad_bias(p["fc1_b"], LANE),
        "f2w": fc_w_to_mat(p["fc2_w"], LANE, LANE),
        "f2b": pad_bias(p["fc2_b"], LANE),
        "f3w": fc_w_to_mat(p["fc3_w"], LANE, LANE),
        "f3b": pad_bias(p["fc3_b"], LANE),
    }


def init_params(key):
    """Deterministic PyTorch-style uniform(-1/sqrt(fan_in), 1/sqrt(fan_in))."""
    def uniform(key, shape, fan_in):
        bound = 1.0 / jnp.sqrt(jnp.float32(fan_in))
        return jax.random.uniform(key, shape, jnp.float32, -bound, bound)

    ks = jax.random.split(key, 10)
    p = {}
    p["conv1_w"] = uniform(ks[0], (10, 3, 5, 5), 3 * 5 * 5)
    p["conv1_b"] = uniform(ks[1], (10,), 3 * 5 * 5)
    p["conv2_w"] = uniform(ks[2], (16, 10, 5, 5), 10 * 5 * 5)
    p["conv2_b"] = uniform(ks[3], (16,), 10 * 5 * 5)
    p["fc1_w"] = uniform(ks[4], (120, 400), 400)
    p["fc1_b"] = uniform(ks[5], (120,), 400)
    p["fc2_w"] = uniform(ks[6], (64, 120), 120)
    p["fc2_b"] = uniform(ks[7], (64,), 120)
    p["fc3_w"] = uniform(ks[8], (10, 64), 64)
    p["fc3_b"] = uniform(ks[9], (10,), 64)
    return p


# ------------------------------- forward -----------------------------------

@jax.jit
def net_forward(x_nchw, packed):
    # NCHW (PyTorch) -> NHWC (kernel layout), bf16 for the MXU.
    x = jnp.transpose(x_nchw, (0, 2, 3, 1)).astype(jnp.bfloat16)

    # conv1 (3 -> 10, k=5) + ReLU + 2x2 maxpool, fused in one kernel (bf16 out).
    k1p = packed["c1w"].shape[0]                           # 128
    cols, (B, Hp, Wp) = im2col_pooled(x, 5, k1p)           # (4, B*14*14, 128)
    y = conv_relu_pool(cols, packed["c1w"], packed["c1b"])  # (B*14*14, 128) bf16
    y = y[:, :10].reshape(B, Hp, Wp, 10)

    # conv2 (10 -> 16, k=5) + ReLU + 2x2 maxpool, fused in one kernel (bf16 out).
    k2p = packed["c2w"].shape[0]                           # 256
    cols, (B, Hp, Wp) = im2col_pooled(y, 5, k2p)           # (4, B*5*5, 256)
    y = conv_relu_pool(cols, packed["c2w"], packed["c2b"])  # (B*5*5, 128) bf16

    # NHWC flatten (no NCHW relayout transpose): (B, 25, 128) -> (B, 400).
    # fc1's weight rows were permuted to (h, w, c) order at pack time.
    y = y.reshape(B, Hp * Wp, LANE)[:, :, :16].reshape(B, 16 * Hp * Wp)
    kf = packed["f1w"].shape[0]                            # 512
    y = jnp.pad(y, ((0, 0), (0, kf - y.shape[1])))         # already bf16

    # Fused FC head (fc1 -> ReLU -> fc2 -> ReLU -> fc3), all lane-padded.
    out = fc_head(y, packed["f1w"], packed["f1b"],
                  packed["f2w"], packed["f2b"],
                  packed["f3w"], packed["f3b"])            # (B, 128) f32
    return out[:, :10]                                     # (B, 10)


if __name__ == "__main__":
    key = jax.random.PRNGKey(0)
    k_param, k_input = jax.random.split(key)
    params = init_params(k_param)
    packed = pack_params(params)      # one-time packing, outside the jitted fwd
    # 32x32 spatial is required so the 16*5*5 flatten matches (CIFAR-like).
    x = jax.random.normal(k_input, (2, 3, 32, 32), jnp.float32)
    out = net_forward(x, packed)
    jax.block_until_ready(out)
    assert out.shape == (2, 10)
    print("KERNEL_OK")
</pallas_src>

<mosaic_0001>
module attributes {stable_mosaic.version = 11 : i64} {
  func.func @_conv_pool_kernel(%arg0: i32, %arg1: memref<4x200x128xbf16, #tpu.memory_space<vmem>>, %arg2: memref<128x128xbf16, #tpu.memory_space<vmem>>, %arg3: memref<1x128xf32, #tpu.memory_space<vmem>>, %arg4: memref<200x128xbf16, #tpu.memory_space<vmem>>) attributes {dimension_semantics = [#tpu.dimension_semantics<parallel>], iteration_bounds = array<i64: 2>, scalar_prefetch = 0 : i64, scratch_operands = 0 : i64, tpu.core_type = #tpu.core_type<tc>, window_params = [{transform_indices = @transform_0, window_bounds = array<i64: 4, 200, 128>}, {pipeline_mode = #tpu.pipeline_mode<synchronous>, transform_indices = @transform_1, window_bounds = array<i64: 128, 128>}, {pipeline_mode = #tpu.pipeline_mode<synchronous>, transform_indices = @transform_2, window_bounds = array<i64: 1, 128>}, {transform_indices = @transform_3, window_bounds = array<i64: 200, 128>}]} {
    %c0 = arith.constant 0 : index
    %c0_0 = arith.constant 0 : index
    %c0_1 = arith.constant 0 : index
    %0 = vector.load %arg1[%c0, %c0_0, %c0_1] : memref<4x200x128xbf16, #tpu.memory_space<vmem>>, vector<4x200x128xbf16>
    %1 = vector.shape_cast %0 : vector<4x200x128xbf16> to vector<800x128xbf16>
    %c0_2 = arith.constant 0 : index
    %c0_3 = arith.constant 0 : index
    %2 = vector.load %arg2[%c0_2, %c0_3] : memref<128x128xbf16, #tpu.memory_space<vmem>>, vector<128x128xbf16>
    %cst = arith.constant dense<0.000000e+00> : vector<800x128xf32>
    %3 = tpu.matmul %1, %2, %cst {dimension_numbers = #tpu.dot_dimension_numbers<[1], [0], [0], [1], [0, 0, 1, 1], [], []>} : vector<800x128xbf16>, vector<128x128xbf16>, vector<800x128xf32> -> vector<800x128xf32>
    %4 = vector.extract_strided_slice %3 {offsets = [0, 0], sizes = [200, 128], strides = [1, 1]} : vector<800x128xf32> to vector<200x128xf32>
    %5 = vector.extract_strided_slice %3 {offsets = [200, 0], sizes = [200, 128], strides = [1, 1]} : vector<800x128xf32> to vector<200x128xf32>
    %6 = arith.maximumf %4, %5 : vector<200x128xf32>
    %7 = vector.extract_strided_slice %3 {offsets = [400, 0], sizes = [200, 128], strides = [1, 1]} : vector<800x128xf32> to vector<200x128xf32>
    %8 = vector.extract_strided_slice %3 {offsets = [600, 0], sizes = [200, 128], strides = [1, 1]} : vector<800x128xf32> to vector<200x128xf32>
    %9 = arith.maximumf %7, %8 : vector<200x128xf32>
    %10 = arith.maximumf %6, %9 : vector<200x128xf32>
    %c0_4 = arith.constant 0 : index
    %c0_5 = arith.constant 0 : index
    %11 = vector.load %arg3[%c0_4, %c0_5] : memref<1x128xf32, #tpu.memory_space<vmem>>, vector<1x128xf32>
    %12 = vector.broadcast %11 : vector<1x128xf32> to vector<200x128xf32>
    %13 = arith.addf %10, %12 : vector<200x128xf32>
    %cst_6 = arith.constant 0.000000e+00 : f32
    %14 = vector.broadcast %cst_6 : f32 to vector<200x128xf32>
    %15 = arith.maximumf %13, %14 : vector<200x128xf32>
    %16 = arith.truncf %15 : vector<200x128xf32> to vector<200x128xbf16>
    %c0_7 = arith.constant 0 : index
    %c0_8 = arith.constant 0 : index
    %17 = vector.load %arg4[%c0_7, %c0_8] : memref<200x128xbf16, #tpu.memory_space<vmem>>, vector<200x128xbf16>
    tpu.vector_store %arg4[%c0_7, %c0_8], %16 {strides = array<i32>} : memref<200x128xbf16, #tpu.memory_space<vmem>>, vector<200x128xbf16>,
    return
  }
  func.func @transform_0(%arg0: i32) -> (i32, i32, i32) {
    %c0_i32 = arith.constant 0 : i32
    %c0_i32_0 = arith.constant 0 : i32
    %c0_i32_1 = arith.constant 0 : i32
    return %c0_i32, %arg0, %c0_i32_0 : i32, i32, i32
  }
  func.func @transform_1(%arg0: i32) -> (i32, i32) {
    %c0_i32 = arith.constant 0 : i32
    %c0_i32_0 = arith.constant 0 : i32
    %c0_i32_1 = arith.constant 0 : i32
    return %c0_i32, %c0_i32_0 : i32, i32
  }
  func.func @transform_2(%arg0: i32) -> (i32, i32) {
    %c0_i32 = arith.constant 0 : i32
    %c0_i32_0 = arith.constant 0 : i32
    %c0_i32_1 = arith.constant 0 : i32
    return %c0_i32, %c0_i32_0 : i32, i32
  }
  func.func @transform_3(%arg0: i32) -> (i32, i32) {
    %c0_i32 = arith.constant 0 : i32
    %c0_i32_0 = arith.constant 0 : i32
    return %arg0, %c0_i32 : i32, i32
  }
}

module attributes {stable_mosaic.version = 11 : i64} {
  func.func @_conv_pool_kernel(%arg0: i32, %arg1: memref<4x32x256xbf16, #tpu.memory_space<vmem>>, %arg2: memref<256x128xbf16, #tpu.memory_space<vmem>>, %arg3: memref<1x128xf32, #tpu.memory_space<vmem>>, %arg4: memref<32x128xbf16, #tpu.memory_space<vmem>>) attributes {dimension_semantics = [#tpu.dimension_semantics<parallel>], iteration_bounds = array<i64: 2>, scalar_prefetch = 0 : i64, scratch_operands = 0 : i64, tpu.core_type = #tpu.core_type<tc>, window_params = [{transform_indices = @transform_0, window_bounds = array<i64: 4, 32, 256>}, {pipeline_mode = #tpu.pipeline_mode<synchronous>, transform_indices = @transform_1, window_bounds = array<i64: 256, 128>}, {pipeline_mode = #tpu.pipeline_mode<synchronous>, transform_indices = @transform_2, window_bounds = array<i64: 1, 128>}, {transform_indices = @transform_3, window_bounds = array<i64: 32, 128>}]} {
    %c0 = arith.constant 0 : index
    %c0_0 = arith.constant 0 : index
    %c0_1 = arith.constant 0 : index
    %0 = vector.load %arg1[%c0, %c0_0, %c0_1] : memref<4x32x256xbf16, #tpu.memory_space<vmem>>, vector<4x32x256xbf16>
    %1 = vector.shape_cast %0 : vector<4x32x256xbf16> to vector<128x256xbf16>
    %c0_2 = arith.constant 0 : index
    %c0_3 = arith.constant 0 : index
    %2 = vector.load %arg2[%c0_2, %c0_3] : memref<256x128xbf16, #tpu.memory_space<vmem>>, vector<256x128xbf16>
    %cst = arith.constant dense<0.000000e+00> : vector<128x128xf32>
    %3 = tpu.matmul %1, %2, %cst {dimension_numbers = #tpu.dot_dimension_numbers<[1], [0], [0], [1], [0, 0, 1, 1], [], []>} : vector<128x256xbf16>, vector<256x128xbf16>, vector<128x128xf32> -> vector<128x128xf32>
    %4 = vector.extract_strided_slice %3 {offsets = [0, 0], sizes = [32, 128], strides = [1, 1]} : vector<128x128xf32> to vector<32x128xf32>
    %5 = vector.extract_strided_slice %3 {offsets = [32, 0], sizes = [32, 128], strides = [1, 1]} : vector<128x128xf32> to vector<32x128xf32>
    %6 = arith.maximumf %4, %5 : vector<32x128xf32>
    %7 = vector.extract_strided_slice %3 {offsets = [64, 0], sizes = [32, 128], strides = [1, 1]} : vector<128x128xf32> to vector<32x128xf32>
    %8 = vector.extract_strided_slice %3 {offsets = [96, 0], sizes = [32, 128], strides = [1, 1]} : vector<128x128xf32> to vector<32x128xf32>
    %9 = arith.maximumf %7, %8 : vector<32x128xf32>
    %10 = arith.maximumf %6, %9 : vector<32x128xf32>
    %c0_4 = arith.constant 0 : index
    %c0_5 = arith.constant 0 : index
    %11 = vector.load %arg3[%c0_4, %c0_5] : memref<1x128xf32, #tpu.memory_space<vmem>>, vector<1x128xf32>
    %12 = vector.broadcast %11 : vector<1x128xf32> to vector<32x128xf32>
    %13 = arith.addf %10, %12 : vector<32x128xf32>
    %cst_6 = arith.constant 0.000000e+00 : f32
    %14 = vector.broadcast %cst_6 : f32 to vector<32x128xf32>
    %15 = arith.maximumf %13, %14 : vector<32x128xf32>
    %16 = arith.truncf %15 : vector<32x128xf32> to vector<32x128xbf16>
    %c0_7 = arith.constant 0 : index
    %c0_8 = arith.constant 0 : index
    %17 = vector.load %arg4[%c0_7, %c0_8] : memref<32x128xbf16, #tpu.memory_space<vmem>>, vector<32x128xbf16>
    tpu.vector_store %arg4[%c0_7, %c0_8], %16 {strides = array<i32>} : memref<32x128xbf16, #tpu.memory_space<vmem>>, vector<32x128xbf16>,
    return
  }
  func.func @transform_0(%arg0: i32) -> (i32, i32, i32) {
    %c0_i32 = arith.constant 0 : i32
    %c0_i32_0 = arith.constant 0 : i32
    %c0_i32_1 = arith.constant 0 : i32
    return %c0_i32, %arg0, %c0_i32_0 : i32, i32, i32
  }
  func.func @transform_1(%arg0: i32) -> (i32, i32) {
    %c0_i32 = arith.constant 0 : i32
    %c0_i32_0 = arith.constant 0 : i32
    %c0_i32_1 = arith.constant 0 : i32
    return %c0_i32, %c0_i32_0 : i32, i32
  }
  func.func @transform_2(%arg0: i32) -> (i32, i32) {
    %c0_i32 = arith.constant 0 : i32
    %c0_i32_0 = arith.constant 0 : i32
    %c0_i32_1 = arith.constant 0 : i32
    return %c0_i32, %c0_i32_0 : i32, i32
  }
  func.func @transform_3(%arg0: i32) -> (i32, i32) {
    %c0_i32 = arith.constant 0 : i32
    %c0_i32_0 = arith.constant 0 : i32
    return %arg0, %c0_i32 : i32, i32
  }
}

module attributes {stable_mosaic.version = 11 : i64} {
  func.func @_fc_head_kernel(%arg0: i32, %arg1: memref<8x512xbf16, #tpu.memory_space<vmem>>, %arg2: memref<512x128xbf16, #tpu.memory_space<vmem>>, %arg3: memref<1x128xf32, #tpu.memory_space<vmem>>, %arg4: memref<128x128xbf16, #tpu.memory_space<vmem>>, %arg5: memref<1x128xf32, #tpu.memory_space<vmem>>, %arg6: memref<128x128xbf16, #tpu.memory_space<vmem>>, %arg7: memref<1x128xf32, #tpu.memory_space<vmem>>, %arg8: memref<8x128xf32, #tpu.memory_space<vmem>>) attributes {dimension_semantics = [#tpu.dimension_semantics<parallel>], iteration_bounds = array<i64: 2>, scalar_prefetch = 0 : i64, scratch_operands = 0 : i64, tpu.core_type = #tpu.core_type<tc>, window_params = [{transform_indices = @transform_0, window_bounds = array<i64: 8, 512>}, {pipeline_mode = #tpu.pipeline_mode<synchronous>, transform_indices = @transform_1, window_bounds = array<i64: 512, 128>}, {pipeline_mode = #tpu.pipeline_mode<synchronous>, transform_indices = @transform_2, window_bounds = array<i64: 1, 128>}, {pipeline_mode = #tpu.pipeline_mode<synchronous>, transform_indices = @transform_3, window_bounds = array<i64: 128, 128>}, {pipeline_mode = #tpu.pipeline_mode<synchronous>, transform_indices = @transform_4, window_bounds = array<i64: 1, 128>}, {pipeline_mode = #tpu.pipeline_mode<synchronous>, transform_indices = @transform_5, window_bounds = array<i64: 128, 128>}, {pipeline_mode = #tpu.pipeline_mode<synchronous>, transform_indices = @transform_6, window_bounds = array<i64: 1, 128>}, {transform_indices = @transform_7, window_bounds = array<i64: 8, 128>}]} {
    %c0 = arith.constant 0 : index
    %c0_0 = arith.constant 0 : index
    %0 = vector.load %arg1[%c0, %c0_0] : memref<8x512xbf16, #tpu.memory_space<vmem>>, vector<8x512xbf16>
    %c0_1 = arith.constant 0 : index
    %c0_2 = arith.constant 0 : index
    %1 = vector.load %arg2[%c0_1, %c0_2] : memref<512x128xbf16, #tpu.memory_space<vmem>>, vector<512x128xbf16>
    %cst = arith.constant dense<0.000000e+00> : vector<8x128xf32>
    %2 = tpu.matmul %0, %1, %cst {dimension_numbers = #tpu.dot_dimension_numbers<[1], [0], [0], [1], [0, 0, 1, 1], [], []>} : vector<8x512xbf16>, vector<512x128xbf16>, vector<8x128xf32> -> vector<8x128xf32>
    %c0_3 = arith.constant 0 : index
    %c0_4 = arith.constant 0 : index
    %3 = vector.load %arg3[%c0_3, %c0_4] : memref<1x128xf32, #tpu.memory_space<vmem>>, vector<1x128xf32>
    %4 = vector.broadcast %3 : vector<1x128xf32> to vector<8x128xf32>
    %5 = arith.addf %2, %4 : vector<8x128xf32>
    %cst_5 = arith.constant 0.000000e+00 : f32
    %6 = vector.broadcast %cst_5 : f32 to vector<8x128xf32>
    %7 = arith.maximumf %5, %6 : vector<8x128xf32>
    %8 = arith.truncf %7 : vector<8x128xf32> to vector<8x128xbf16>
    %c0_6 = arith.constant 0 : index
    %c0_7 = arith.constant 0 : index
    %9 = vector.load %arg4[%c0_6, %c0_7] : memref<128x128xbf16, #tpu.memory_space<vmem>>, vector<128x128xbf16>
    %cst_8 = arith.constant dense<0.000000e+00> : vector<8x128xf32>
    %10 = tpu.matmul %8, %9, %cst_8 {dimension_numbers = #tpu.dot_dimension_numbers<[1], [0], [0], [1], [0, 0, 1, 1], [], []>} : vector<8x128xbf16>, vector<128x128xbf16>, vector<8x128xf32> -> vector<8x128xf32>
    %c0_9 = arith.constant 0 : index
    %c0_10 = arith.constant 0 : index
    %11 = vector.load %arg5[%c0_9, %c0_10] : memref<1x128xf32, #tpu.memory_space<vmem>>, vector<1x128xf32>
    %12 = vector.broadcast %11 : vector<1x128xf32> to vector<8x128xf32>
    %13 = arith.addf %10, %12 : vector<8x128xf32>
    %cst_11 = arith.constant 0.000000e+00 : f32
    %14 = vector.broadcast %cst_11 : f32 to vector<8x128xf32>
    %15 = arith.maximumf %13, %14 : vector<8x128xf32>
    %16 = arith.truncf %15 : vector<8x128xf32> to vector<8x128xbf16>
    %c0_12 = arith.constant 0 : index
    %c0_13 = arith.constant 0 : index
    %17 = vector.load %arg6[%c0_12, %c0_13] : memref<128x128xbf16, #tpu.memory_space<vmem>>, vector<128x128xbf16>
    %cst_14 = arith.constant dense<0.000000e+00> : vector<8x128xf32>
    %18 = tpu.matmul %16, %17, %cst_14 {dimension_numbers = #tpu.dot_dimension_numbers<[1], [0], [0], [1], [0, 0, 1, 1], [], []>} : vector<8x128xbf16>, vector<128x128xbf16>, vector<8x128xf32> -> vector<8x128xf32>
    %c0_15 = arith.constant 0 : index
    %c0_16 = arith.constant 0 : index
    %19 = vector.load %arg7[%c0_15, %c0_16] : memref<1x128xf32, #tpu.memory_space<vmem>>, vector<1x128xf32>
    %20 = vector.broadcast %19 : vector<1x128xf32> to vector<8x128xf32>
    %21 = arith.addf %18, %20 : vector<8x128xf32>
    %c0_17 = arith.constant 0 : index
    %c0_18 = arith.constant 0 : index
    %22 = vector.load %arg8[%c0_17, %c0_18] : memref<8x128xf32, #tpu.memory_space<vmem>>, vector<8x128xf32>
    tpu.vector_store %arg8[%c0_17, %c0_18], %21 {strides = array<i32>} : memref<8x128xf32, #tpu.memory_space<vmem>>, vector<8x128xf32>,
    return
  }
  func.func @transform_0(%arg0: i32) -> (i32, i32) {
    %c0_i32 = arith.constant 0 : i32
    %c0_i32_0 = arith.constant 0 : i32
    return %arg0, %c0_i32 : i32, i32
  }
  func.func @transform_1(%arg0: i32) -> (i32, i32) {
    %c0_i32 = arith.constant 0 : i32
    %c0_i32_0 = arith.constant 0 : i32
    %c0_i32_1 = arith.constant 0 : i32
    return %c0_i32, %c0_i32_0 : i32, i32
  }
  func.func @transform_2(%arg0: i32) -> (i32, i32) {
    %c0_i32 = arith.constant 0 : i32
    %c0_i32_0 = arith.constant 0 : i32
    %c0_i32_1 = arith.constant 0 : i32
    return %c0_i32, %c0_i32_0 : i32, i32
  }
  func.func @transform_3(%arg0: i32) -> (i32, i32) {
    %c0_i32 = arith.constant 0 : i32
    %c0_i32_0 = arith.constant 0 : i32
    %c0_i32_1 = arith.constant 0 : i32
    return %c0_i32, %c0_i32_0 : i32, i32
  }
  func.func @transform_4(%arg0: i32) -> (i32, i32) {
    %c0_i32 = arith.constant 0 : i32
    %c0_i32_0 = arith.constant 0 : i32
    %c0_i32_1 = arith.constant 0 : i32
    return %c0_i32, %c0_i32_0 : i32, i32
  }
  func.func @transform_5(%arg0: i32) -> (i32, i32) {
    %c0_i32 = arith.constant 0 : i32
    %c0_i32_0 = arith.constant 0 : i32
    %c0_i32_1 = arith.constant 0 : i32
    return %c0_i32, %c0_i32_0 : i32, i32
  }
  func.func @transform_6(%arg0: i32) -> (i32, i32) {
    %c0_i32 = arith.constant 0 : i32
    %c0_i32_0 = arith.constant 0 : i32
    %c0_i32_1 = arith.constant 0 : i32
    return %c0_i32, %c0_i32_0 : i32, i32
  }
  func.func @transform_7(%arg0: i32) -> (i32, i32) {
    %c0_i32 = arith.constant 0 : i32
    %c0_i32_0 = arith.constant 0 : i32
    return %arg0, %c0_i32 : i32, i32
  }
}

</mosaic_0001>

<llo_original>
// kernel: net_forward.3
$region0: #{net_forward.3}
  #allocation0 [shape = 'u32[]', space=smem, size = 0x4, offset = 0x4, fixed_abs, tag = 'smem constant byte address 0x4 - core index']
  #allocation1 [shape = 'u32[144,128]{1,0:T(1,128)}', space=vmem, size = 0x12000, scoped, tag = 'internal scratch']
  %s0 = inlined_call_operand.vmem [shape: bf16[4,400,128], index: 0, kind: input, shape index: {}]
  %s1 = inlined_call_operand.vmem [shape: bf16[128,128], index: 1, kind: input, shape index: {}]
  %s2 = inlined_call_operand.vmem [shape: f32[1,128], index: 2, kind: input, shape index: {}]
  %s3 = inlined_call_operand.vmem [shape: bf16[400,128], index: 3, kind: output, shape index: {}]
  %s4 = sld [smem:[#allocation0]]
  $region86: #{net_forward.3} parent=0
    _
  %s6 = ssub.s32 1, %s4
  %s7 = scalar_select 0, %s6, %s4
  $region1: #{net_forward.3} parent=0
    #allocation2 [shape = 'u8[409600]{0}', space=vmem, size = 0x64000, scoped, tag = 'input window, operand 0']
    loop: start=0, step=1, limit=4
    $region2: #{net_forward.3} parent=1 // loop_pre_header
      _
    $region3: #{net_forward.3} parent=1 // loop_header
      %s9 = sphi 0, %s13
      %p10 = scmp.ge.s32.totalorder %s9, 4
      %s19 = sphi 0, %s21
      %s22 = sphi 0, %s19
      %s23 = sphi 0, %s22
      %s39 = sphi 0, %s23
      %s43 = sphi 0, %s43
      %s45 = sphi 0, %s43
      %s46 = sphi 0, %s45
      %s60 = sphi 0, %s46
      %s64 = sphi 0, %s64
      %s66 = sphi 0, %s64
      %s67 = sphi 0, %s66
      %s81 = sphi 0, %s67
      %s87 = sphi 0, %s89
      %s90 = sphi 0, %s87
      %s91 = sphi 0, %s90
      %s107 = sphi 0, %s91
    $region4: #{net_forward.3} parent=1 // loop_header_branch
      %12 = sbr.rel (%p10) target = $region8
    $region5: #{net_forward.3} parent=1 // loop_body
      %s14 = ssub.s32 %s9, 1
      %s15 = ssub.s32 %s9, 2
      %s16 = sadd.s32 %s9, 1
      %s17 = ssub.s32 %s9, %s16
      %p18 = scmp.eq.s32.totalorder %s17, 0
      %s20 = sadd.s32 %s19, 1
      %s21 = scalar_select %p18, %s19, %s20
      %p24 = pneg %p18
      %p25 = scmp.eq.s32.totalorder %s9, 1
      %p26 = por %p24, %p25
      %p27 = scmp.ne.s32.totalorder %s19, %s22
      %p28 = scmp.eq.s32.totalorder %s9, 0
      %p29 = por %p27, %p28
      %p30 = scmp.ne.s32.totalorder %s19, %s22
      %p31 = scmp.eq.s32.totalorder %s14, 1
      %p32 = por %p30, %p31
      %p33 = scmp.ne.s32.totalorder %s22, %s23
      %p34 = scmp.eq.s32.totalorder %s14, 0
      %p35 = por %p33, %p34
      %p36 = scmp.ne.s32.totalorder %s22, %s23
      %p37 = scmp.eq.s32.totalorder %s15, 1
      %p38 = por %p36, %p37
      %p40 = scmp.ne.s32.totalorder %s23, %s39
      %p41 = scmp.eq.s32.totalorder %s15, 0
      %p42 = por %p40, %p41
      %s44 = sadd.s32 %s43, 1
      %p47 = scmp.eq.s32.totalorder %s9, 1
      %p48 = scmp.ne.s32.totalorder %s43, %s45
      %p49 = scmp.eq.s32.totalorder %s9, 0
      %p50 = por %p48, %p49
      %p51 = scmp.ne.s32.totalorder %s43, %s45
      %p52 = scmp.eq.s32.totalorder %s14, 1
      %p53 = por %p51, %p52
      %p54 = scmp.ne.s32.totalorder %s45, %s46
      %p55 = scmp.eq.s32.totalorder %s14, 0
      %p56 = por %p54, %p55
      %p57 = scmp.ne.s32.totalorder %s45, %s46
      %p58 = scmp.eq.s32.totalorder %s15, 1
      %p59 = por %p57, %p58
      %p61 = scmp.ne.s32.totalorder %s46, %s60
      %p62 = scmp.eq.s32.totalorder %s15, 0
      %p63 = por %p61, %p62
      %s65 = sadd.s32 %s64, 1
      %p68 = scmp.eq.s32.totalorder %s9, 1
      %p69 = scmp.ne.s32.totalorder %s64, %s66
      %p70 = scmp.eq.s32.totalorder %s9, 0
      %p71 = por %p69, %p70
      %p72 = scmp.ne.s32.totalorder %s64, %s66
      %p73 = scmp.eq.s32.totalorder %s14, 1
      %p74 = por %p72, %p73
      %p75 = scmp.ne.s32.totalorder %s66, %s67
      %p76 = scmp.eq.s32.totalorder %s14, 0
      %p77 = por %p75, %p76
      %p78 = scmp.ne.s32.totalorder %s66, %s67
      %p79 = scmp.eq.s32.totalorder %s15, 1
      %p80 = por %p78, %p79
      %p82 = scmp.ne.s32.totalorder %s67, %s81
      %p83 = scmp.eq.s32.totalorder %s15, 0
      %p84 = por %p82, %p83
      %s85 = ssub.s32 %s9, %s16
      %p86 = scmp.eq.s32.totalorder %s85, 0
      %s88 = sadd.s32 %s87, 1
      %s89 = scalar_select %p86, %s87, %s88
      %p92 = pneg %p86
      %p93 = scmp.eq.s32.totalorder %s9, 1
      %p94 = por %p92, %p93
      %p95 = scmp.ne.s32.totalorder %s87, %s90
      %p96 = scmp.eq.s32.totalorder %s9, 0
      %p97 = por %p95, %p96
      %p98 = scmp.ne.s32.totalorder %s87, %s90
      %p99 = scmp.eq.s32.totalorder %s14, 1
      %p100 = por %p98, %p99
      %p101 = scmp.ne.s32.totalorder %s90, %s91
      %p102 = scmp.eq.s32.totalorder %s14, 0
      %p103 = por %p101, %p102
      %p104 = scmp.ne.s32.totalorder %s90, %s91
      %p105 = scmp.eq.s32.totalorder %s15, 1
      %p106 = por %p104, %p105
      %p108 = scmp.ne.s32.totalorder %s91, %s107
      %p109 = scmp.eq.s32.totalorder %s15, 0
      %p110 = por %p108, %p109
      %p111 = scmp.le.s32.totalorder 1, %s9
      %p112 = scmp.lt.s32.totalorder %s9, 3
      %p113 = pnand %p111, %p112
      %p114 = pneg %p113
      // Predicated region
      $region9: #{net_forward.3} parent=5 // pred_check
        _
      $region10: #{net_forward.3} parent=5 // pred_check_branch
        %116 = sbr.rel (%p113) target = $region12
      $region11: #{net_forward.3} parent=5 // pred_region
        %s117 = ssub.s32 %s9, 1
        // Predicated region
        $region13: #{net_forward.3} parent=11 // pred_check
          %p118 = pneg %p56
        $region14: #{net_forward.3} parent=11 // pred_check_branch
          %120 = sbr.rel (%p118) target = $region16
        $region15: #{net_forward.3} parent=11 // pred_region
          _
        $region16: #{net_forward.3} parent=11 // pred_fallthru
          _
        // Predicated region
        $region17: #{net_forward.3} parent=11 // pred_check
          %p121 = pneg %p77
        $region18: #{net_forward.3} parent=11 // pred_check_branch
          %123 = sbr.rel (%p121) target = $region20
        $region19: #{net_forward.3} parent=11 // pred_region
          _
        $region20: #{net_forward.3} parent=11 // pred_fallthru
          _
      $region12: #{net_forward.3} parent=5 // pred_fallthru
        _
      %p124 = scmp.lt.s32.totalorder %s9, 2
      // Predicated region
      $region21: #{net_forward.3} parent=5 // pred_check
        %p125 = pneg %p124
      $region22: #{net_forward.3} parent=5 // pred_check_branch
        %127 = sbr.rel (%p125) target = $region24
      $region23: #{net_forward.3} parent=5 // pred_region
        // Predicated region
        $region25: #{net_forward.3} parent=23 // pred_check
          %p128 = pneg %p29
        $region26: #{net_forward.3} parent=23 // pred_check_branch
          %130 = sbr.rel (%p128) target = $region28
        $region27: #{net_forward.3} parent=23 // pred_region
          %s131 = sand.u32 %s19, 1
          %s132 = sand.u32 %s19, 1
          %s133 = smul.addr %s132, 400
          %s134 = scalar_lea.vmem [#allocation2], %s133
          %s135 = smul.u32 25, %s9
          %s136 = smul.addr %s135, 4
          %s137 = scalar_lea.vmem %s0, %s136
          // Predicated region
          $region29: #{net_forward.3} parent=27 // pred_check
            _
          $region30: #{net_forward.3} parent=27 // pred_check_branch
            %139 = sbr.rel (0) target = $region32
          $region31: #{net_forward.3} parent=27 // pred_region
            // Predicated region
            $region33: #{net_forward.3} parent=31 // pred_check
              _
            $region34: #{net_forward.3} parent=31 // pred_check_branch
              %141 = sbr.rel target = $region36
            $region35: #{net_forward.3} parent=31 // pred_region
              // Predicated region
              $region48: #{net_forward.3} parent=35 // pred_check
                _
              $region49: #{net_forward.3} parent=35 // pred_check_branch
                %354 = sbr.rel (0) target = $region51
              $region50: #{net_forward.3} parent=35 // pred_region
                loop: start=0, step=1, limit=1
                $region52: #{net_forward.3} parent=50 // loop_pre_header
                  _
                $region53: #{net_forward.3} parent=50 // loop_header
                  %s356 = sphi 0, %s360
                  %p357 = scmp.ge.s32.totalorder %s356, 1
                  %s361 = sphi %s137, %s137
                  %s362 = sphi %s134, %s134
                $region54: #{net_forward.3} parent=50 // loop_header_branch
                  %359 = sbr.rel (%p357) target = $region58
                $region55: #{net_forward.3} parent=50 // loop_body
                  _
                $region56: #{net_forward.3} parent=50 // loop_footer
                  %s360 = sadd.s32 1, %s356
                $region57: #{net_forward.3} parent=50 // loop_footer_branch
                  %355 = sbr.rel target = $region53
                $region58: #{net_forward.3} parent=50 // loop_exit
                  _
                loop: start=0, step=1, limit=1
                $region59: #{net_forward.3} parent=50 // loop_pre_header
                  _
                $region60: #{net_forward.3} parent=50 // loop_header
                  %s365 = sphi 0, %s369
                  %p366 = scmp.ge.s32.totalorder %s365, 1
                  %s370 = sphi %s137, %s137
                  %s371 = sphi %s134, %s134
                $region61: #{net_forward.3} parent=50 // loop_header_branch
                  %368 = sbr.rel (%p366) target = $region65
                $region62: #{net_forward.3} parent=50 // loop_body
                  %v372 = vld [vmem:[%s370] sm:$0xf]
                  %373 = vst [vmem:[%s371] sm:$0xf] %v372
                  %v374 = vld [vmem:[%s370 + $0x4] sm:$0xf]
                  %375 = vst [vmem:[%s371 + $0x4] sm:$0xf] %v374
                  %v376 = vld [vmem:[%s370 + $0x8] sm:$0xf]
                  %377 = vst [vmem:[%s371 + $0x8] sm:$0xf] %v376
                  %v378 = vld [vmem:[%s370 + $0xc] sm:$0xf]
                  %379 = vst [vmem:[%s371 + $0xc] sm:$0xf] %v378
                  %v380 = vld [vmem:[%s370 + $0x10] sm:$0xf]
                  %381 = vst [vmem:[%s371 + $0x10] sm:$0xf] %v380
                  %v382 = vld [vmem:[%s370 + $0x14] sm:$0xf]
                  %383 = vst [vmem:[%s371 + $0x14] sm:$0xf] %v382
                  %v384 = vld [vmem:[%s370 + $0x18] sm:$0xf]
                  %385 = vst [vmem:[%s371 + $0x18] sm:$0xf] %v384
                  %v386 = vld [vmem:[%s370 + $0x1c] sm:$0xf]
                  %387 = vst [vmem:[%s371 + $0x1c] sm:$0xf] %v386
                  %v388 = vld [vmem:[%s370 + $0x20] sm:$0xf]
                  %389 = vst [vmem:[%s371 + $0x20] sm:$0xf] %v388
                  %v390 = vld [vmem:[%s370 + $0x24] sm:$0xf]
                  %391 = vst [vmem:[%s371 + $0x24] sm:$0xf] %v390
                  %v392 = vld [vmem:[%s370 + $0x28] sm:$0xf]
                  %393 = vst [vmem:[%s371 + $0x28] sm:$0xf] %v392
                  %v394 = vld [vmem:[%s370 + $0x2c] sm:$0xf]
                  %395 = vst [vmem:[%s371 + $0x2c] sm:$0xf] %v394
                  %v396 = vld [vmem:[%s370 + $0x30] sm:$0xf]
                  %397 = vst [vmem:[%s371 + $0x30] sm:$0xf] %v396
                  %v398 = vld [vmem:[%s370 + $0x34] sm:$0xf]
                  %399 = vst [vmem:[%s371 + $0x34] sm:$0xf] %v398
                  %v400 = vld [vmem:[%s370 + $0x38] sm:$0xf]
                  %401 = vst [vmem:[%s371 + $0x38] sm:$0xf] %v400
                  %v402 = vld [vmem:[%s370 + $0x3c] sm:$0xf]
                  %403 = vst [vmem:[%s371 + $0x3c] sm:$0xf] %v402
                  %v404 = vld [vmem:[%s370 + $0x40] sm:$0xf]
                  %405 = vst [vmem:[%s371 + $0x40] sm:$0xf] %v404
                  %v406 = vld [vmem:[%s370 + $0x44] sm:$0xf]
                  %407 = vst [vmem:[%s371 + $0x44] sm:$0xf] %v406
                  %v408 = vld [vmem:[%s370 + $0x48] sm:$0xf]
                  %409 = vst [vmem:[%s371 + $0x48] sm:$0xf] %v408
                  %v410 = vld [vmem:[%s370 + $0x4c] sm:$0xf]
                  %411 = vst [vmem:[%s371 + $0x4c] sm:$0xf] %v410
                  %v412 = vld [vmem:[%s370 + $0x50] sm:$0xf]
                  %413 = vst [vmem:[%s371 + $0x50] sm:$0xf] %v412
                  %v414 = vld [vmem:[%s370 + $0x54] sm:$0xf]
                  %415 = vst [vmem:[%s371 + $0x54] sm:$0xf] %v414
                  %v416 = vld [vmem:[%s370 + $0x58] sm:$0xf]
                  %417 = vst [vmem:[%s371 + $0x58] sm:$0xf] %v416
                  %v418 = vld [vmem:[%s370 + $0x5c] sm:$0xf]
                  %419 = vst [vmem:[%s371 + $0x5c] sm:$0xf] %v418
                  %v420 = vld [vmem:[%s370 + $0x60] sm:$0xf]
                  %421 = vst [vmem:[%s371 + $0x60] sm:$0xf] %v420
                  %v422 = vld [vmem:[%s370 + $0xc8] sm:$0xf]
                  %423 = vst [vmem:[%s371 + $0x64] sm:$0xf] %v422
                  %v424 = vld [vmem:[%s370 + $0xcc] sm:$0xf]
                  %425 = vst [vmem:[%s371 + $0x68] sm:$0xf] %v424
                  %v426 = vld [vmem:[%s370 + $0xd0] sm:$0xf]
                  %427 = vst [vmem:[%s371 + $0x6c] sm:$0xf] %v426
                  %v428 = vld [vmem:[%s370 + $0xd4] sm:$0xf]
                  %429 = vst [vmem:[%s371 + $0x70] sm:$0xf] %v428
                  %v430 = vld [vmem:[%s370 + $0xd8] sm:$0xf]
                  %431 = vst [vmem:[%s371 + $0x74] sm:$0xf] %v430
                  %v432 = vld [vmem:[%s370 + $0xdc] sm:$0xf]
                  %433 = vst [vmem:[%s371 + $0x78] sm:$0xf] %v432
                  %v434 = vld [vmem:[%s370 + $0xe0] sm:$0xf]
                  %435 = vst [vmem:[%s371 + $0x7c] sm:$0xf] %v434
                  %v436 = vld [vmem:[%s370 + $0xe4] sm:$0xf]
                  %437 = vst [vmem:[%s371 + $0x80] sm:$0xf] %v436
                  %v438 = vld [vmem:[%s370 + $0xe8] sm:$0xf]
                  %439 = vst [vmem:[%s371 + $0x84] sm:$0xf] %v438
                  %v440 = vld [vmem:[%s370 + $0xec] sm:$0xf]
                  %441 = vst [vmem:[%s371 + $0x88] sm:$0xf] %v440
                  %v442 = vld [vmem:[%s370 + $0xf0] sm:$0xf]
                  %443 = vst [vmem:[%s371 + $0x8c] sm:$0xf] %v442
                  %v444 = vld [vmem:[%s370 + $0xf4] sm:$0xf]
                  %445 = vst [vmem:[%s371 + $0x90] sm:$0xf] %v444
                  %v446 = vld [vmem:[%s370 + $0xf8] sm:$0xf]
                  %447 = vst [vmem:[%s371 + $0x94] sm:$0xf] %v446
                  %v448 = vld [vmem:[%s370 + $0xfc] sm:$0xf]
                  %449 = vst [vmem:[%s371 + $0x98] sm:$0xf] %v448
                  %v450 = vld [vmem:[%s370 + $0x100] sm:$0xf]
                  %451 = vst [vmem:[%s371 + $0x9c] sm:$0xf] %v450
                  %v452 = vld [vmem:[%s370 + $0x104] sm:$0xf]
                  %453 = vst [vmem:[%s371 + $0xa0] sm:$0xf] %v452
                  %v454 = vld [vmem:[%s370 + $0x108] sm:$0xf]
                  %455 = vst [vmem:[%s371 + $0xa4] sm:$0xf] %v454
                  %v456 = vld [vmem:[%s370 + $0x10c] sm:$0xf]
                  %457 = vst [vmem:[%s371 + $0xa8] sm:$0xf] %v456
                  %v458 = vld [vmem:[%s370 + $0x110] sm:$0xf]
                  %459 = vst [vmem:[%s371 + $0xac] sm:$0xf] %v458
                  %v460 = vld [vmem:[%s370 + $0x114] sm:$0xf]
                  %461 = vst [vmem:[%s371 + $0xb0] sm:$0xf] %v460
                  %v462 = vld [vmem:[%s370 + $0x118] sm:$0xf]
                  %463 = vst [vmem:[%s371 + $0xb4] sm:$0xf] %v462
                  %v464 = vld [vmem:[%s370 + $0x11c] sm:$0xf]
                  %465 = vst [vmem:[%s371 + $0xb8] sm:$0xf] %v464
                  %v466 = vld [vmem:[%s370 + $0x120] sm:$0xf]
                  %467 = vst [vmem:[%s371 + $0xbc] sm:$0xf] %v466
                  %v468 = vld [vmem:[%s370 + $0x124] sm:$0xf]
                  %469 = vst [vmem:[%s371 + $0xc0] sm:$0xf] %v468
                  %v470 = vld [vmem:[%s370 + $0x128] sm:$0xf]
                  %471 = vst [vmem:[%s371 + $0xc4] sm:$0xf] %v470
                  %v472 = vld [vmem:[%s370 + $0x190] sm:$0xf]
                  %473 = vst [vmem:[%s371 + $0xc8] sm:$0xf] %v472
                  %v474 = vld [vmem:[%s370 + $0x194] sm:$0xf]
                  %475 = vst [vmem:[%s371 + $0xcc] sm:$0xf] %v474
                  %v476 = vld [vmem:[%s370 + $0x198] sm:$0xf]
                  %477 = vst [vmem:[%s371 + $0xd0] sm:$0xf] %v476
                  %v478 = vld [vmem:[%s370 + $0x19c] sm:$0xf]
                  %479 = vst [vmem:[%s371 + $0xd4] sm:$0xf] %v478
                  %v480 = vld [vmem:[%s370 + $0x1a0] sm:$0xf]
                  %481 = vst [vmem:[%s371 + $0xd8] sm:$0xf] %v480
                  %v482 = vld [vmem:[%s370 + $0x1a4] sm:$0xf]
                  %483 = vst [vmem:[%s371 + $0xdc] sm:$0xf] %v482
                  %v484 = vld [vmem:[%s370 + $0x1a8] sm:$0xf]
                  %485 = vst [vmem:[%s371 + $0xe0] sm:$0xf] %v484
                  %v486 = vld [vmem:[%s370 + $0x1ac] sm:$0xf]
                  %487 = vst [vmem:[%s371 + $0xe4] sm:$0xf] %v486
                  %v488 = vld [vmem:[%s370 + $0x1b0] sm:$0xf]
                  %489 = vst [vmem:[%s371 + $0xe8] sm:$0xf] %v488
                  %v490 = vld [vmem:[%s370 + $0x1b4] sm:$0xf]
                  %491 = vst [vmem:[%s371 + $0xec] sm:$0xf] %v490
                  %v492 = vld [vmem:[%s370 + $0x1b8] sm:$0xf]
                  %493 = vst [vmem:[%s371 + $0xf0] sm:$0xf] %v492
                  %v494 = vld [vmem:[%s370 + $0x1bc] sm:$0xf]
                  %495 = vst [vmem:[%s371 + $0xf4] sm:$0xf] %v494
                  %v496 = vld [vmem:[%s370 + $0x1c0] sm:$0xf]
                  %497 = vst [vmem:[%s371 + $0xf8] sm:$0xf] %v496
                  %v498 = vld [vmem:[%s370 + $0x1c4] sm:$0xf]
                  %499 = vst [vmem:[%s371 + $0xfc] sm:$0xf] %v498
                  %v500 = vld [vmem:[%s370 + $0x1c8] sm:$0xf]
                  %501 = vst [vmem:[%s371 + $0x100] sm:$0xf] %v500
                  %v502 = vld [vmem:[%s370 + $0x1cc] sm:$0xf]
                  %503 = vst [vmem:[%s371 + $0x104] sm:$0xf] %v502
                  %v504 = vld [vmem:[%s370 + $0x1d0] sm:$0xf]
                  %505 = vst [vmem:[%s371 + $0x108] sm:$0xf] %v504
                  %v506 = vld [vmem:[%s370 + $0x1d4] sm:$0xf]
                  %507 = vst [vmem:[%s371 + $0x10c] sm:$0xf] %v506
                  %v508 = vld [vmem:[%s370 + $0x1d8] sm:$0xf]
                  %509 = vst [vmem:[%s371 + $0x110] sm:$0xf] %v508
                  %v510 = vld [vmem:[%s370 + $0x1dc] sm:$0xf]
                  %511 = vst [vmem:[%s371 + $0x114] sm:$0xf] %v510
                  %v512 = vld [vmem:[%s370 + $0x1e0] sm:$0xf]
                  %513 = vst [vmem:[%s371 + $0x118] sm:$0xf] %v512
                  %v514 = vld [vmem:[%s370 + $0x1e4] sm:$0xf]
                  %515 = vst [vmem:[%s371 + $0x11c] sm:$0xf] %v514
                  %v516 = vld [vmem:[%s370 + $0x1e8] sm:$0xf]
                  %517 = vst [vmem:[%s371 + $0x120] sm:$0xf] %v516
                  %v518 = vld [vmem:[%s370 + $0x1ec] sm:$0xf]
                  %519 = vst [vmem:[%s371 + $0x124] sm:$0xf] %v518
                  %v520 = vld [vmem:[%s370 + $0x1f0] sm:$0xf]
                  %521 = vst [vmem:[%s371 + $0x128] sm:$0xf] %v520
                  %v522 = vld [vmem:[%s370 + $0x258] sm:$0xf]
                  %523 = vst [vmem:[%s371 + $0x12c] sm:$0xf] %v522
                  %v524 = vld [vmem:[%s370 + $0x25c] sm:$0xf]
                  %525 = vst [vmem:[%s371 + $0x130] sm:$0xf] %v524
                  %v526 = vld [vmem:[%s370 + $0x260] sm:$0xf]
                  %527 = vst [vmem:[%s371 + $0x134] sm:$0xf] %v526
                  %v528 = vld [vmem:[%s370 + $0x264] sm:$0xf]
                  %529 = vst [vmem:[%s371 + $0x138] sm:$0xf] %v528
                  %v530 = vld [vmem:[%s370 + $0x268] sm:$0xf]
                  %531 = vst [vmem:[%s371 + $0x13c] sm:$0xf] %v530
                  %v532 = vld [vmem:[%s370 + $0x26c] sm:$0xf]
                  %533 = vst [vmem:[%s371 + $0x140] sm:$0xf] %v532
                  %v534 = vld [vmem:[%s370 + $0x270] sm:$0xf]
                  %535 = vst [vmem:[%s371 + $0x144] sm:$0xf] %v534
                  %v536 = vld [vmem:[%s370 + $0x274] sm:$0xf]
                  %537 = vst [vmem:[%s371 + $0x148] sm:$0xf] %v536
                  %v538 = vld [vmem:[%s370 + $0x278] sm:$0xf]
                  %539 = vst [vmem:[%s371 + $0x14c] sm:$0xf] %v538
                  %v540 = vld [vmem:[%s370 + $0x27c] sm:$0xf]
                  %541 = vst [vmem:[%s371 + $0x150] sm:$0xf] %v540
                  %v542 = vld [vmem:[%s370 + $0x280] sm:$0xf]
                  %543 = vst [vmem:[%s371 + $0x154] sm:$0xf] %v542
                  %v544 = vld [vmem:[%s370 + $0x284] sm:$0xf]
                  %545 = vst [vmem:[%s371 + $0x158] sm:$0xf] %v544
                  %v546 = vld [vmem:[%s370 + $0x288] sm:$0xf]
                  %547 = vst [vmem:[%s371 + $0x15c] sm:$0xf] %v546
                  %v548 = vld [vmem:[%s370 + $0x28c] sm:$0xf]
                  %549 = vst [vmem:[%s371 + $0x160] sm:$0xf] %v548
                  %v550 = vld [vmem:[%s370 + $0x290] sm:$0xf]
                  %551 = vst [vmem:[%s371 + $0x164] sm:$0xf] %v550
                  %v552 = vld [vmem:[%s370 + $0x294] sm:$0xf]
                  %553 = vst [vmem:[%s371 + $0x168] sm:$0xf] %v552
                  %v554 = vld [vmem:[%s370 + $0x298] sm:$0xf]
                  %555 = vst [vmem:[%s371 + $0x16c] sm:$0xf] %v554
                  %v556 = vld [vmem:[%s370 + $0x29c] sm:$0xf]
                  %557 = vst [vmem:[%s371 + $0x170] sm:$0xf] %v556
                  %v558 = vld [vmem:[%s370 + $0x2a0] sm:$0xf]
                  %559 = vst [vmem:[%s371 + $0x174] sm:$0xf] %v558
                  %v560 = vld [vmem:[%s370 + $0x2a4] sm:$0xf]
                  %561 = vst [vmem:[%s371 + $0x178] sm:$0xf] %v560
                  %v562 = vld [vmem:[%s370 + $0x2a8] sm:$0xf]
                  %563 = vst [vmem:[%s371 + $0x17c] sm:$0xf] %v562
                  %v564 = vld [vmem:[%s370 + $0x2ac] sm:$0xf]
                  %565 = vst [vmem:[%s371 + $0x180] sm:$0xf] %v564
                  %v566 = vld [vmem:[%s370 + $0x2b0] sm:$0xf]
                  %567 = vst [vmem:[%s371 + $0x184] sm:$0xf] %v566
                  %v568 = vld [vmem:[%s370 + $0x2b4] sm:$0xf]
                  %569 = vst [vmem:[%s371 + $0x188] sm:$0xf] %v568
                  %v570 = vld [vmem:[%s370 + $0x2b8] sm:$0xf]
                  %571 = vst [vmem:[%s371 + $0x18c] sm:$0xf] %v570
                $region63: #{net_forward.3} parent=50 // loop_footer
                  %s369 = sadd.s32 1, %s365
                $region64: #{net_forward.3} parent=50 // loop_footer_branch
                  %364 = sbr.rel target = $region60
                $region65: #{net_forward.3} parent=50 // loop_exit
                  _
              $region51: #{net_forward.3} parent=35 // pred_fallthru
                _
            $region36: #{net_forward.3} parent=31 // pred_fallthru
              _
            // Predicated region
            $region37: #{net_forward.3} parent=31 // pred_check
              _
            $region38: #{net_forward.3} parent=31 // pred_check_branch
              %143 = sbr.rel (0) target = $region40
            $region39: #{net_forward.3} parent=31 // pred_region
              loop: start=0, step=1, limit=1
              $region41: #{net_forward.3} parent=39 // loop_pre_header
                _
              $region42: #{net_forward.3} parent=39 // loop_header
                %s146 = sphi 0, %s150
                %p147 = scmp.ge.s32.totalorder %s146, 1
                %s151 = sphi %s137, %s137
                %s152 = sphi %s134, %s134
              $region43: #{net_forward.3} parent=39 // loop_header_branch
                %149 = sbr.rel (%p147) target = $region47
              $region44: #{net_forward.3} parent=39 // loop_body
                %v153 = vld [vmem:[%s151] sm:$0xf]
                %154 = vst [vmem:[%s152] sm:$0xf] %v153
                %v155 = vld [vmem:[%s151 + $0x4] sm:$0xf]
                %156 = vst [vmem:[%s152 + $0x4] sm:$0xf] %v155
                %v157 = vld [vmem:[%s151 + $0x8] sm:$0xf]
                %158 = vst [vmem:[%s152 + $0x8] sm:$0xf] %v157
                %v159 = vld [vmem:[%s151 + $0xc] sm:$0xf]
                %160 = vst [vmem:[%s152 + $0xc] sm:$0xf] %v159
                %v161 = vld [vmem:[%s151 + $0x10] sm:$0xf]
                %162 = vst [vmem:[%s152 + $0x10] sm:$0xf] %v161
                %v163 = vld [vmem:[%s151 + $0x14] sm:$0xf]
                %164 = vst [vmem:[%s152 + $0x14] sm:$0xf] %v163
                %v165 = vld [vmem:[%s151 + $0x18] sm:$0xf]
                %166 = vst [vmem:[%s152 + $0x18] sm:$0xf] %v165
                %v167 = vld [vmem:[%s151 + $0x1c] sm:$0xf]
                %168 = vst [vmem:[%s152 + $0x1c] sm:$0xf] %v167
                %v169 = vld [vmem:[%s151 + $0x20] sm:$0xf]
                %170 = vst [vmem:[%s152 + $0x20] sm:$0xf] %v169
                %v171 = vld [vmem:[%s151 + $0x24] sm:$0xf]
                %172 = vst [vmem:[%s152 + $0x24] sm:$0xf] %v171
                %v173 = vld [vmem:[%s151 + $0x28] sm:$0xf]
                %174 = vst [vmem:[%s152 + $0x28] sm:$0xf] %v173
                %v175 = vld [vmem:[%s151 + $0x2c] sm:$0xf]
                %176 = vst [vmem:[%s152 + $0x2c] sm:$0xf] %v175
                %v177 = vld [vmem:[%s151 + $0x30] sm:$0xf]
                %178 = vst [vmem:[%s152 + $0x30] sm:$0xf] %v177
                %v179 = vld [vmem:[%s151 + $0x34] sm:$0xf]
                %180 = vst [vmem:[%s152 + $0x34] sm:$0xf] %v179
                %v181 = vld [vmem:[%s151 + $0x38] sm:$0xf]
                %182 = vst [vmem:[%s152 + $0x38] sm:$0xf] %v181
                %v183 = vld [vmem:[%s151 + $0x3c] sm:$0xf]
                %184 = vst [vmem:[%s152 + $0x3c] sm:$0xf] %v183
                %v185 = vld [vmem:[%s151 + $0x40] sm:$0xf]
                %186 = vst [vmem:[%s152 + $0x40] sm:$0xf] %v185
                %v187 = vld [vmem:[%s151 + $0x44] sm:$0xf]
                %188 = vst [vmem:[%s152 + $0x44] sm:$0xf] %v187
                %v189 = vld [vmem:[%s151 + $0x48] sm:$0xf]
                %190 = vst [vmem:[%s152 + $0x48] sm:$0xf] %v189
                %v191 = vld [vmem:[%s151 + $0x4c] sm:$0xf]
                %192 = vst [vmem:[%s152 + $0x4c] sm:$0xf] %v191
                %v193 = vld [vmem:[%s151 + $0x50] sm:$0xf]
                %194 = vst [vmem:[%s152 + $0x50] sm:$0xf] %v193
                %v195 = vld [vmem:[%s151 + $0x54] sm:$0xf]
                %196 = vst [vmem:[%s152 + $0x54] sm:$0xf] %v195
                %v197 = vld [vmem:[%s151 + $0x58] sm:$0xf]
                %198 = vst [vmem:[%s152 + $0x58] sm:$0xf] %v197
                %v199 = vld [vmem:[%s151 + $0x5c] sm:$0xf]
                %200 = vst [vmem:[%s152 + $0x5c] sm:$0xf] %v199
                %v201 = vld [vmem:[%s151 + $0x60] sm:$0xf]
                %202 = vst [vmem:[%s152 + $0x60] sm:$0xf] %v201
                %v203 = vld [vmem:[%s151 + $0xc8] sm:$0xf]
                %204 = vst [vmem:[%s152 + $0x64] sm:$0xf] %v203
                %v205 = vld [vmem:[%s151 + $0xcc] sm:$0xf]
                %206 = vst [vmem:[%s152 + $0x68] sm:$0xf] %v205
                %v207 = vld [vmem:[%s151 + $0xd0] sm:$0xf]
                %208 = vst [vmem:[%s152 + $0x6c] sm:$0xf] %v207
                %v209 = vld [vmem:[%s151 + $0xd4] sm:$0xf]
                %210 = vst [vmem:[%s152 + $0x70] sm:$0xf] %v209
                %v211 = vld [vmem:[%s151 + $0xd8] sm:$0xf]
                %212 = vst [vmem:[%s152 + $0x74] sm:$0xf] %v211
                %v213 = vld [vmem:[%s151 + $0xdc] sm:$0xf]
                %214 = vst [vmem:[%s152 + $0x78] sm:$0xf] %v213
                %v215 = vld [vmem:[%s151 + $0xe0] sm:$0xf]
                %216 = vst [vmem:[%s152 + $0x7c] sm:$0xf] %v215
                %v217 = vld [vmem:[%s151 + $0xe4] sm:$0xf]
                %218 = vst [vmem:[%s152 + $0x80] sm:$0xf] %v217
                %v219 = vld [vmem:[%s151 + $0xe8] sm:$0xf]
                %220 = vst [vmem:[%s152 + $0x84] sm:$0xf] %v219
                %v221 = vld [vmem:[%s151 + $0xec] sm:$0xf]
                %222 = vst [vmem:[%s152 + $0x88] sm:$0xf] %v221
                %v223 = vld [vmem:[%s151 + $0xf0] sm:$0xf]
                %224 = vst [vmem:[%s152 + $0x8c] sm:$0xf] %v223
                %v225 = vld [vmem:[%s151 + $0xf4] sm:$0xf]
                %226 = vst [vmem:[%s152 + $0x90] sm:$0xf] %v225
                %v227 = vld [vmem:[%s151 + $0xf8] sm:$0xf]
                %228 = vst [vmem:[%s152 + $0x94] sm:$0xf] %v227
                %v229 = vld [vmem:[%s151 + $0xfc] sm:$0xf]
                %230 = vst [vmem:[%s152 + $0x98] sm:$0xf] %v229
                %v231 = vld [vmem:[%s151 + $0x100] sm:$0xf]
                %232 = vst [vmem:[%s152 + $0x9c] sm:$0xf] %v231
                %v233 = vld [vmem:[%s151 + $0x104] sm:$0xf]
                %234 = vst [vmem:[%s152 + $0xa0] sm:$0xf] %v233
                %v235 = vld [vmem:[%s151 + $0x108] sm:$0xf]
                %236 = vst [vmem:[%s152 + $0xa4] sm:$0xf] %v235
                %v237 = vld [vmem:[%s151 + $0x10c] sm:$0xf]
                %238 = vst [vmem:[%s152 + $0xa8] sm:$0xf] %v237
                %v239 = vld [vmem:[%s151 + $0x110] sm:$0xf]
                %240 = vst [vmem:[%s152 + $0xac] sm:$0xf] %v239
                %v241 = vld [vmem:[%s151 + $0x114] sm:$0xf]
                %242 = vst [vmem:[%s152 + $0xb0] sm:$0xf] %v241
                %v243 = vld [vmem:[%s151 + $0x118] sm:$0xf]
                %244 = vst [vmem:[%s152 + $0xb4] sm:$0xf] %v243
                %v245 = vld [vmem:[%s151 + $0x11c] sm:$0xf]
                %246 = vst [vmem:[%s152 + $0xb8] sm:$0xf] %v245
                %v247 = vld [vmem:[%s151 + $0x120] sm:$0xf]
                %248 = vst [vmem:[%s152 + $0xbc] sm:$0xf] %v247
                %v249 = vld [vmem:[%s151 + $0x124] sm:$0xf]
                %250 = vst [vmem:[%s152 + $0xc0] sm:$0xf] %v249
                %v251 = vld [vmem:[%s151 + $0x128] sm:$0xf]
                %252 = vst [vmem:[%s152 + $0xc4] sm:$0xf] %v251
                %v253 = vld [vmem:[%s151 + $0x190] sm:$0xf]
                %254 = vst [vmem:[%s152 + $0xc8] sm:$0xf] %v253
                %v255 = vld [vmem:[%s151 + $0x194] sm:$0xf]
                %256 = vst [vmem:[%s152 + $0xcc] sm:$0xf] %v255
                %v257 = vld [vmem:[%s151 + $0x198] sm:$0xf]
                %258 = vst [vmem:[%s152 + $0xd0] sm:$0xf] %v257
                %v259 = vld [vmem:[%s151 + $0x19c] sm:$0xf]
                %260 = vst [vmem:[%s152 + $0xd4] sm:$0xf] %v259
                %v261 = vld [vmem:[%s151 + $0x1a0] sm:$0xf]
                %262 = vst [vmem:[%s152 + $0xd8] sm:$0xf] %v261
                %v263 = vld [vmem:[%s151 + $0x1a4] sm:$0xf]
                %264 = vst [vmem:[%s152 + $0xdc] sm:$0xf] %v263
                %v265 = vld [vmem:[%s151 + $0x1a8] sm:$0xf]
                %266 = vst [vmem:[%s152 + $0xe0] sm:$0xf] %v265
                %v267 = vld [vmem:[%s151 + $0x1ac] sm:$0xf]
                %268 = vst [vmem:[%s152 + $0xe4] sm:$0xf] %v267
                %v269 = vld [vmem:[%s151 + $0x1b0] sm:$0xf]
                %270 = vst [vmem:[%s152 + $0xe8] sm:$0xf] %v269
                %v271 = vld [vmem:[%s151 + $0x1b4] sm:$0xf]
                %272 = vst [vmem:[%s152 + $0xec] sm:$0xf] %v271
                %v273 = vld [vmem:[%s151 + $0x1b8] sm:$0xf]
                %274 = vst [vmem:[%s152 + $0xf0] sm:$0xf] %v273
                %v275 = vld [vmem:[%s151 + $0x1bc] sm:$0xf]
                %276 = vst [vmem:[%s152 + $0xf4] sm:$0xf] %v275
                %v277 = vld [vmem:[%s151 + $0x1c0] sm:$0xf]
                %278 = vst [vmem:[%s152 + $0xf8] sm:$0xf] %v277
                %v279 = vld [vmem:[%s151 + $0x1c4] sm:$0xf]
                %280 = vst [vmem:[%s152 + $0xfc] sm:$0xf] %v279
                %v281 = vld [vmem:[%s151 + $0x1c8] sm:$0xf]
                %282 = vst [vmem:[%s152 + $0x100] sm:$0xf] %v281
                %v283 = vld [vmem:[%s151 + $0x1cc] sm:$0xf]
                %284 = vst [vmem:[%s152 + $0x104] sm:$0xf] %v283
                %v285 = vld [vmem:[%s151 + $0x1d0] sm:$0xf]
                %286 = vst [vmem:[%s152 + $0x108] sm:$0xf] %v285
                %v287 = vld [vmem:[%s151 + $0x1d4] sm:$0xf]
                %288 = vst [vmem:[%s152 + $0x10c] sm:$0xf] %v287
                %v289 = vld [vmem:[%s151 + $0x1d8] sm:$0xf]
                %290 = vst [vmem:[%s152 + $0x110] sm:$0xf] %v289
                %v291 = vld [vmem:[%s151 + $0x1dc] sm:$0xf]
                %292 = vst [vmem:[%s152 + $0x114] sm:$0xf] %v291
                %v293 = vld [vmem:[%s151 + $0x1e0] sm:$0xf]
                %294 = vst [vmem:[%s152 + $0x118] sm:$0xf] %v293
                %v295 = vld [vmem:[%s151 + $0x1e4] sm:$0xf]
                %296 = vst [vmem:[%s152 + $0x11c] sm:$0xf] %v295
                %v297 = vld [vmem:[%s151 + $0x1e8] sm:$0xf]
                %298 = vst [vmem:[%s152 + $0x120] sm:$0xf] %v297
                %v299 = vld [vmem:[%s151 + $0x1ec] sm:$0xf]
                %300 = vst [vmem:[%s152 + $0x124] sm:$0xf] %v299
                %v301 = vld [vmem:[%s151 + $0x1f0] sm:$0xf]
                %302 = vst [vmem:[%s152 + $0x128] sm:$0xf] %v301
                %v303 = vld [vmem:[%s151 + $0x258] sm:$0xf]
                %304 = vst [vmem:[%s152 + $0x12c] sm:$0xf] %v303
                %v305 = vld [vmem:[%s151 + $0x25c] sm:$0xf]
                %306 = vst [vmem:[%s152 + $0x130] sm:$0xf] %v305
                %v307 = vld [vmem:[%s151 + $0x260] sm:$0xf]
                %308 = vst [vmem:[%s152 + $0x134] sm:$0xf] %v307
                %v309 = vld [vmem:[%s151 + $0x264] sm:$0xf]
                %310 = vst [vmem:[%s152 + $0x138] sm:$0xf] %v309
                %v311 = vld [vmem:[%s151 + $0x268] sm:$0xf]
                %312 = vst [vmem:[%s152 + $0x13c] sm:$0xf] %v311
                %v313 = vld [vmem:[%s151 + $0x26c] sm:$0xf]
                %314 = vst [vmem:[%s152 + $0x140] sm:$0xf] %v313
                %v315 = vld [vmem:[%s151 + $0x270] sm:$0xf]
                %316 = vst [vmem:[%s152 + $0x144] sm:$0xf] %v315
                %v317 = vld [vmem:[%s151 + $0x274] sm:$0xf]
                %318 = vst [vmem:[%s152 + $0x148] sm:$0xf] %v317
                %v319 = vld [vmem:[%s151 + $0x278] sm:$0xf]
                %320 = vst [vmem:[%s152 + $0x14c] sm:$0xf] %v319
                %v321 = vld [vmem:[%s151 + $0x27c] sm:$0xf]
                %322 = vst [vmem:[%s152 + $0x150] sm:$0xf] %v321
                %v323 = vld [vmem:[%s151 + $0x280] sm:$0xf]
                %324 = vst [vmem:[%s152 + $0x154] sm:$0xf] %v323
                %v325 = vld [vmem:[%s151 + $0x284] sm:$0xf]
                %326 = vst [vmem:[%s152 + $0x158] sm:$0xf] %v325
                %v327 = vld [vmem:[%s151 + $0x288] sm:$0xf]
                %328 = vst [vmem:[%s152 + $0x15c] sm:$0xf] %v327
                %v329 = vld [vmem:[%s151 + $0x28c] sm:$0xf]
                %330 = vst [vmem:[%s152 + $0x160] sm:$0xf] %v329
                %v331 = vld [vmem:[%s151 + $0x290] sm:$0xf]
                %332 = vst [vmem:[%s152 + $0x164] sm:$0xf] %v331
                %v333 = vld [vmem:[%s151 + $0x294] sm:$0xf]
                %334 = vst [vmem:[%s152 + $0x168] sm:$0xf] %v333
                %v335 = vld [vmem:[%s151 + $0x298] sm:$0xf]
                %336 = vst [vmem:[%s152 + $0x16c] sm:$0xf] %v335
                %v337 = vld [vmem:[%s151 + $0x29c] sm:$0xf]
                %338 = vst [vmem:[%s152 + $0x170] sm:$0xf] %v337
                %v339 = vld [vmem:[%s151 + $0x2a0] sm:$0xf]
                %340 = vst [vmem:[%s152 + $0x174] sm:$0xf] %v339
                %v341 = vld [vmem:[%s151 + $0x2a4] sm:$0xf]
                %342 = vst [vmem:[%s152 + $0x178] sm:$0xf] %v341
                %v343 = vld [vmem:[%s151 + $0x2a8] sm:$0xf]
                %344 = vst [vmem:[%s152 + $0x17c] sm:$0xf] %v343
                %v345 = vld [vmem:[%s151 + $0x2ac] sm:$0xf]
                %346 = vst [vmem:[%s152 + $0x180] sm:$0xf] %v345
                %v347 = vld [vmem:[%s151 + $0x2b0] sm:$0xf]
                %348 = vst [vmem:[%s152 + $0x184] sm:$0xf] %v347
                %v349 = vld [vmem:[%s151 + $0x2b4] sm:$0xf]
                %350 = vst [vmem:[%s152 + $0x188] sm:$0xf] %v349
                %v351 = vld [vmem:[%s151 + $0x2b8] sm:$0xf]
                %352 = vst [vmem:[%s152 + $0x18c] sm:$0xf] %v351
              $region45: #{net_forward.3} parent=39 // loop_footer
                %s150 = sadd.s32 1, %s146
              $region46: #{net_forward.3} parent=39 // loop_footer_branch
                %145 = sbr.rel target = $region42
              $region47: #{net_forward.3} parent=39 // loop_exit
                _
            $region40: #{net_forward.3} parent=31 // pred_fallthru
              _
          $region32: #{net_forward.3} parent=27 // pred_fallthru
            _
          %572 = vnop
        $region28: #{net_forward.3} parent=23 // pred_fallthru
          _
      $region24: #{net_forward.3} parent=5 // pred_fallthru
        _
      %p573 = scmp.le.s32.totalorder 1, %s9
      %p574 = scmp.lt.s32.totalorder %s9, 3
      %p575 = pnand %p573, %p574
      %p576 = pneg %p575
      // Predicated region
      $region66: #{net_forward.3} parent=5 // pred_check
        _
      $region67: #{net_forward.3} parent=5 // pred_check_branch
        %578 = sbr.rel (%p575) target = $region69
      $region68: #{net_forward.3} parent=5 // pred_region
        %s579 = ssub.s32 %s9, 1
        %s580 = sand.u32 %s22, 1
        %s581 = sand.u32 %s22, 1
        %s582 = smul.addr %s581, 400
        %s583 = scalar_lea.vmem [#allocation2], %s582
        // Predicated region
        $region70: #{net_forward.3} parent=68 // pred_check
          %p584 = pneg %p35
        $region71: #{net_forward.3} parent=68 // pred_check_branch
          %586 = sbr.rel (%p584) target = $region73
        $region72: #{net_forward.3} parent=68 // pred_region
          _
        $region73: #{net_forward.3} parent=68 // pred_fallthru
          _
        %s587 = sand.u32 %s22, 1
        %s588 = sand.u32 %s22, 1
        %s589 = smul.addr %s588, 400
        %s590 = scalar_lea.vmem [#allocation2], %s589
        %p591 = pneg %p35
        %p592 = pneg %p32
        %p593 = pneg %p56
        %p594 = pneg %p53
        %p595 = pneg %p77
        %p596 = pneg %p74
        %p597 = pneg %p103
        %p598 = pneg %p100
        %s599 = smul.u32 25, %s14
        %p600 = scmp.lt.s32.totalorder %s599, 49
        %s601 = scalar_select %p600, %s599, 49
        %s602 = smul.addr %s601, 4
        %s603 = scalar_lea.vmem %s3, %s602
        %s604 = smul.u32 25, %s14
        %s605 = smul.u32 25, %s14
        %p606 = scmp.lt.s32.totalorder %s605, 49
        %s607 = scalar_select %p606, %s605, 49
        %s608 = smul.addr %s607, 4
        %s609 = scalar_lea.vmem %s3, %s608
        %s610 = smul.u32 25, %s14
        %v612 = vld [vmem:[%s583] sm:$0xf]
        %v613 = vld [vmem:[%s583 + $0x4] sm:$0xf]
        %v614 = vld [vmem:[%s583 + $0x8] sm:$0xf]
        %v615 = vld [vmem:[%s583 + $0xc] sm:$0xf]
        %v616 = vld [vmem:[%s583 + $0x10] sm:$0xf]
        %v617 = vld [vmem:[%s583 + $0x14] sm:$0xf]
        %v618 = vld [vmem:[%s583 + $0x18] sm:$0xf]
        %v619 = vld [vmem:[%s583 + $0x1c] sm:$0xf]
        %v620 = vld [vmem:[%s583 + $0x20] sm:$0xf]
        %v621 = vld [vmem:[%s583 + $0x24] sm:$0xf]
        %v622 = vld [vmem:[%s583 + $0x28] sm:$0xf]
        %v623 = vld [vmem:[%s583 + $0x2c] sm:$0xf]
        %v624 = vld [vmem:[%s583 + $0x30] sm:$0xf]
        %v625 = vld [vmem:[%s583 + $0x34] sm:$0xf]
        %v626 = vld [vmem:[%s583 + $0x38] sm:$0xf]
        %v627 = vld [vmem:[%s583 + $0x3c] sm:$0xf]
        %v628 = vld [vmem:[%s583 + $0x40] sm:$0xf]
        %v629 = vld [vmem:[%s583 + $0x44] sm:$0xf]
        %v630 = vld [vmem:[%s583 + $0x48] sm:$0xf]
        %v631 = vld [vmem:[%s583 + $0x4c] sm:$0xf]
        %v632 = vld [vmem:[%s583 + $0x50] sm:$0xf]
        %v633 = vld [vmem:[%s583 + $0x54] sm:$0xf]
        %v634 = vld [vmem:[%s583 + $0x58] sm:$0xf]
        %v635 = vld [vmem:[%s583 + $0x5c] sm:$0xf]
        %v636 = vld [vmem:[%s583 + $0x60] sm:$0xf]
        %v637 = vld [vmem:[%s583 + $0x64] sm:$0xf]
        %v638 = vld [vmem:[%s583 + $0x68] sm:$0xf]
        %v639 = vld [vmem:[%s583 + $0x6c] sm:$0xf]
        %v640 = vld [vmem:[%s583 + $0x70] sm:$0xf]
        %v641 = vld [vmem:[%s583 + $0x74] sm:$0xf]
        %v642 = vld [vmem:[%s583 + $0x78] sm:$0xf]
        %v643 = vld [vmem:[%s583 + $0x7c] sm:$0xf]
        %v644 = vld [vmem:[%s583 + $0x80] sm:$0xf]
        %v645 = vld [vmem:[%s583 + $0x84] sm:$0xf]
        %v646 = vld [vmem:[%s583 + $0x88] sm:$0xf]
        %v647 = vld [vmem:[%s583 + $0x8c] sm:$0xf]
        %v648 = vld [vmem:[%s583 + $0x90] sm:$0xf]
        %v649 = vld [vmem:[%s583 + $0x94] sm:$0xf]
        %v650 = vld [vmem:[%s583 + $0x98] sm:$0xf]
        %v651 = vld [vmem:[%s583 + $0x9c] sm:$0xf]
        %v652 = vld [vmem:[%s583 + $0xa0] sm:$0xf]
        %v653 = vld [vmem:[%s583 + $0xa4] sm:$0xf]
        %v654 = vld [vmem:[%s583 + $0xa8] sm:$0xf]
        %v655 = vld [vmem:[%s583 + $0xac] sm:$0xf]
        %v656 = vld [vmem:[%s583 + $0xb0] sm:$0xf]
        %v657 = vld [vmem:[%s583 + $0xb4] sm:$0xf]
        %v658 = vld [vmem:[%s583 + $0xb8] sm:$0xf]
        %v659 = vld [vmem:[%s583 + $0xbc] sm:$0xf]
        %v660 = vld [vmem:[%s583 + $0xc0] sm:$0xf]
        %v661 = vld [vmem:[%s583 + $0xc4] sm:$0xf]
        %v662 = vld [vmem:[%s583 + $0xc8] sm:$0xf]
        %v663 = vld [vmem:[%s583 + $0xcc] sm:$0xf]
        %v664 = vld [vmem:[%s583 + $0xd0] sm:$0xf]
        %v665 = vld [vmem:[%s583 + $0xd4] sm:$0xf]
        %v666 = vld [vmem:[%s583 + $0xd8] sm:$0xf]
        %v667 = vld [vmem:[%s583 + $0xdc] sm:$0xf]
        %v668 = vld [vmem:[%s583 + $0xe0] sm:$0xf]
        %v669 = vld [vmem:[%s583 + $0xe4] sm:$0xf]
        %v670 = vld [vmem:[%s583 + $0xe8] sm:$0xf]
        %v671 = vld [vmem:[%s583 + $0xec] sm:$0xf]
        %v672 = vld [vmem:[%s583 + $0xf0] sm:$0xf]
        %v673 = vld [vmem:[%s583 + $0xf4] sm:$0xf]
        %v674 = vld [vmem:[%s583 + $0xf8] sm:$0xf]
        %v675 = vld [vmem:[%s583 + $0xfc] sm:$0xf]
        %v676 = vld [vmem:[%s583 + $0x100] sm:$0xf]
        %v677 = vld [vmem:[%s583 + $0x104] sm:$0xf]
        %v678 = vld [vmem:[%s583 + $0x108] sm:$0xf]
        %v679 = vld [vmem:[%s583 + $0x10c] sm:$0xf]
        %v680 = vld [vmem:[%s583 + $0x110] sm:$0xf]
        %v681 = vld [vmem:[%s583 + $0x114] sm:$0xf]
        %v682 = vld [vmem:[%s583 + $0x118] sm:$0xf]
        %v683 = vld [vmem:[%s583 + $0x11c] sm:$0xf]
        %v684 = vld [vmem:[%s583 + $0x120] sm:$0xf]
        %v685 = vld [vmem:[%s583 + $0x124] sm:$0xf]
        %v686 = vld [vmem:[%s583 + $0x128] sm:$0xf]
        %v687 = vld [vmem:[%s583 + $0x12c] sm:$0xf]
        %v688 = vld [vmem:[%s583 + $0x130] sm:$0xf]
        %v689 = vld [vmem:[%s583 + $0x134] sm:$0xf]
        %v690 = vld [vmem:[%s583 + $0x138] sm:$0xf]
        %v691 = vld [vmem:[%s583 + $0x13c] sm:$0xf]
        %v692 = vld [vmem:[%s583 + $0x140] sm:$0xf]
        %v693 = vld [vmem:[%s583 + $0x144] sm:$0xf]
        %v694 = vld [vmem:[%s583 + $0x148] sm:$0xf]
        %v695 = vld [vmem:[%s583 + $0x14c] sm:$0xf]
        %v696 = vld [vmem:[%s583 + $0x150] sm:$0xf]
        %v697 = vld [vmem:[%s583 + $0x154] sm:$0xf]
        %v698 = vld [vmem:[%s583 + $0x158] sm:$0xf]
        %v699 = vld [vmem:[%s583 + $0x15c] sm:$0xf]
        %v700 = vld [vmem:[%s583 + $0x160] sm:$0xf]
        %v701 = vld [vmem:[%s583 + $0x164] sm:$0xf]
        %v702 = vld [vmem:[%s583 + $0x168] sm:$0xf]
        %v703 = vld [vmem:[%s583 + $0x16c] sm:$0xf]
        %v704 = vld [vmem:[%s583 + $0x170] sm:$0xf]
        %v705 = vld [vmem:[%s583 + $0x174] sm:$0xf]
        %v706 = vld [vmem:[%s583 + $0x178] sm:$0xf]
        %v707 = vld [vmem:[%s583 + $0x17c] sm:$0xf]
        %v708 = vld [vmem:[%s583 + $0x180] sm:$0xf]
        %v709 = vld [vmem:[%s583 + $0x184] sm:$0xf]
        %v710 = vld [vmem:[%s583 + $0x188] sm:$0xf]
        %v711 = vld [vmem:[%s583 + $0x18c] sm:$0xf]
        %v712 = vld [vmem:[%s1] sm:$0xf]
        %v713 = vld [vmem:[%s1 + $0x4] sm:$0xf]
        %v714 = vld [vmem:[%s1 + $0x8] sm:$0xf]
        %v715 = vld [vmem:[%s1 + $0xc] sm:$0xf]
        %v716 = vld [vmem:[%s1 + $0x10] sm:$0xf]
        %v717 = vld [vmem:[%s1 + $0x14] sm:$0xf]
        %v718 = vld [vmem:[%s1 + $0x18] sm:$0xf]
        %v719 = vld [vmem:[%s1 + $0x1c] sm:$0xf]
        %v720 = vld [vmem:[%s1 + $0x20] sm:$0xf]
        %v721 = vld [vmem:[%s1 + $0x24] sm:$0xf]
        %v722 = vld [vmem:[%s1 + $0x28] sm:$0xf]
        %v723 = vld [vmem:[%s1 + $0x2c] sm:$0xf]
        %v724 = vld [vmem:[%s1 + $0x30] sm:$0xf]
        %v725 = vld [vmem:[%s1 + $0x34] sm:$0xf]
        %v726 = vld [vmem:[%s1 + $0x38] sm:$0xf]
        %v727 = vld [vmem:[%s1 + $0x3c] sm:$0xf]
        %v828 = vunpack.c.l.b16 %v612
        %v829 = vunpack.c.l.b16 %v613
        %v830 = vunpack.c.l.b16 %v614
        %v831 = vunpack.c.l.b16 %v615
        %v832 = vunpack.c.l.b16 %v616
        %v833 = vunpack.c.l.b16 %v617
        %v834 = vunpack.c.l.b16 %v618
        %v835 = vunpack.c.l.b16 %v619
        %v836 = vunpack.c.l.b16 %v620
        %v837 = vunpack.c.l.b16 %v621
        %v838 = vunpack.c.l.b16 %v622
        %v839 = vunpack.c.l.b16 %v623
        %v840 = vunpack.c.l.b16 %v624
        %v841 = vunpack.c.l.b16 %v625
        %v842 = vunpack.c.l.b16 %v626
        %v843 = vunpack.c.l.b16 %v627
        %v844 = vunpack.c.l.b16 %v628
        %v845 = vunpack.c.l.b16 %v629
        %v846 = vunpack.c.l.b16 %v630
        %v847 = vunpack.c.l.b16 %v631
        %v848 = vunpack.c.l.b16 %v632
        %v849 = vunpack.c.l.b16 %v633
        %v850 = vunpack.c.l.b16 %v634
        %v851 = vunpack.c.l.b16 %v635
        %v852 = vunpack.c.l.b16 %v636
        %v853 = vunpack.c.l.b16 %v637
        %v854 = vunpack.c.l.b16 %v638
        %v855 = vunpack.c.l.b16 %v639
        %v856 = vunpack.c.l.b16 %v640
        %v857 = vunpack.c.l.b16 %v641
        %v858 = vunpack.c.l.b16 %v642
        %v859 = vunpack.c.l.b16 %v643
        %v860 = vunpack.c.l.b16 %v644
        %v861 = vunpack.c.l.b16 %v645
        %v862 = vunpack.c.l.b16 %v646
        %v863 = vunpack.c.l.b16 %v647
        %v864 = vunpack.c.l.b16 %v648
        %v865 = vunpack.c.l.b16 %v649
        %v866 = vunpack.c.l.b16 %v650
        %v867 = vunpack.c.l.b16 %v651
        %v868 = vunpack.c.l.b16 %v652
        %v869 = vunpack.c.l.b16 %v653
        %v870 = vunpack.c.l.b16 %v654
        %v871 = vunpack.c.l.b16 %v655
        %v872 = vunpack.c.l.b16 %v656
        %v873 = vunpack.c.l.b16 %v657
        %v874 = vunpack.c.l.b16 %v658
        %v875 = vunpack.c.l.b16 %v659
        %v876 = vunpack.c.l.b16 %v660
        %v877 = vunpack.c.l.b16 %v661
        %v878 = vunpack.c.l.b16 %v662
        %v879 = vunpack.c.l.b16 %v663
        %v880 = vunpack.c.l.b16 %v664
        %v881 = vunpack.c.l.b16 %v665
        %v882 = vunpack.c.l.b16 %v666
        %v883 = vunpack.c.l.b16 %v667
        %v884 = vunpack.c.l.b16 %v668
        %v885 = vunpack.c.l.b16 %v669
        %v886 = vunpack.c.l.b16 %v670
        %v887 = vunpack.c.l.b16 %v671
        %v888 = vunpack.c.l.b16 %v672
        %v889 = vunpack.c.l.b16 %v673
        %v890 = vunpack.c.l.b16 %v674
        %v891 = vunpack.c.l.b16 %v675
        %v892 = vunpack.c.l.b16 %v676
        %v893 = vunpack.c.l.b16 %v677
        %v894 = vunpack.c.l.b16 %v678
        %v895 = vunpack.c.l.b16 %v679
        %v896 = vunpack.c.l.b16 %v680
        %v897 = vunpack.c.l.b16 %v681
        %v898 = vunpack.c.l.b16 %v682
        %v899 = vunpack.c.l.b16 %v683
        %v900 = vunpack.c.l.b16 %v684
        %v901 = vunpack.c.l.b16 %v685
        %v902 = vunpack.c.l.b16 %v686
        %v903 = vunpack.c.l.b16 %v687
        %v904 = vunpack.c.l.b16 %v688
        %v905 = vunpack.c.l.b16 %v689
        %v906 = vunpack.c.l.b16 %v690
        %v907 = vunpack.c.l.b16 %v691
        %v908 = vunpack.c.l.b16 %v692
        %v909 = vunpack.c.l.b16 %v693
        %v910 = vunpack.c.l.b16 %v694
        %v911 = vunpack.c.l.b16 %v695
        %v912 = vunpack.c.l.b16 %v696
        %v913 = vunpack.c.l.b16 %v697
        %v914 = vunpack.c.l.b16 %v698
        %v915 = vunpack.c.l.b16 %v699
        %v916 = vunpack.c.l.b16 %v700
        %v917 = vunpack.c.l.b16 %v701
        %v918 = vunpack.c.l.b16 %v702
        %v919 = vunpack.c.l.b16 %v703
        %v920 = vunpack.c.l.b16 %v704
        %v921 = vunpack.c.l.b16 %v705
        %v922 = vunpack.c.l.b16 %v706
        %v923 = vunpack.c.l.b16 %v707
        %v924 = vunpack.c.l.b16 %v708
        %v925 = vunpack.c.l.b16 %v709
        %v926 = vunpack.c.l.b16 %v710
        %v927 = vunpack.c.l.b16 %v711
        %v928 = vpack.c.b16 %v829, %v828
        %v929 = vpack.c.b16 %v831, %v830
        %v930 = vpack.c.b16 %v833, %v832
        %v931 = vpack.c.b16 %v835, %v834
        %v932 = vpack.c.b16 %v837, %v836
        %v933 = vpack.c.b16 %v839, %v838
        %v934 = vpack.c.b16 %v841, %v840
        %v935 = vpack.c.b16 %v843, %v842
        %v936 = vpack.c.b16 %v845, %v844
        %v937 = vpack.c.b16 %v847, %v846
        %v938 = vpack.c.b16 %v849, %v848
        %v939 = vpack.c.b16 %v851, %v850
        %v940 = vpack.c.b16 %v853, %v852
        %v941 = vpack.c.b16 %v855, %v854
        %v942 = vpack.c.b16 %v857, %v856
        %v943 = vpack.c.b16 %v859, %v858
        %v944 = vpack.c.b16 %v861, %v860
        %v945 = vpack.c.b16 %v863, %v862
        %v946 = vpack.c.b16 %v865, %v864
        %v947 = vpack.c.b16 %v867, %v866
        %v948 = vpack.c.b16 %v869, %v868
        %v949 = vpack.c.b16 %v871, %v870
        %v950 = vpack.c.b16 %v873, %v872
        %v951 = vpack.c.b16 %v875, %v874
        %v952 = vpack.c.b16 %v877, %v876
        %v953 = vpack.c.b16 %v879, %v878
        %v954 = vpack.c.b16 %v881, %v880
        %v955 = vpack.c.b16 %v883, %v882
        %v956 = vpack.c.b16 %v885, %v884
        %v957 = vpack.c.b16 %v887, %v886
        %v958 = vpack.c.b16 %v889, %v888
        %v959 = vpack.c.b16 %v891, %v890
        %v960 = vpack.c.b16 %v893, %v892
        %v961 = vpack.c.b16 %v895, %v894
        %v962 = vpack.c.b16 %v897, %v896
        %v963 = vpack.c.b16 %v899, %v898
        %v964 = vpack.c.b16 %v901, %v900
        %v965 = vpack.c.b16 %v903, %v902
        %v966 = vpack.c.b16 %v905, %v904
        %v967 = vpack.c.b16 %v907, %v906
        %v968 = vpack.c.b16 %v909, %v908
        %v969 = vpack.c.b16 %v911, %v910
        %v970 = vpack.c.b16 %v913, %v912
        %v971 = vpack.c.b16 %v915, %v914
        %v972 = vpack.c.b16 %v917, %v916
        %v973 = vpack.c.b16 %v919, %v918
        %v974 = vpack.c.b16 %v921, %v920
        %v975 = vpack.c.b16 %v923, %v922
        %v976 = vpack.c.b16 %v925, %v924
        %v977 = vpack.c.b16 %v927, %v926
        %v1044 = vunpack.c.l.b16 %v712
        %v1045 = vunpack.c.l.b16 %v713
        %v1046 = vunpack.c.l.b16 %v714
        %v1047 = vunpack.c.l.b16 %v715
        %v1048 = vunpack.c.l.b16 %v716
        %v1049 = vunpack.c.l.b16 %v717
        %v1050 = vunpack.c.l.b16 %v718
        %v1051 = vunpack.c.l.b16 %v719
        %v1052 = vunpack.c.l.b16 %v720
        %v1053 = vunpack.c.l.b16 %v721
        %v1054 = vunpack.c.l.b16 %v722
        %v1055 = vunpack.c.l.b16 %v723
        %v1056 = vunpack.c.l.b16 %v724
        %v1057 = vunpack.c.l.b16 %v725
        %v1058 = vunpack.c.l.b16 %v726
        %v1059 = vunpack.c.l.b16 %v727
        %v1060 = vpack.c.b16 %v1045, %v1044
        %v1061 = vpack.c.b16 %v1047, %v1046
        %v1062 = vpack.c.b16 %v1049, %v1048
        %v1063 = vpack.c.b16 %v1051, %v1050
        %v1064 = vpack.c.b16 %v1053, %v1052
        %v1065 = vpack.c.b16 %v1055, %v1054
        %v1066 = vpack.c.b16 %v1057, %v1056
        %v1067 = vpack.c.b16 %v1059, %v1058
        %1076 = vmatprep.subr.bf16.mxu0 0
        %1077 = vmatpush1.bf16.msra.mxu0 %v1060
        %1078 = vmatprep.subr.bf16.mxu0 0
        %1079 = vmatpush1.bf16.msra.mxu0 %v1061
        %1080 = vmatprep.subr.bf16.mxu0 0
        %1081 = vmatpush1.bf16.msra.mxu0 %v1062
        %1082 = vmatprep.subr.bf16.mxu0 0
        %1083 = vmatpush1.bf16.msra.mxu0 %v1063
        %1084 = vmatprep.subr.bf16.mxu0 0
        %1085 = vmatpush1.bf16.msra.mxu0 %v1064
        %1086 = vmatprep.subr.bf16.mxu0 0
        %1087 = vmatpush1.bf16.msra.mxu0 %v1065
        %1088 = vmatprep.subr.bf16.mxu0 0
        %1089 = vmatpush1.bf16.msra.mxu0 %v1066
        %1090 = vmatprep.subr.bf16.mxu0 0
        %1091 = vmatpush1.bf16.msra.mxu0 %v1067
        %1092 = vmatprep.subr.bf16.mxu0 0
        %1093 = vmatpush1.bf16.msra.mxu0 0
        %1094 = vmatprep.subr.bf16.mxu0 0
        %1095 = vmatpush1.bf16.msra.mxu0 0
        %1096 = vmatprep.subr.bf16.mxu0 0
        %1097 = vmatpush1.bf16.msra.mxu0 0
        %1098 = vmatprep.subr.bf16.mxu0 0
        %1099 = vmatpush1.bf16.msra.mxu0 0
        %1100 = vmatprep.subr.bf16.mxu0 0
        %1101 = vmatpush1.bf16.msra.mxu0 0
        %1102 = vmatprep.subr.bf16.mxu0 0
        %1103 = vmatpush1.bf16.msra.mxu0 0
        %1104 = vmatprep.subr.bf16.mxu0 0
        %1105 = vmatpush1.bf16.msra.mxu0 0
        %1106 = vmatprep.subr.bf16.mxu0 0
        %1107 = vmatpush1.bf16.msra.mxu0 0
        %1108 = vmatprep.mubr.bf16.mxu0 0
        %1109 = vmatmul.mubr.bf16.gmra.mrb[0].mxu0 %v928
        %v1110 = vpop.f32.mrb[0].mxu0
        %v1111 = vadd.f32 0.0, %v1110
        %v1112 = vpop.f32.mrb[0].mxu0
        %v1113 = vpop.f32.mrb[0].mxu0
        %v1114 = vadd.f32 0.0, %v1113
        %v1115 = vpop.f32.mrb[0].mxu0
        %1116 = vmatprep.mubr.bf16.mxu0 0
        %1117 = vmatmul.mubr.bf16.gmra.mrb[0].mxu0 %v929
        %v1118 = vpop.f32.mrb[0].mxu0
        %v1119 = vadd.f32 0.0, %v1118
        %v1120 = vpop.f32.mrb[0].mxu0
        %v1121 = vpop.f32.mrb[0].mxu0
        %v1122 = vadd.f32 0.0, %v1121
        %v1123 = vpop.f32.mrb[0].mxu0
        %1124 = vmatprep.mubr.bf16.mxu0 0
        %1125 = vmatmul.mubr.bf16.gmra.mrb[0].mxu0 %v930
        %v1126 = vpop.f32.mrb[0].mxu0
        %v1127 = vadd.f32 0.0, %v1126
        %v1128 = vpop.f32.mrb[0].mxu0
        %v1129 = vpop.f32.mrb[0].mxu0
        %v1130 = vadd.f32 0.0, %v1129
        %v1131 = vpop.f32.mrb[0].mxu0
        %1132 = vmatprep.mubr.bf16.mxu0 0
        %1133 = vmatmul.mubr.bf16.gmra.mrb[0].mxu0 %v931
        %v1134 = vpop.f32.mrb[0].mxu0
        %v1135 = vadd.f32 0.0, %v1134
        %v1136 = vpop.f32.mrb[0].mxu0
        %v1137 = vpop.f32.mrb[0].mxu0
        %v1138 = vadd.f32 0.0, %v1137
        %v1139 = vpop.f32.mrb[0].mxu0
        %1140 = vmatprep.mubr.bf16.mxu0 0
        %1141 = vmatmul.mubr.bf16.gmra.mrb[0].mxu0 %v932
        %v1142 = vpop.f32.mrb[0].mxu0
        %v1143 = vadd.f32 0.0, %v1142
        %v1144 = vpop.f32.mrb[0].mxu0
        %v1145 = vpop.f32.mrb[0].mxu0
        %v1146 = vadd.f32 0.0, %v1145
        %v1147 = vpop.f32.mrb[0].mxu0
        %1148 = vmatprep.mubr.bf16.mxu0 0
        %1149 = vmatmul.mubr.bf16.gmra.mrb[0].mxu0 %v933
        %v1150 = vpop.f32.mrb[0].mxu0
        %v1151 = vadd.f32 0.0, %v1150
        %v1152 = vpop.f32.mrb[0].mxu0
        %v1153 = vpop.f32.mrb[0].mxu0
        %v1154 = vadd.f32 0.0, %v1153
        %v1155 = vpop.f32.mrb[0].mxu0
        %1156 = vmatprep.mubr.bf16.mxu0 0
        %1157 = vmatmul.mubr.bf16.gmra.mrb[0].mxu0 %v934
        %v1158 = vpop.f32.mrb[0].mxu0
        %v1159 = vadd.f32 0.0, %v1158
        %v1160 = vpop.f32.mrb[0].mxu0
        %v1161 = vpop.f32.mrb[0].mxu0
        %v1162 = vadd.f32 0.0, %v1161
        %v1163 = vpop.f32.mrb[0].mxu0
        %1164 = vmatprep.mubr.bf16.mxu0 0
        %1165 = vmatmul.mubr.bf16.gmra.mrb[0].mxu0 %v935
        %v1166 = vpop.f32.mrb[0].mxu0
        %v1167 = vadd.f32 0.0, %v1166
        %v1168 = vpop.f32.mrb[0].mxu0
        %v1169 = vpop.f32.mrb[0].mxu0
        %v1170 = vadd.f32 0.0, %v1169
        %v1171 = vpop.f32.mrb[0].mxu0
        %1172 = vmatprep.mubr.bf16.mxu0 0
        %1173 = vmatmul.mubr.bf16.gmra.mrb[0].mxu0 %v936
        %v1174 = vpop.f32.mrb[0].mxu0
        %v1175 = vadd.f32 0.0, %v1174
        %v1176 = vpop.f32.mrb[0].mxu0
        %v1177 = vpop.f32.mrb[0].mxu0
        %v1178 = vadd.f32 0.0, %v1177
        %v1179 = vpop.f32.mrb[0].mxu0
        %1180 = vmatprep.mubr.bf16.mxu0 0
        %1181 = vmatmul.mubr.bf16.gmra.mrb[0].mxu0 %v937
        %v1182 = vpop.f32.mrb[0].mxu0
        %v1183 = vadd.f32 0.0, %v1182
        %v1184 = vpop.f32.mrb[0].mxu0
        %v1185 = vpop.f32.mrb[0].mxu0
        %v1186 = vadd.f32 0.0, %v1185
        %v1187 = vpop.f32.mrb[0].mxu0
        %1188 = vmatprep.mubr.bf16.mxu0 0
        %1189 = vmatmul.mubr.bf16.gmra.mrb[0].mxu0 %v938
        %v1190 = vpop.f32.mrb[0].mxu0
        %v1191 = vadd.f32 0.0, %v1190
        %v1192 = vpop.f32.mrb[0].mxu0
        %v1193 = vpop.f32.mrb[0].mxu0
        %v1194 = vadd.f32 0.0, %v1193
        %v1195 = vpop.f32.mrb[0].mxu0
        %1196 = vmatprep.mubr.bf16.mxu0 0
        %1197 = vmatmul.mubr.bf16.gmra.mrb[0].mxu0 %v939
        %v1198 = vpop.f32.mrb[0].mxu0
        %v1199 = vadd.f32 0.0, %v1198
        %v1200 = vpop.f32.mrb[0].mxu0
        %v1201 = vpop.f32.mrb[0].mxu0
        %v1202 = vadd.f32 0.0, %v1201
        %v1203 = vpop.f32.mrb[0].mxu0
        %1204 = vmatprep.mubr.bf16.mxu0 0
        %1205 = vmatmul.mubr.bf16.gmra.mrb[0].mxu0 %v940
        %v1206 = vpop.f32.mrb[0].mxu0
        %v1207 = vadd.f32 0.0, %v1206
        %v1208 = vpop.f32.mrb[0].mxu0
        %v1209 = vpop.f32.mrb[0].mxu0
        %v1210 = vadd.f32 0.0, %v1209
        %v1211 = vpop.f32.mrb[0].mxu0
        %1212 = vmatprep.mubr.bf16.mxu0 0
        %1213 = vmatmul.mubr.bf16.gmra.mrb[0].mxu0 %v941
        %v1214 = vpop.f32.mrb[0].mxu0
        %v1215 = vadd.f32 0.0, %v1214
        %v1216 = vpop.f32.mrb[0].mxu0
        %v1217 = vpop.f32.mrb[0].mxu0
        %v1218 = vadd.f32 0.0, %v1217
        %v1219 = vpop.f32.mrb[0].mxu0
        %1220 = vmatprep.mubr.bf16.mxu0 0
        %1221 = vmatmul.mubr.bf16.gmra.mrb[0].mxu0 %v942
        %v1222 = vpop.f32.mrb[0].mxu0
        %v1223 = vadd.f32 0.0, %v1222
        %v1224 = vpop.f32.mrb[0].mxu0
        %v1225 = vpop.f32.mrb[0].mxu0
        %v1226 = vadd.f32 0.0, %v1225
        %v1227 = vpop.f32.mrb[0].mxu0
        %1228 = vmatprep.mubr.bf16.mxu0 0
        %1229 = vmatmul.mubr.bf16.gmra.mrb[0].mxu0 %v943
        %v1230 = vpop.f32.mrb[0].mxu0
        %v1231 = vadd.f32 0.0, %v1230
        %v1232 = vpop.f32.mrb[0].mxu0
        %v1233 = vpop.f32.mrb[0].mxu0
        %v1234 = vadd.f32 0.0, %v1233
        %v1235 = vpop.f32.mrb[0].mxu0
        %1236 = vmatprep.mubr.bf16.mxu0 0
        %1237 = vmatmul.mubr.bf16.gmra.mrb[0].mxu0 %v944
        %v1238 = vpop.f32.mrb[0].mxu0
        %v1239 = vadd.f32 0.0, %v1238
        %v1240 = vpop.f32.mrb[0].mxu0
        %v1241 = vpop.f32.mrb[0].mxu0
        %v1242 = vadd.f32 0.0, %v1241
        %v1243 = vpop.f32.mrb[0].mxu0
        %1244 = vmatprep.mubr.bf16.mxu0 0
        %1245 = vmatmul.mubr.bf16.gmra.mrb[0].mxu0 %v945
        %v1246 = vpop.f32.mrb[0].mxu0
        %v1247 = vadd.f32 0.0, %v1246
        %v1248 = vpop.f32.mrb[0].mxu0
        %v1249 = vpop.f32.mrb[0].mxu0
        %v1250 = vadd.f32 0.0, %v1249
        %v1251 = vpop.f32.mrb[0].mxu0
        %1252 = vmatprep.mubr.bf16.mxu0 0
        %1253 = vmatmul.mubr.bf16.gmra.mrb[0].mxu0 %v946
        %v1254 = vpop.f32.mrb[0].mxu0
        %v1255 = vadd.f32 0.0, %v1254
        %v1256 = vpop.f32.mrb[0].mxu0
        %v1257 = vpop.f32.mrb[0].mxu0
        %v1258 = vadd.f32 0.0, %v1257
        %v1259 = vpop.f32.mrb[0].mxu0
        %1260 = vmatprep.mubr.bf16.mxu0 0
        %1261 = vmatmul.mubr.bf16.gmra.mrb[0].mxu0 %v947
        %v1262 = vpop.f32.mrb[0].mxu0
        %v1263 = vadd.f32 0.0, %v1262
        %v1264 = vpop.f32.mrb[0].mxu0
        %v1265 = vpop.f32.mrb[0].mxu0
        %v1266 = vadd.f32 0.0, %v1265
        %v1267 = vpop.f32.mrb[0].mxu0
        %1268 = vmatprep.mubr.bf16.mxu0 0
        %1269 = vmatmul.mubr.bf16.gmra.mrb[0].mxu0 %v948
        %v1270 = vpop.f32.mrb[0].mxu0
        %v1271 = vadd.f32 0.0, %v1270
        %v1272 = vpop.f32.mrb[0].mxu0
        %v1273 = vpop.f32.mrb[0].mxu0
        %v1274 = vadd.f32 0.0, %v1273
        %v1275 = vpop.f32.mrb[0].mxu0
        %1276 = vmatprep.mubr.bf16.mxu0 0
        %1277 = vmatmul.mubr.bf16.gmra.mrb[0].mxu0 %v949
        %v1278 = vpop.f32.mrb[0].mxu0
        %v1279 = vadd.f32 0.0, %v1278
        %v1280 = vpop.f32.mrb[0].mxu0
        %v1281 = vpop.f32.mrb[0].mxu0
        %v1282 = vadd.f32 0.0, %v1281
        %v1283 = vpop.f32.mrb[0].mxu0
        %1284 = vmatprep.mubr.bf16.mxu0 0
        %1285 = vmatmul.mubr.bf16.gmra.mrb[0].mxu0 %v950
        %v1286 = vpop.f32.mrb[0].mxu0
        %v1287 = vadd.f32 0.0, %v1286
        %v1288 = vpop.f32.mrb[0].mxu0
        %v1289 = vpop.f32.mrb[0].mxu0
        %v1290 = vadd.f32 0.0, %v1289
        %v1291 = vpop.f32.mrb[0].mxu0
        %1292 = vmatprep.mubr.bf16.mxu0 0
        %1293 = vmatmul.mubr.bf16.gmra.mrb[0].mxu0 %v951
        %v1294 = vpop.f32.mrb[0].mxu0
        %v1295 = vadd.f32 0.0, %v1294
        %v1296 = vpop.f32.mrb[0].mxu0
        %v1297 = vpop.f32.mrb[0].mxu0
        %v1298 = vadd.f32 0.0, %v1297
        %v1299 = vpop.f32.mrb[0].mxu0
        %1300 = vmatprep.mubr.bf16.mxu0 0
        %1301 = vmatmul.mubr.bf16.gmra.mrb[0].mxu0 %v952
        %v1302 = vpop.f32.mrb[0].mxu0
        %v1303 = vadd.f32 0.0, %v1302
        %v1304 = vpop.f32.mrb[0].mxu0
        %v1305 = vpop.f32.mrb[0].mxu0
        %v1306 = vadd.f32 0.0, %v1305
        %v1307 = vpop.f32.mrb[0].mxu0
        %1308 = vmatprep.mubr.bf16.mxu0 0
        %1309 = vmatmul.mubr.bf16.gmra.mrb[0].mxu0 %v953
        %v1310 = vpop.f32.mrb[0].mxu0
        %v1311 = vadd.f32 0.0, %v1310
        %v1312 = vpop.f32.mrb[0].mxu0
        %v1313 = vpop.f32.mrb[0].mxu0
        %v1314 = vadd.f32 0.0, %v1313
        %v1315 = vpop.f32.mrb[0].mxu0
        %1316 = vmatprep.mubr.bf16.mxu0 0
        %1317 = vmatmul.mubr.bf16.gmra.mrb[0].mxu0 %v954
        %v1318 = vpop.f32.mrb[0].mxu0
        %v1319 = vadd.f32 0.0, %v1318
        %v1320 = vpop.f32.mrb[0].mxu0
        %v1321 = vpop.f32.mrb[0].mxu0
        %v1322 = vadd.f32 0.0, %v1321
        %v1323 = vpop.f32.mrb[0].mxu0
        %1324 = vmatprep.mubr.bf16.mxu0 0
        %1325 = vmatmul.mubr.bf16.gmra.mrb[0].mxu0 %v955
        %v1326 = vpop.f32.mrb[0].mxu0
        %v1327 = vadd.f32 0.0, %v1326
        %v1328 = vpop.f32.mrb[0].mxu0
        %v1329 = vpop.f32.mrb[0].mxu0
        %v1330 = vadd.f32 0.0, %v1329
        %v1331 = vpop.f32.mrb[0].mxu0
        %1332 = vmatprep.mubr.bf16.mxu0 0
        %1333 = vmatmul.mubr.bf16.gmra.mrb[0].mxu0 %v956
        %v1334 = vpop.f32.mrb[0].mxu0
        %v1335 = vadd.f32 0.0, %v1334
        %v1336 = vpop.f32.mrb[0].mxu0
        %v1337 = vpop.f32.mrb[0].mxu0
        %v1338 = vadd.f32 0.0, %v1337
        %v1339 = vpop.f32.mrb[0].mxu0
        %1340 = vmatprep.mubr.bf16.mxu0 0
        %1341 = vmatmul.mubr.bf16.gmra.mrb[0].mxu0 %v957
        %v1342 = vpop.f32.mrb[0].mxu0
        %v1343 = vadd.f32 0.0, %v1342
        %v1344 = vpop.f32.mrb[0].mxu0
        %v1345 = vpop.f32.mrb[0].mxu0
        %v1346 = vadd.f32 0.0, %v1345
        %v1347 = vpop.f32.mrb[0].mxu0
        %1348 = vmatprep.mubr.bf16.mxu0 0
        %1349 = vmatmul.mubr.bf16.gmra.mrb[0].mxu0 %v958
        %v1350 = vpop.f32.mrb[0].mxu0
        %v1351 = vadd.f32 0.0, %v1350
        %v1352 = vpop.f32.mrb[0].mxu0
        %v1353 = vpop.f32.mrb[0].mxu0
        %v1354 = vadd.f32 0.0, %v1353
        %v1355 = vpop.f32.mrb[0].mxu0
        %1356 = vmatprep.mubr.bf16.mxu0 0
        %1357 = vmatmul.mubr.bf16.gmra.mrb[0].mxu0 %v959
        %v1358 = vpop.f32.mrb[0].mxu0
        %v1359 = vadd.f32 0.0, %v1358
        %v1360 = vpop.f32.mrb[0].mxu0
        %v1361 = vpop.f32.mrb[0].mxu0
        %v1362 = vadd.f32 0.0, %v1361
        %v1363 = vpop.f32.mrb[0].mxu0
        %1364 = vmatprep.mubr.bf16.mxu0 0
        %1365 = vmatmul.mubr.bf16.gmra.mrb[0].mxu0 %v960
        %v1366 = vpop.f32.mrb[0].mxu0
        %v1367 = vadd.f32 0.0, %v1366
        %v1368 = vpop.f32.mrb[0].mxu0
        %v1369 = vpop.f32.mrb[0].mxu0
        %v1370 = vadd.f32 0.0, %v1369
        %v1371 = vpop.f32.mrb[0].mxu0
        %1372 = vmatprep.mubr.bf16.mxu0 0
        %1373 = vmatmul.mubr.bf16.gmra.mrb[0].mxu0 %v961
        %v1374 = vpop.f32.mrb[0].mxu0
        %v1375 = vadd.f32 0.0, %v1374
        %v1376 = vpop.f32.mrb[0].mxu0
        %v1377 = vpop.f32.mrb[0].mxu0
        %v1378 = vadd.f32 0.0, %v1377
        %v1379 = vpop.f32.mrb[0].mxu0
        %1380 = vmatprep.mubr.bf16.mxu0 0
        %1381 = vmatmul.mubr.bf16.gmra.mrb[0].mxu0 %v962
        %v1382 = vpop.f32.mrb[0].mxu0
        %v1383 = vadd.f32 0.0, %v1382
        %v1384 = vpop.f32.mrb[0].mxu0
        %v1385 = vpop.f32.mrb[0].mxu0
        %v1386 = vadd.f32 0.0, %v1385
        %v1387 = vpop.f32.mrb[0].mxu0
        %1388 = vmatprep.mubr.bf16.mxu0 0
        %1389 = vmatmul.mubr.bf16.gmra.mrb[0].mxu0 %v963
        %v1390 = vpop.f32.mrb[0].mxu0
        %v1391 = vadd.f32 0.0, %v1390
        %v1392 = vpop.f32.mrb[0].mxu0
        %v1393 = vpop.f32.mrb[0].mxu0
        %v1394 = vadd.f32 0.0, %v1393
        %v1395 = vpop.f32.mrb[0].mxu0
        %1396 = vmatprep.mubr.bf16.mxu0 0
        %1397 = vmatmul.mubr.bf16.gmra.mrb[0].mxu0 %v964
        %v1398 = vpop.f32.mrb[0].mxu0
        %v1399 = vadd.f32 0.0, %v1398
        %v1400 = vpop.f32.mrb[0].mxu0
        %v1401 = vpop.f32.mrb[0].mxu0
        %v1402 = vadd.f32 0.0, %v1401
        %v1403 = vpop.f32.mrb[0].mxu0
        %1404 = vmatprep.mubr.bf16.mxu0 0
        %1405 = vmatmul.mubr.bf16.gmra.mrb[0].mxu0 %v965
        %v1406 = vpop.f32.mrb[0].mxu0
        %v1407 = vadd.f32 0.0, %v1406
        %v1408 = vpop.f32.mrb[0].mxu0
        %v1409 = vpop.f32.mrb[0].mxu0
        %v1410 = vadd.f32 0.0, %v1409
        %v1411 = vpop.f32.mrb[0].mxu0
        %1412 = vmatprep.mubr.bf16.mxu0 0
        %1413 = vmatmul.mubr.bf16.gmra.mrb[0].mxu0 %v966
        %v1414 = vpop.f32.mrb[0].mxu0
        %v1415 = vadd.f32 0.0, %v1414
        %v1416 = vpop.f32.mrb[0].mxu0
        %v1417 = vpop.f32.mrb[0].mxu0
        %v1418 = vadd.f32 0.0, %v1417
        %v1419 = vpop.f32.mrb[0].mxu0
        %1420 = vmatprep.mubr.bf16.mxu0 0
        %1421 = vmatmul.mubr.bf16.gmra.mrb[0].mxu0 %v967
        %v1422 = vpop.f32.mrb[0].mxu0
        %v1423 = vadd.f32 0.0, %v1422
        %v1424 = vpop.f32.mrb[0].mxu0
        %v1425 = vpop.f32.mrb[0].mxu0
        %v1426 = vadd.f32 0.0, %v1425
        %v1427 = vpop.f32.mrb[0].mxu0
        %1428 = vmatprep.mubr.bf16.mxu0 0
        %1429 = vmatmul.mubr.bf16.gmra.mrb[0].mxu0 %v968
        %v1430 = vpop.f32.mrb[0].mxu0
        %v1431 = vadd.f32 0.0, %v1430
        %v1432 = vpop.f32.mrb[0].mxu0
        %v1433 = vpop.f32.mrb[0].mxu0
        %v1434 = vadd.f32 0.0, %v1433
        %v1435 = vpop.f32.mrb[0].mxu0
        %1436 = vmatprep.mubr.bf16.mxu0 0
        %1437 = vmatmul.mubr.bf16.gmra.mrb[0].mxu0 %v969
        %v1438 = vpop.f32.mrb[0].mxu0
        %v1439 = vadd.f32 0.0, %v1438
        %v1440 = vpop.f32.mrb[0].mxu0
        %v1441 = vpop.f32.mrb[0].mxu0
        %v1442 = vadd.f32 0.0, %v1441
        %v1443 = vpop.f32.mrb[0].mxu0
        %1444 = vmatprep.mubr.bf16.mxu0 0
        %1445 = vmatmul.mubr.bf16.gmra.mrb[0].mxu0 %v970
        %v1446 = vpop.f32.mrb[0].mxu0
        %v1447 = vadd.f32 0.0, %v1446
        %v1448 = vpop.f32.mrb[0].mxu0
        %v1449 = vpop.f32.mrb[0].mxu0
        %v1450 = vadd.f32 0.0, %v1449
        %v1451 = vpop.f32.mrb[0].mxu0
        %1452 = vmatprep.mubr.bf16.mxu0 0
        %1453 = vmatmul.mubr.bf16.gmra.mrb[0].mxu0 %v971
        %v1454 = vpop.f32.mrb[0].mxu0
        %v1455 = vadd.f32 0.0, %v1454
        %v1456 = vpop.f32.mrb[0].mxu0
        %v1457 = vpop.f32.mrb[0].mxu0
        %v1458 = vadd.f32 0.0, %v1457
        %v1459 = vpop.f32.mrb[0].mxu0
        %1460 = vmatprep.mubr.bf16.mxu0 0
        %1461 = vmatmul.mubr.bf16.gmra.mrb[0].mxu0 %v972
        %v1462 = vpop.f32.mrb[0].mxu0
        %v1463 = vadd.f32 0.0, %v1462
        %v1464 = vpop.f32.mrb[0].mxu0
        %v1465 = vpop.f32.mrb[0].mxu0
        %v1466 = vadd.f32 0.0, %v1465
        %v1467 = vpop.f32.mrb[0].mxu0
        %1468 = vmatprep.mubr.bf16.mxu0 0
        %1469 = vmatmul.mubr.bf16.gmra.mrb[0].mxu0 %v973
        %v1470 = vpop.f32.mrb[0].mxu0
        %v1471 = vadd.f32 0.0, %v1470
        %v1472 = vpop.f32.mrb[0].mxu0
        %v1473 = vpop.f32.mrb[0].mxu0
        %v1474 = vadd.f32 0.0, %v1473
        %v1475 = vpop.f32.mrb[0].mxu0
        %1476 = vmatprep.mubr.bf16.mxu0 0
        %1477 = vmatmul.mubr.bf16.gmra.mrb[0].mxu0 %v974
        %v1478 = vpop.f32.mrb[0].mxu0
        %v1479 = vadd.f32 0.0, %v1478
        %v1480 = vpop.f32.mrb[0].mxu0
        %v1481 = vpop.f32.mrb[0].mxu0
        %v1482 = vadd.f32 0.0, %v1481
        %v1483 = vpop.f32.mrb[0].mxu0
        %1484 = vmatprep.mubr.bf16.mxu0 0
        %1485 = vmatmul.mubr.bf16.gmra.mrb[0].mxu0 %v975
        %v1486 = vpop.f32.mrb[0].mxu0
        %v1487 = vadd.f32 0.0, %v1486
        %v1488 = vpop.f32.mrb[0].mxu0
        %v1489 = vpop.f32.mrb[0].mxu0
        %v1490 = vadd.f32 0.0, %v1489
        %v1491 = vpop.f32.mrb[0].mxu0
        %1492 = vmatprep.mubr.bf16.mxu0 0
        %1493 = vmatmul.mubr.bf16.gmra.mrb[0].mxu0 %v976
        %v1494 = vpop.f32.mrb[0].mxu0
        %v1495 = vadd.f32 0.0, %v1494
        %v1496 = vpop.f32.mrb[0].mxu0
        %v1497 = vpop.f32.mrb[0].mxu0
        %v1498 = vadd.f32 0.0, %v1497
        %v1499 = vpop.f32.mrb[0].mxu0
        %1500 = vmatprep.mubr.bf16.mxu0 0
        %1501 = vmatmul.mubr.bf16.gmra.mrb[0].mxu0 %v977
        %v1502 = vpop.f32.mrb[0].mxu0
        %v1503 = vadd.f32 0.0, %v1502
        %v1504 = vpop.f32.mrb[0].mxu0
        %v1505 = vpop.f32.mrb[0].mxu0
        %v1506 = vadd.f32 0.0, %v1505
        %v1507 = vpop.f32.mrb[0].mxu0
        %1508 = vdwg.mxu0
        %v1509 = vmax.f32 %v1111, %v1210
        %v1510 = vmax.f32 %v1114, %v1215
        %v1511 = vmax.f32 %v1119, %v1218
        %v1512 = vmax.f32 %v1122, %v1223
        %v1513 = vmax.f32 %v1127, %v1226
        %v1514 = vmax.f32 %v1130, %v1231
        %v1515 = vmax.f32 %v1135, %v1234
        %v1516 = vmax.f32 %v1138, %v1239
        %v1517 = vmax.f32 %v1143, %v1242
        %v1518 = vmax.f32 %v1146, %v1247
        %v1519 = vmax.f32 %v1151, %v1250
        %v1520 = vmax.f32 %v1154, %v1255
        %v1521 = vmax.f32 %v1159, %v1258
        %v1522 = vmax.f32 %v1162, %v1263
        %v1523 = vmax.f32 %v1167, %v1266
        %v1524 = vmax.f32 %v1170, %v1271
        %v1525 = vmax.f32 %v1175, %v1274
        %v1526 = vmax.f32 %v1178, %v1279
        %v1527 = vmax.f32 %v1183, %v1282
        %v1528 = vmax.f32 %v1186, %v1287
        %v1529 = vmax.f32 %v1191, %v1290
        %v1530 = vmax.f32 %v1194, %v1295
        %v1531 = vmax.f32 %v1199, %v1298
        %v1532 = vmax.f32 %v1202, %v1303
        %v1533 = vmax.f32 %v1207, %v1306
        %v1534 = vmax.f32 %v1311, %v1410
        %v1535 = vmax.f32 %v1314, %v1415
        %v1536 = vmax.f32 %v1319, %v1418
        %v1537 = vmax.f32 %v1322, %v1423
        %v1538 = vmax.f32 %v1327, %v1426
        %v1539 = vmax.f32 %v1330, %v1431
        %v1540 = vmax.f32 %v1335, %v1434
        %v1541 = vmax.f32 %v1338, %v1439
        %v1542 = vmax.f32 %v1343, %v1442
        %v1543 = vmax.f32 %v1346, %v1447
        %v1544 = vmax.f32 %v1351, %v1450
        %v1545 = vmax.f32 %v1354, %v1455
        %v1546 = vmax.f32 %v1359, %v1458
        %v1547 = vmax.f32 %v1362, %v1463
        %v1548 = vmax.f32 %v1367, %v1466
        %v1549 = vmax.f32 %v1370, %v1471
        %v1550 = vmax.f32 %v1375, %v1474
        %v1551 = vmax.f32 %v1378, %v1479
        %v1552 = vmax.f32 %v1383, %v1482
        %v1553 = vmax.f32 %v1386, %v1487
        %v1554 = vmax.f32 %v1391, %v1490
        %v1555 = vmax.f32 %v1394, %v1495
        %v1556 = vmax.f32 %v1399, %v1498
        %v1557 = vmax.f32 %v1402, %v1503
        %v1558 = vmax.f32 %v1407, %v1506
        %v1559 = vmax.f32 %v1509, %v1534
        %v1560 = vmax.f32 %v1510, %v1535
        %v1561 = vmax.f32 %v1511, %v1536
        %v1562 = vmax.f32 %v1512, %v1537
        %v1563 = vmax.f32 %v1513, %v1538
        %v1564 = vmax.f32 %v1514, %v1539
        %v1565 = vmax.f32 %v1515, %v1540
        %v1566 = vmax.f32 %v1516, %v1541
        %v1567 = vmax.f32 %v1517, %v1542
        %v1568 = vmax.f32 %v1518, %v1543
        %v1569 = vmax.f32 %v1519, %v1544
        %v1570 = vmax.f32 %v1520, %v1545
        %v1571 = vmax.f32 %v1521, %v1546
        %v1572 = vmax.f32 %v1522, %v1547
        %v1573 = vmax.f32 %v1523, %v1548
        %v1574 = vmax.f32 %v1524, %v1549
        %v1575 = vmax.f32 %v1525, %v1550
        %v1576 = vmax.f32 %v1526, %v1551
        %v1577 = vmax.f32 %v1527, %v1552
        %v1578 = vmax.f32 %v1528, %v1553
        %v1579 = vmax.f32 %v1529, %v1554
        %v1580 = vmax.f32 %v1530, %v1555
        %v1581 = vmax.f32 %v1531, %v1556
        %v1582 = vmax.f32 %v1532, %v1557
        %v1583 = vmax.f32 %v1533, %v1558
        %v1584 = vld [vmem:[%s2] sm:$0x1]
        %v1586 = vlaneseq
        %v1587 = vshrl.u32 %v1586, 7
        %v1588 = vsub.s32 0, %v1587
        %v1589 = vrot.slane %v1584, %v1588
        %v1591 = vadd.f32 %v1559, %v1589
        %v1592 = vadd.f32 %v1560, %v1589
        %v1593 = vadd.f32 %v1561, %v1589
        %v1594 = vadd.f32 %v1562, %v1589
        %v1595 = vadd.f32 %v1563, %v1589
        %v1596 = vadd.f32 %v1564, %v1589
        %v1597 = vadd.f32 %v1565, %v1589
        %v1598 = vadd.f32 %v1566, %v1589
        %v1599 = vadd.f32 %v1567, %v1589
        %v1600 = vadd.f32 %v1568, %v1589
        %v1601 = vadd.f32 %v1569, %v1589
        %v1602 = vadd.f32 %v1570, %v1589
        %v1603 = vadd.f32 %v1571, %v1589
        %v1604 = vadd.f32 %v1572, %v1589
        %v1605 = vadd.f32 %v1573, %v1589
        %v1606 = vadd.f32 %v1574, %v1589
        %v1607 = vadd.f32 %v1575, %v1589
        %v1608 = vadd.f32 %v1576, %v1589
        %v1609 = vadd.f32 %v1577, %v1589
        %v1610 = vadd.f32 %v1578, %v1589
        %v1611 = vadd.f32 %v1579, %v1589
        %v1612 = vadd.f32 %v1580, %v1589
        %v1613 = vadd.f32 %v1581, %v1589
        %v1614 = vadd.f32 %v1582, %v1589
        %v1615 = vadd.f32 %v1583, %v1589
        %v1616 = vmax.f32 %v1591, 0.0
        %v1617 = vmax.f32 %v1592, 0.0
        %v1618 = vmax.f32 %v1593, 0.0
        %v1619 = vmax.f32 %v1594, 0.0
        %v1620 = vmax.f32 %v1595, 0.0
        %v1621 = vmax.f32 %v1596, 0.0
        %v1622 = vmax.f32 %v1597, 0.0
        %v1623 = vmax.f32 %v1598, 0.0
        %v1624 = vmax.f32 %v1599, 0.0
        %v1625 = vmax.f32 %v1600, 0.0
        %v1626 = vmax.f32 %v1601, 0.0
        %v1627 = vmax.f32 %v1602, 0.0
        %v1628 = vmax.f32 %v1603, 0.0
        %v1629 = vmax.f32 %v1604, 0.0
        %v1630 = vmax.f32 %v1605, 0.0
        %v1631 = vmax.f32 %v1606, 0.0
        %v1632 = vmax.f32 %v1607, 0.0
        %v1633 = vmax.f32 %v1608, 0.0
        %v1634 = vmax.f32 %v1609, 0.0
        %v1635 = vmax.f32 %v1610, 0.0
        %v1636 = vmax.f32 %v1611, 0.0
        %v1637 = vmax.f32 %v1612, 0.0
        %v1638 = vmax.f32 %v1613, 0.0
        %v1639 = vmax.f32 %v1614, 0.0
        %v1640 = vmax.f32 %v1615, 0.0
        %v1641 = vpack.c.bf16 %v1617, %v1616
        %v1642 = vpack.c.bf16 %v1619, %v1618
        %v1643 = vpack.c.bf16 %v1621, %v1620
        %v1644 = vpack.c.bf16 %v1623, %v1622
        %v1645 = vpack.c.bf16 %v1625, %v1624
        %v1646 = vpack.c.bf16 %v1627, %v1626
        %v1647 = vpack.c.bf16 %v1629, %v1628
        %v1648 = vpack.c.bf16 %v1631, %v1630
        %v1649 = vpack.c.bf16 %v1633, %v1632
        %v1650 = vpack.c.bf16 %v1635, %v1634
        %v1651 = vpack.c.bf16 %v1637, %v1636
        %v1652 = vpack.c.bf16 %v1639, %v1638
        %v1653 = vpack.c.bf16 %v1640, %v1640
        %v1667 = vunpack.c.l.b16 %v1641
        %v1668 = vunpack.c.h.b16 %v1641
        %v1669 = vunpack.c.l.b16 %v1642
        %v1670 = vunpack.c.h.b16 %v1642
        %v1671 = vunpack.c.l.b16 %v1643
        %v1672 = vunpack.c.h.b16 %v1643
        %v1673 = vunpack.c.l.b16 %v1644
        %v1674 = vunpack.c.h.b16 %v1644
        %v1675 = vunpack.c.l.b16 %v1645
        %v1676 = vunpack.c.h.b16 %v1645
        %v1677 = vunpack.c.l.b16 %v1646
        %v1678 = vunpack.c.h.b16 %v1646
        %v1679 = vunpack.c.l.b16 %v1647
        %v1680 = vunpack.c.h.b16 %v1647
        %v1681 = vunpack.c.l.b16 %v1648
        %v1682 = vunpack.c.h.b16 %v1648
        %v1683 = vunpack.c.l.b16 %v1649
        %v1684 = vunpack.c.h.b16 %v1649
        %v1685 = vunpack.c.l.b16 %v1650
        %v1686 = vunpack.c.h.b16 %v1650
        %v1687 = vunpack.c.l.b16 %v1651
        %v1688 = vunpack.c.h.b16 %v1651
        %v1689 = vunpack.c.l.b16 %v1652
        %v1690 = vunpack.c.h.b16 %v1652
        %v1691 = vunpack.c.l.b16 %v1653
        %v1692 = vpack.c.b16 %v1667, %v1667
        %v1693 = vpack.c.b16 %v1668, %v1668
        %v1694 = vpack.c.b16 %v1669, %v1669
        %v1695 = vpack.c.b16 %v1670, %v1670
        %v1696 = vpack.c.b16 %v1671, %v1671
        %v1697 = vpack.c.b16 %v1672, %v1672
        %v1698 = vpack.c.b16 %v1673, %v1673
        %v1699 = vpack.c.b16 %v1674, %v1674
        %v1700 = vpack.c.b16 %v1675, %v1675
        %v1701 = vpack.c.b16 %v1676, %v1676
        %v1702 = vpack.c.b16 %v1677, %v1677
        %v1703 = vpack.c.b16 %v1678, %v1678
        %v1704 = vpack.c.b16 %v1679, %v1679
        %v1705 = vpack.c.b16 %v1680, %v1680
        %v1706 = vpack.c.b16 %v1681, %v1681
        %v1707 = vpack.c.b16 %v1682, %v1682
        %v1708 = vpack.c.b16 %v1683, %v1683
        %v1709 = vpack.c.b16 %v1684, %v1684
        %v1710 = vpack.c.b16 %v1685, %v1685
        %v1711 = vpack.c.b16 %v1686, %v1686
        %v1712 = vpack.c.b16 %v1687, %v1687
        %v1713 = vpack.c.b16 %v1688, %v1688
        %v1714 = vpack.c.b16 %v1689, %v1689
        %v1715 = vpack.c.b16 %v1690, %v1690
        %v1716 = vpack.c.b16 %v1691, %v1691
        %1742 = vst [vmem:[%s609] sm:$0xf] %v1692
        %1743 = vst [vmem:[%s609 + $0x4] sm:$0xf] %v1693
        %1744 = vst [vmem:[%s609 + $0x8] sm:$0xf] %v1694
        %1745 = vst [vmem:[%s609 + $0xc] sm:$0xf] %v1695
        %1746 = vst [vmem:[%s609 + $0x10] sm:$0xf] %v1696
        %1747 = vst [vmem:[%s609 + $0x14] sm:$0xf] %v1697
        %1748 = vst [vmem:[%s609 + $0x18] sm:$0xf] %v1698
        %1749 = vst [vmem:[%s609 + $0x1c] sm:$0xf] %v1699
        %1750 = vst [vmem:[%s609 + $0x20] sm:$0xf] %v1700
        %1751 = vst [vmem:[%s609 + $0x24] sm:$0xf] %v1701
        %1752 = vst [vmem:[%s609 + $0x28] sm:$0xf] %v1702
        %1753 = vst [vmem:[%s609 + $0x2c] sm:$0xf] %v1703
        %1754 = vst [vmem:[%s609 + $0x30] sm:$0xf] %v1704
        %1755 = vst [vmem:[%s609 + $0x34] sm:$0xf] %v1705
        %1756 = vst [vmem:[%s609 + $0x38] sm:$0xf] %v1706
        %1757 = vst [vmem:[%s609 + $0x3c] sm:$0xf] %v1707
        %1758 = vst [vmem:[%s609 + $0x40] sm:$0xf] %v1708
        %1759 = vst [vmem:[%s609 + $0x44] sm:$0xf] %v1709
        %1760 = vst [vmem:[%s609 + $0x48] sm:$0xf] %v1710
        %1761 = vst [vmem:[%s609 + $0x4c] sm:$0xf] %v1711
        %1762 = vst [vmem:[%s609 + $0x50] sm:$0xf] %v1712
        %1763 = vst [vmem:[%s609 + $0x54] sm:$0xf] %v1713
        %1764 = vst [vmem:[%s609 + $0x58] sm:$0xf] %v1714
        %1765 = vst [vmem:[%s609 + $0x5c] sm:$0xf] %v1715
        %1766 = vst [vmem:[%s609 + $0x60] sm:$0xf] %v1716
        %s1767 = smul.u32 25, %s14
        %p1768 = scmp.lt.s32.totalorder %s1767, 49
        %s1769 = scalar_select %p1768, %s1767, 49
        %s1770 = smul.addr %s1769, 4
        %s1771 = scalar_lea.vmem %s3, %s1770
        // Predicated region
        $region74: #{net_forward.3} parent=68 // pred_check
          %p1772 = pneg %p100
        $region75: #{net_forward.3} parent=68 // pred_check_branch
          %1774 = sbr.rel (%p1772) target = $region77
        $region76: #{net_forward.3} parent=68 // pred_region
          %s1775 = smul.u32 25, %s14
        $region77: #{net_forward.3} parent=68 // pred_fallthru
          _
      $region69: #{net_forward.3} parent=5 // pred_fallthru
        _
      %p1776 = scmp.le.s32.totalorder 2, %s9
      // Predicated region
      $region78: #{net_forward.3} parent=5 // pred_check
        %p1777 = pneg %p1776
      $region79: #{net_forward.3} parent=5 // pred_check_branch
        %1779 = sbr.rel (%p1777) target = $region81
      $region80: #{net_forward.3} parent=5 // pred_region
        %s1780 = ssub.s32 %s9, 2
        // Predicated region
        $region82: #{net_forward.3} parent=80 // pred_check
          %p1781 = pneg %p106
        $region83: #{net_forward.3} parent=80 // pred_check_branch
          %1783 = sbr.rel (%p1781) target = $region85
        $region84: #{net_forward.3} parent=80 // pred_region
          %s1784 = smul.u32 25, %s15
          %p1785 = scmp.lt.s32.totalorder %s1784, 49
          %s1786 = scalar_select %p1785, %s1784, 49
          %s1787 = smul.addr %s1786, 4
          %s1788 = scalar_lea.vmem %s3, %s1787
        $region85: #{net_forward.3} parent=80 // pred_fallthru
          _
      $region81: #{net_forward.3} parent=5 // pred_fallthru
        _
    $region6: #{net_forward.3} parent=1 // loop_footer
      %s13 = sadd.s32 1, %s9
    $region7: #{net_forward.3} parent=1 // loop_footer_branch
      %8 = sbr.rel target = $region3
    $region8: #{net_forward.3} parent=1 // loop_exit
      _

// kernel: net_forward.4
$region0: #{net_forward.4}
  #allocation0 [shape = 'u32[]', space=smem, size = 0x4, offset = 0x4, fixed_abs, tag = 'smem constant byte address 0x4 - core index']
  #allocation1 [shape = 'u32[144,128]{1,0:T(1,128)}', space=vmem, size = 0x12000, scoped, tag = 'internal scratch']
  %s0 = inlined_call_operand.vmem [shape: bf16[4,64,256], index: 0, kind: input, shape index: {}]
  %s1 = inlined_call_operand.vmem [shape: bf16[256,128], index: 1, kind: input, shape index: {}]
  %s2 = inlined_call_operand.vmem [shape: f32[1,128], index: 2, kind: input, shape index: {}]
  %s3 = inlined_call_operand.vmem [shape: bf16[64,128], index: 3, kind: output, shape index: {}]
  %s4 = sld [smem:[#allocation0]]
  $region83: #{net_forward.4} parent=0
    _
  %s6 = ssub.s32 1, %s4
  %s7 = scalar_select 0, %s6, %s4
  $region1: #{net_forward.4} parent=0
    #allocation2 [shape = 'u8[131072]{0}', space=vmem, size = 0x20000, scoped, tag = 'input window, operand 0']
    loop: start=0, step=1, limit=4
    $region2: #{net_forward.4} parent=1 // loop_pre_header
      _
    $region3: #{net_forward.4} parent=1 // loop_header
      %s9 = sphi 0, %s13
      %p10 = scmp.ge.s32.totalorder %s9, 4
      %s19 = sphi 0, %s21
      %s22 = sphi 0, %s19
      %s23 = sphi 0, %s22
      %s39 = sphi 0, %s23
      %s43 = sphi 0, %s43
      %s45 = sphi 0, %s43
      %s46 = sphi 0, %s45
      %s60 = sphi 0, %s46
      %s64 = sphi 0, %s64
      %s66 = sphi 0, %s64
      %s67 = sphi 0, %s66
      %s81 = sphi 0, %s67
      %s87 = sphi 0, %s89
      %s90 = sphi 0, %s87
      %s91 = sphi 0, %s90
      %s107 = sphi 0, %s91
    $region4: #{net_forward.4} parent=1 // loop_header_branch
      %12 = sbr.rel (%p10) target = $region8
    $region5: #{net_forward.4} parent=1 // loop_body
      %s14 = ssub.s32 %s9, 1
      %s15 = ssub.s32 %s9, 2
      %s16 = sadd.s32 %s9, 1
      %s17 = ssub.s32 %s9, %s16
      %p18 = scmp.eq.s32.totalorder %s17, 0
      %s20 = sadd.s32 %s19, 1
      %s21 = scalar_select %p18, %s19, %s20
      %p24 = pneg %p18
      %p25 = scmp.eq.s32.totalorder %s9, 1
      %p26 = por %p24, %p25
      %p27 = scmp.ne.s32.totalorder %s19, %s22
      %p28 = scmp.eq.s32.totalorder %s9, 0
      %p29 = por %p27, %p28
      %p30 = scmp.ne.s32.totalorder %s19, %s22
      %p31 = scmp.eq.s32.totalorder %s14, 1
      %p32 = por %p30, %p31
      %p33 = scmp.ne.s32.totalorder %s22, %s23
      %p34 = scmp.eq.s32.totalorder %s14, 0
      %p35 = por %p33, %p34
      %p36 = scmp.ne.s32.totalorder %s22, %s23
      %p37 = scmp.eq.s32.totalorder %s15, 1
      %p38 = por %p36, %p37
      %p40 = scmp.ne.s32.totalorder %s23, %s39
      %p41 = scmp.eq.s32.totalorder %s15, 0
      %p42 = por %p40, %p41
      %s44 = sadd.s32 %s43, 1
      %p47 = scmp.eq.s32.totalorder %s9, 1
      %p48 = scmp.ne.s32.totalorder %s43, %s45
      %p49 = scmp.eq.s32.totalorder %s9, 0
      %p50 = por %p48, %p49
      %p51 = scmp.ne.s32.totalorder %s43, %s45
      %p52 = scmp.eq.s32.totalorder %s14, 1
      %p53 = por %p51, %p52
      %p54 = scmp.ne.s32.totalorder %s45, %s46
      %p55 = scmp.eq.s32.totalorder %s14, 0
      %p56 = por %p54, %p55
      %p57 = scmp.ne.s32.totalorder %s45, %s46
      %p58 = scmp.eq.s32.totalorder %s15, 1
      %p59 = por %p57, %p58
      %p61 = scmp.ne.s32.totalorder %s46, %s60
      %p62 = scmp.eq.s32.totalorder %s15, 0
      %p63 = por %p61, %p62
      %s65 = sadd.s32 %s64, 1
      %p68 = scmp.eq.s32.totalorder %s9, 1
      %p69 = scmp.ne.s32.totalorder %s64, %s66
      %p70 = scmp.eq.s32.totalorder %s9, 0
      %p71 = por %p69, %p70
      %p72 = scmp.ne.s32.totalorder %s64, %s66
      %p73 = scmp.eq.s32.totalorder %s14, 1
      %p74 = por %p72, %p73
      %p75 = scmp.ne.s32.totalorder %s66, %s67
      %p76 = scmp.eq.s32.totalorder %s14, 0
      %p77 = por %p75, %p76
      %p78 = scmp.ne.s32.totalorder %s66, %s67
      %p79 = scmp.eq.s32.totalorder %s15, 1
      %p80 = por %p78, %p79
      %p82 = scmp.ne.s32.totalorder %s67, %s81
      %p83 = scmp.eq.s32.totalorder %s15, 0
      %p84 = por %p82, %p83
      %s85 = ssub.s32 %s9, %s16
      %p86 = scmp.eq.s32.totalorder %s85, 0
      %s88 = sadd.s32 %s87, 1
      %s89 = scalar_select %p86, %s87, %s88
      %p92 = pneg %p86
      %p93 = scmp.eq.s32.totalorder %s9, 1
      %p94 = por %p92, %p93
      %p95 = scmp.ne.s32.totalorder %s87, %s90
      %p96 = scmp.eq.s32.totalorder %s9, 0
      %p97 = por %p95, %p96
      %p98 = scmp.ne.s32.totalorder %s87, %s90
      %p99 = scmp.eq.s32.totalorder %s14, 1
      %p100 = por %p98, %p99
      %p101 = scmp.ne.s32.totalorder %s90, %s91
      %p102 = scmp.eq.s32.totalorder %s14, 0
      %p103 = por %p101, %p102
      %p104 = scmp.ne.s32.totalorder %s90, %s91
      %p105 = scmp.eq.s32.totalorder %s15, 1
      %p106 = por %p104, %p105
      %p108 = scmp.ne.s32.totalorder %s91, %s107
      %p109 = scmp.eq.s32.totalorder %s15, 0
      %p110 = por %p108, %p109
      %p111 = scmp.le.s32.totalorder 1, %s9
      %p112 = scmp.lt.s32.totalorder %s9, 3
      %p113 = pnand %p111, %p112
      %p114 = pneg %p113
      // Predicated region
      $region9: #{net_forward.4} parent=5 // pred_check
        _
      $region10: #{net_forward.4} parent=5 // pred_check_branch
        %116 = sbr.rel (%p113) target = $region12
      $region11: #{net_forward.4} parent=5 // pred_region
        %s117 = ssub.s32 %s9, 1
        // Predicated region
        $region13: #{net_forward.4} parent=11 // pred_check
          %p118 = pneg %p56
        $region14: #{net_forward.4} parent=11 // pred_check_branch
          %120 = sbr.rel (%p118) target = $region16
        $region15: #{net_forward.4} parent=11 // pred_region
          _
        $region16: #{net_forward.4} parent=11 // pred_fallthru
          _
        // Predicated region
        $region17: #{net_forward.4} parent=11 // pred_check
          %p121 = pneg %p77
        $region18: #{net_forward.4} parent=11 // pred_check_branch
          %123 = sbr.rel (%p121) target = $region20
        $region19: #{net_forward.4} parent=11 // pred_region
          _
        $region20: #{net_forward.4} parent=11 // pred_fallthru
          _
      $region12: #{net_forward.4} parent=5 // pred_fallthru
        _
      %p124 = scmp.lt.s32.totalorder %s9, 2
      // Predicated region
      $region21: #{net_forward.4} parent=5 // pred_check
        %p125 = pneg %p124
      $region22: #{net_forward.4} parent=5 // pred_check_branch
        %127 = sbr.rel (%p125) target = $region24
      $region23: #{net_forward.4} parent=5 // pred_region
        // Predicated region
        $region25: #{net_forward.4} parent=23 // pred_check
          %p128 = pneg %p29
        $region26: #{net_forward.4} parent=23 // pred_check_branch
          %130 = sbr.rel (%p128) target = $region28
        $region27: #{net_forward.4} parent=23 // pred_region
          %s131 = sand.u32 %s19, 1
          %s132 = sand.u32 %s19, 1
          %s133 = smul.addr %s132, 128
          %s134 = scalar_lea.vmem [#allocation2], %s133
          %s135 = smul.u32 4, %s9
          %s136 = smul.addr %s135, 2
          %s137 = smul.addr %s136, 4
          %s138 = scalar_lea.vmem %s0, %s137
          // Predicated region
          $region29: #{net_forward.4} parent=27 // pred_check
            _
          $region30: #{net_forward.4} parent=27 // pred_check_branch
            %140 = sbr.rel (0) target = $region32
          $region31: #{net_forward.4} parent=27 // pred_region
            // Predicated region
            $region33: #{net_forward.4} parent=31 // pred_check
              _
            $region34: #{net_forward.4} parent=31 // pred_check_branch
              %142 = sbr.rel (0) target = $region36
            $region35: #{net_forward.4} parent=31 // pred_region
              // Predicated region
              $region48: #{net_forward.4} parent=35 // pred_check
                _
              $region49: #{net_forward.4} parent=35 // pred_check_branch
                %187 = sbr.rel (0) target = $region51
              $region50: #{net_forward.4} parent=35 // pred_region
                loop: start=0, step=1, limit=1
                $region52: #{net_forward.4} parent=50 // loop_pre_header
                  _
                $region53: #{net_forward.4} parent=50 // loop_header
                  %s189 = sphi 0, %s193
                  %p190 = scmp.ge.s32.totalorder %s189, 1
                  %s194 = sphi %s138, %s138
                  %s195 = sphi %s134, %s134
                $region54: #{net_forward.4} parent=50 // loop_header_branch
                  %192 = sbr.rel (%p190) target = $region58
                $region55: #{net_forward.4} parent=50 // loop_body
                  %v196 = vld [vmem:[%s194] sm:$0xff]
                  %197 = vst [vmem:[%s195] sm:$0xff] %v196
                  %v198 = vld [vmem:[%s194 + $0x8] sm:$0xff]
                  %199 = vst [vmem:[%s195 + $0x8] sm:$0xff] %v198
                  %v200 = vld [vmem:[%s194 + $0x10] sm:$0xff]
                  %201 = vst [vmem:[%s195 + $0x10] sm:$0xff] %v200
                  %v202 = vld [vmem:[%s194 + $0x18] sm:$0xff]
                  %203 = vst [vmem:[%s195 + $0x18] sm:$0xff] %v202
                  %v204 = vld [vmem:[%s194 + $0x40] sm:$0xff]
                  %205 = vst [vmem:[%s195 + $0x20] sm:$0xff] %v204
                  %v206 = vld [vmem:[%s194 + $0x48] sm:$0xff]
                  %207 = vst [vmem:[%s195 + $0x28] sm:$0xff] %v206
                  %v208 = vld [vmem:[%s194 + $0x50] sm:$0xff]
                  %209 = vst [vmem:[%s195 + $0x30] sm:$0xff] %v208
                  %v210 = vld [vmem:[%s194 + $0x58] sm:$0xff]
                  %211 = vst [vmem:[%s195 + $0x38] sm:$0xff] %v210
                  %v212 = vld [vmem:[%s194 + $0x80] sm:$0xff]
                  %213 = vst [vmem:[%s195 + $0x40] sm:$0xff] %v212
                  %v214 = vld [vmem:[%s194 + $0x88] sm:$0xff]
                  %215 = vst [vmem:[%s195 + $0x48] sm:$0xff] %v214
                  %v216 = vld [vmem:[%s194 + $0x90] sm:$0xff]
                  %217 = vst [vmem:[%s195 + $0x50] sm:$0xff] %v216
                  %v218 = vld [vmem:[%s194 + $0x98] sm:$0xff]
                  %219 = vst [vmem:[%s195 + $0x58] sm:$0xff] %v218
                  %v220 = vld [vmem:[%s194 + $0xc0] sm:$0xff]
                  %221 = vst [vmem:[%s195 + $0x60] sm:$0xff] %v220
                  %v222 = vld [vmem:[%s194 + $0xc8] sm:$0xff]
                  %223 = vst [vmem:[%s195 + $0x68] sm:$0xff] %v222
                  %v224 = vld [vmem:[%s194 + $0xd0] sm:$0xff]
                  %225 = vst [vmem:[%s195 + $0x70] sm:$0xff] %v224
                  %v226 = vld [vmem:[%s194 + $0xd8] sm:$0xff]
                  %227 = vst [vmem:[%s195 + $0x78] sm:$0xff] %v226
                $region56: #{net_forward.4} parent=50 // loop_footer
                  %s193 = sadd.s32 1, %s189
                $region57: #{net_forward.4} parent=50 // loop_footer_branch
                  %188 = sbr.rel target = $region53
                $region58: #{net_forward.4} parent=50 // loop_exit
                  _
              $region51: #{net_forward.4} parent=35 // pred_fallthru
                _
              // Predicated region
              $region59: #{net_forward.4} parent=35 // pred_check
                _
              $region60: #{net_forward.4} parent=35 // pred_check_branch
                %229 = sbr.rel target = $region62
              $region61: #{net_forward.4} parent=35 // pred_region
                _
              $region62: #{net_forward.4} parent=35 // pred_fallthru
                _
            $region36: #{net_forward.4} parent=31 // pred_fallthru
              _
            // Predicated region
            $region37: #{net_forward.4} parent=31 // pred_check
              _
            $region38: #{net_forward.4} parent=31 // pred_check_branch
              %144 = sbr.rel target = $region40
            $region39: #{net_forward.4} parent=31 // pred_region
              loop: start=0, step=1, limit=1
              $region41: #{net_forward.4} parent=39 // loop_pre_header
                _
              $region42: #{net_forward.4} parent=39 // loop_header
                %s147 = sphi 0, %s151
                %p148 = scmp.ge.s32.totalorder %s147, 1
                %s152 = sphi %s138, %s138
                %s153 = sphi %s134, %s134
              $region43: #{net_forward.4} parent=39 // loop_header_branch
                %150 = sbr.rel (%p148) target = $region47
              $region44: #{net_forward.4} parent=39 // loop_body
                %v154 = vld [vmem:[%s152] sm:$0xff]
                %155 = vst [vmem:[%s153] sm:$0xff] %v154
                %v156 = vld [vmem:[%s152 + $0x8] sm:$0xff]
                %157 = vst [vmem:[%s153 + $0x8] sm:$0xff] %v156
                %v158 = vld [vmem:[%s152 + $0x10] sm:$0xff]
                %159 = vst [vmem:[%s153 + $0x10] sm:$0xff] %v158
                %v160 = vld [vmem:[%s152 + $0x18] sm:$0xff]
                %161 = vst [vmem:[%s153 + $0x18] sm:$0xff] %v160
                %v162 = vld [vmem:[%s152 + $0x40] sm:$0xff]
                %163 = vst [vmem:[%s153 + $0x20] sm:$0xff] %v162
                %v164 = vld [vmem:[%s152 + $0x48] sm:$0xff]
                %165 = vst [vmem:[%s153 + $0x28] sm:$0xff] %v164
                %v166 = vld [vmem:[%s152 + $0x50] sm:$0xff]
                %167 = vst [vmem:[%s153 + $0x30] sm:$0xff] %v166
                %v168 = vld [vmem:[%s152 + $0x58] sm:$0xff]
                %169 = vst [vmem:[%s153 + $0x38] sm:$0xff] %v168
                %v170 = vld [vmem:[%s152 + $0x80] sm:$0xff]
                %171 = vst [vmem:[%s153 + $0x40] sm:$0xff] %v170
                %v172 = vld [vmem:[%s152 + $0x88] sm:$0xff]
                %173 = vst [vmem:[%s153 + $0x48] sm:$0xff] %v172
                %v174 = vld [vmem:[%s152 + $0x90] sm:$0xff]
                %175 = vst [vmem:[%s153 + $0x50] sm:$0xff] %v174
                %v176 = vld [vmem:[%s152 + $0x98] sm:$0xff]
                %177 = vst [vmem:[%s153 + $0x58] sm:$0xff] %v176
                %v178 = vld [vmem:[%s152 + $0xc0] sm:$0xff]
                %179 = vst [vmem:[%s153 + $0x60] sm:$0xff] %v178
                %v180 = vld [vmem:[%s152 + $0xc8] sm:$0xff]
                %181 = vst [vmem:[%s153 + $0x68] sm:$0xff] %v180
                %v182 = vld [vmem:[%s152 + $0xd0] sm:$0xff]
                %183 = vst [vmem:[%s153 + $0x70] sm:$0xff] %v182
                %v184 = vld [vmem:[%s152 + $0xd8] sm:$0xff]
                %185 = vst [vmem:[%s153 + $0x78] sm:$0xff] %v184
              $region45: #{net_forward.4} parent=39 // loop_footer
                %s151 = sadd.s32 1, %s147
              $region46: #{net_forward.4} parent=39 // loop_footer_branch
                %146 = sbr.rel target = $region42
              $region47: #{net_forward.4} parent=39 // loop_exit
                _
            $region40: #{net_forward.4} parent=31 // pred_fallthru
              _
          $region32: #{net_forward.4} parent=27 // pred_fallthru
            _
          %230 = vnop
        $region28: #{net_forward.4} parent=23 // pred_fallthru
          _
      $region24: #{net_forward.4} parent=5 // pred_fallthru
        _
      %p231 = scmp.le.s32.totalorder 1, %s9
      %p232 = scmp.lt.s32.totalorder %s9, 3
      %p233 = pnand %p231, %p232
      %p234 = pneg %p233
      // Predicated region
      $region63: #{net_forward.4} parent=5 // pred_check
        _
      $region64: #{net_forward.4} parent=5 // pred_check_branch
        %236 = sbr.rel (%p233) target = $region66
      $region65: #{net_forward.4} parent=5 // pred_region
        %s237 = ssub.s32 %s9, 1
        %s238 = sand.u32 %s22, 1
        %s239 = sand.u32 %s22, 1
        %s240 = smul.addr %s239, 128
        %s241 = scalar_lea.vmem [#allocation2], %s240
        // Predicated region
        $region67: #{net_forward.4} parent=65 // pred_check
          %p242 = pneg %p35
        $region68: #{net_forward.4} parent=65 // pred_check_branch
          %244 = sbr.rel (%p242) target = $region70
        $region69: #{net_forward.4} parent=65 // pred_region
          _
        $region70: #{net_forward.4} parent=65 // pred_fallthru
          _
        %s245 = sand.u32 %s22, 1
        %s246 = sand.u32 %s22, 1
        %s247 = smul.addr %s246, 128
        %s248 = scalar_lea.vmem [#allocation2], %s247
        %p249 = pneg %p35
        %p250 = pneg %p32
        %p251 = pneg %p56
        %p252 = pneg %p53
        %p253 = pneg %p77
        %p254 = pneg %p74
        %p255 = pneg %p103
        %p256 = pneg %p100
        %s257 = smul.u32 4, %s14
        %p258 = scmp.lt.s32.totalorder %s257, 7
        %s259 = scalar_select %p258, %s257, 7
        %s260 = smul.addr %s259, 4
        %s261 = scalar_lea.vmem %s3, %s260
        %s262 = smul.u32 4, %s14
        %s263 = smul.u32 4, %s14
        %p264 = scmp.lt.s32.totalorder %s263, 7
        %s265 = scalar_select %p264, %s263, 7
        %s266 = smul.addr %s265, 4
        %s267 = scalar_lea.vmem %s3, %s266
        %s268 = smul.u32 4, %s14
        %v270 = vld [vmem:[%s241] sm:$0xff]
        %v271 = vld [vmem:[%s241 + $0x8] sm:$0xff]
        %v272 = vld [vmem:[%s241 + $0x10] sm:$0xff]
        %v273 = vld [vmem:[%s241 + $0x18] sm:$0xff]
        %v274 = vld [vmem:[%s241 + $0x20] sm:$0xff]
        %v275 = vld [vmem:[%s241 + $0x28] sm:$0xff]
        %v276 = vld [vmem:[%s241 + $0x30] sm:$0xff]
        %v277 = vld [vmem:[%s241 + $0x38] sm:$0xff]
        %v278 = vld [vmem:[%s241 + $0x40] sm:$0xff]
        %v279 = vld [vmem:[%s241 + $0x48] sm:$0xff]
        %v280 = vld [vmem:[%s241 + $0x50] sm:$0xff]
        %v281 = vld [vmem:[%s241 + $0x58] sm:$0xff]
        %v282 = vld [vmem:[%s241 + $0x60] sm:$0xff]
        %v283 = vld [vmem:[%s241 + $0x68] sm:$0xff]
        %v284 = vld [vmem:[%s241 + $0x70] sm:$0xff]
        %v285 = vld [vmem:[%s241 + $0x78] sm:$0xff]
        %v286 = vld [vmem:[%s1] sm:$0xf]
        %v287 = vld [vmem:[%s1 + $0x4] sm:$0xf]
        %v288 = vld [vmem:[%s1 + $0x8] sm:$0xf]
        %v289 = vld [vmem:[%s1 + $0xc] sm:$0xf]
        %v290 = vld [vmem:[%s1 + $0x10] sm:$0xf]
        %v291 = vld [vmem:[%s1 + $0x14] sm:$0xf]
        %v292 = vld [vmem:[%s1 + $0x18] sm:$0xf]
        %v293 = vld [vmem:[%s1 + $0x1c] sm:$0xf]
        %v294 = vld [vmem:[%s1 + $0x20] sm:$0xf]
        %v295 = vld [vmem:[%s1 + $0x24] sm:$0xf]
        %v296 = vld [vmem:[%s1 + $0x28] sm:$0xf]
        %v297 = vld [vmem:[%s1 + $0x2c] sm:$0xf]
        %v298 = vld [vmem:[%s1 + $0x30] sm:$0xf]
        %v299 = vld [vmem:[%s1 + $0x34] sm:$0xf]
        %v300 = vld [vmem:[%s1 + $0x38] sm:$0xf]
        %v301 = vld [vmem:[%s1 + $0x3c] sm:$0xf]
        %v302 = vld [vmem:[%s1 + $0x40] sm:$0xf]
        %v303 = vld [vmem:[%s1 + $0x44] sm:$0xf]
        %v304 = vld [vmem:[%s1 + $0x48] sm:$0xf]
        %v305 = vld [vmem:[%s1 + $0x4c] sm:$0xf]
        %v306 = vld [vmem:[%s1 + $0x50] sm:$0xf]
        %v307 = vld [vmem:[%s1 + $0x54] sm:$0xf]
        %v308 = vld [vmem:[%s1 + $0x58] sm:$0xf]
        %v309 = vld [vmem:[%s1 + $0x5c] sm:$0xf]
        %v310 = vld [vmem:[%s1 + $0x60] sm:$0xf]
        %v311 = vld [vmem:[%s1 + $0x64] sm:$0xf]
        %v312 = vld [vmem:[%s1 + $0x68] sm:$0xf]
        %v313 = vld [vmem:[%s1 + $0x6c] sm:$0xf]
        %v314 = vld [vmem:[%s1 + $0x70] sm:$0xf]
        %v315 = vld [vmem:[%s1 + $0x74] sm:$0xf]
        %v316 = vld [vmem:[%s1 + $0x78] sm:$0xf]
        %v317 = vld [vmem:[%s1 + $0x7c] sm:$0xf]
        %v334 = vunpack.c.l.b16 %v270
        %v335 = vunpack.c.h.b16 %v270
        %v336 = vunpack.c.l.b16 %v271
        %v337 = vunpack.c.h.b16 %v271
        %v338 = vunpack.c.l.b16 %v272
        %v339 = vunpack.c.h.b16 %v272
        %v340 = vunpack.c.l.b16 %v273
        %v341 = vunpack.c.h.b16 %v273
        %v342 = vunpack.c.l.b16 %v274
        %v343 = vunpack.c.h.b16 %v274
        %v344 = vunpack.c.l.b16 %v275
        %v345 = vunpack.c.h.b16 %v275
        %v346 = vunpack.c.l.b16 %v276
        %v347 = vunpack.c.h.b16 %v276
        %v348 = vunpack.c.l.b16 %v277
        %v349 = vunpack.c.h.b16 %v277
        %v350 = vunpack.c.l.b16 %v278
        %v351 = vunpack.c.h.b16 %v278
        %v352 = vunpack.c.l.b16 %v279
        %v353 = vunpack.c.h.b16 %v279
        %v354 = vunpack.c.l.b16 %v280
        %v355 = vunpack.c.h.b16 %v280
        %v356 = vunpack.c.l.b16 %v281
        %v357 = vunpack.c.h.b16 %v281
        %v358 = vunpack.c.l.b16 %v282
        %v359 = vunpack.c.h.b16 %v282
        %v360 = vunpack.c.l.b16 %v283
        %v361 = vunpack.c.h.b16 %v283
        %v362 = vunpack.c.l.b16 %v284
        %v363 = vunpack.c.h.b16 %v284
        %v364 = vunpack.c.l.b16 %v285
        %v365 = vunpack.c.h.b16 %v285
        %v366 = vpack.c.b16 %v336, %v334
        %v367 = vpack.c.b16 %v337, %v335
        %v368 = vpack.c.b16 %v340, %v338
        %v369 = vpack.c.b16 %v341, %v339
        %v370 = vpack.c.b16 %v344, %v342
        %v371 = vpack.c.b16 %v345, %v343
        %v372 = vpack.c.b16 %v348, %v346
        %v373 = vpack.c.b16 %v349, %v347
        %v374 = vpack.c.b16 %v352, %v350
        %v375 = vpack.c.b16 %v353, %v351
        %v376 = vpack.c.b16 %v356, %v354
        %v377 = vpack.c.b16 %v357, %v355
        %v378 = vpack.c.b16 %v360, %v358
        %v379 = vpack.c.b16 %v361, %v359
        %v380 = vpack.c.b16 %v364, %v362
        %v381 = vpack.c.b16 %v365, %v363
        %v430 = vunpack.c.l.b16 %v286
        %v431 = vunpack.c.l.b16 %v287
        %v432 = vunpack.c.l.b16 %v288
        %v433 = vunpack.c.l.b16 %v289
        %v434 = vunpack.c.l.b16 %v290
        %v435 = vunpack.c.l.b16 %v291
        %v436 = vunpack.c.l.b16 %v292
        %v437 = vunpack.c.l.b16 %v293
        %v438 = vunpack.c.l.b16 %v294
        %v439 = vunpack.c.l.b16 %v295
        %v440 = vunpack.c.l.b16 %v296
        %v441 = vunpack.c.l.b16 %v297
        %v442 = vunpack.c.l.b16 %v298
        %v443 = vunpack.c.l.b16 %v299
        %v444 = vunpack.c.l.b16 %v300
        %v445 = vunpack.c.l.b16 %v301
        %v446 = vunpack.c.l.b16 %v302
        %v447 = vunpack.c.l.b16 %v303
        %v448 = vunpack.c.l.b16 %v304
        %v449 = vunpack.c.l.b16 %v305
        %v450 = vunpack.c.l.b16 %v306
        %v451 = vunpack.c.l.b16 %v307
        %v452 = vunpack.c.l.b16 %v308
        %v453 = vunpack.c.l.b16 %v309
        %v454 = vunpack.c.l.b16 %v310
        %v455 = vunpack.c.l.b16 %v311
        %v456 = vunpack.c.l.b16 %v312
        %v457 = vunpack.c.l.b16 %v313
        %v458 = vunpack.c.l.b16 %v314
        %v459 = vunpack.c.l.b16 %v315
        %v460 = vunpack.c.l.b16 %v316
        %v461 = vunpack.c.l.b16 %v317
        %v462 = vpack.c.b16 %v431, %v430
        %v463 = vpack.c.b16 %v433, %v432
        %v464 = vpack.c.b16 %v435, %v434
        %v465 = vpack.c.b16 %v437, %v436
        %v466 = vpack.c.b16 %v439, %v438
        %v467 = vpack.c.b16 %v441, %v440
        %v468 = vpack.c.b16 %v443, %v442
        %v469 = vpack.c.b16 %v445, %v444
        %v470 = vpack.c.b16 %v447, %v446
        %v471 = vpack.c.b16 %v449, %v448
        %v472 = vpack.c.b16 %v451, %v450
        %v473 = vpack.c.b16 %v453, %v452
        %v474 = vpack.c.b16 %v455, %v454
        %v475 = vpack.c.b16 %v457, %v456
        %v476 = vpack.c.b16 %v459, %v458
        %v477 = vpack.c.b16 %v461, %v460
        %494 = vmatprep.subr.bf16.mxu0 0
        %495 = vmatpush1.bf16.msra.mxu0 %v462
        %496 = vmatprep.subr.bf16.mxu0 0
        %497 = vmatpush1.bf16.msra.mxu0 %v463
        %498 = vmatprep.subr.bf16.mxu0 0
        %499 = vmatpush1.bf16.msra.mxu0 %v464
        %500 = vmatprep.subr.bf16.mxu0 0
        %501 = vmatpush1.bf16.msra.mxu0 %v465
        %502 = vmatprep.subr.bf16.mxu0 0
        %503 = vmatpush1.bf16.msra.mxu0 %v466
        %504 = vmatprep.subr.bf16.mxu0 0
        %505 = vmatpush1.bf16.msra.mxu0 %v467
        %506 = vmatprep.subr.bf16.mxu0 0
        %507 = vmatpush1.bf16.msra.mxu0 %v468
        %508 = vmatprep.subr.bf16.mxu0 0
        %509 = vmatpush1.bf16.msra.mxu0 %v469
        %510 = vmatprep.subr.bf16.mxu0 0
        %511 = vmatpush1.bf16.msra.mxu0 %v470
        %512 = vmatprep.subr.bf16.mxu0 0
        %513 = vmatpush1.bf16.msra.mxu0 %v471
        %514 = vmatprep.subr.bf16.mxu0 0
        %515 = vmatpush1.bf16.msra.mxu0 %v472
        %516 = vmatprep.subr.bf16.mxu0 0
        %517 = vmatpush1.bf16.msra.mxu0 %v473
        %518 = vmatprep.subr.bf16.mxu0 0
        %519 = vmatpush1.bf16.msra.mxu0 %v474
        %520 = vmatprep.subr.bf16.mxu0 0
        %521 = vmatpush1.bf16.msra.mxu0 %v475
        %522 = vmatprep.subr.bf16.mxu0 0
        %523 = vmatpush1.bf16.msra.mxu0 %v476
        %524 = vmatprep.subr.bf16.mxu0 0
        %525 = vmatpush1.bf16.msra.mxu0 %v477
        %526 = vmatprep.mubr.bf16.mxu0 %v367
        %527 = vmatmul.mubr.bf16.gmra.mrb[0].mxu0 %v366
        %v528 = vpop.f32.mrb[0].mxu0
        %v529 = vadd.f32 0.0, %v528
        %v530 = vpop.f32.mrb[0].mxu0
        %v531 = vpop.f32.mrb[0].mxu0
        %v532 = vadd.f32 0.0, %v531
        %v533 = vpop.f32.mrb[0].mxu0
        %534 = vmatprep.mubr.bf16.mxu0 %v369
        %535 = vmatmul.mubr.bf16.gmra.mrb[0].mxu0 %v368
        %v536 = vpop.f32.mrb[0].mxu0
        %v537 = vadd.f32 0.0, %v536
        %v538 = vpop.f32.mrb[0].mxu0
        %v539 = vpop.f32.mrb[0].mxu0
        %v540 = vadd.f32 0.0, %v539
        %v541 = vpop.f32.mrb[0].mxu0
        %542 = vmatprep.mubr.bf16.mxu0 %v371
        %543 = vmatmul.mubr.bf16.gmra.mrb[0].mxu0 %v370
        %v544 = vpop.f32.mrb[0].mxu0
        %v545 = vadd.f32 0.0, %v544
        %v546 = vpop.f32.mrb[0].mxu0
        %v547 = vpop.f32.mrb[0].mxu0
        %v548 = vadd.f32 0.0, %v547
        %v549 = vpop.f32.mrb[0].mxu0
        %550 = vmatprep.mubr.bf16.mxu0 %v373
        %551 = vmatmul.mubr.bf16.gmra.mrb[0].mxu0 %v372
        %v552 = vpop.f32.mrb[0].mxu0
        %v553 = vadd.f32 0.0, %v552
        %v554 = vpop.f32.mrb[0].mxu0
        %v555 = vpop.f32.mrb[0].mxu0
        %v556 = vadd.f32 0.0, %v555
        %v557 = vpop.f32.mrb[0].mxu0
        %558 = vmatprep.mubr.bf16.mxu0 %v375
        %559 = vmatmul.mubr.bf16.gmra.mrb[0].mxu0 %v374
        %v560 = vpop.f32.mrb[0].mxu0
        %v561 = vadd.f32 0.0, %v560
        %v562 = vpop.f32.mrb[0].mxu0
        %v563 = vpop.f32.mrb[0].mxu0
        %v564 = vadd.f32 0.0, %v563
        %v565 = vpop.f32.mrb[0].mxu0
        %566 = vmatprep.mubr.bf16.mxu0 %v377
        %567 = vmatmul.mubr.bf16.gmra.mrb[0].mxu0 %v376
        %v568 = vpop.f32.mrb[0].mxu0
        %v569 = vadd.f32 0.0, %v568
        %v570 = vpop.f32.mrb[0].mxu0
        %v571 = vpop.f32.mrb[0].mxu0
        %v572 = vadd.f32 0.0, %v571
        %v573 = vpop.f32.mrb[0].mxu0
        %574 = vmatprep.mubr.bf16.mxu0 %v379
        %575 = vmatmul.mubr.bf16.gmra.mrb[0].mxu0 %v378
        %v576 = vpop.f32.mrb[0].mxu0
        %v577 = vadd.f32 0.0, %v576
        %v578 = vpop.f32.mrb[0].mxu0
        %v579 = vpop.f32.mrb[0].mxu0
        %v580 = vadd.f32 0.0, %v579
        %v581 = vpop.f32.mrb[0].mxu0
        %582 = vmatprep.mubr.bf16.mxu0 %v381
        %583 = vmatmul.mubr.bf16.gmra.mrb[0].mxu0 %v380
        %v584 = vpop.f32.mrb[0].mxu0
        %v585 = vadd.f32 0.0, %v584
        %v586 = vpop.f32.mrb[0].mxu0
        %v587 = vpop.f32.mrb[0].mxu0
        %v588 = vadd.f32 0.0, %v587
        %v589 = vpop.f32.mrb[0].mxu0
        %590 = vdwg.mxu0
        %v591 = vmax.f32 %v529, %v545
        %v592 = vmax.f32 %v532, %v548
        %v593 = vmax.f32 %v537, %v553
        %v594 = vmax.f32 %v540, %v556
        %v595 = vmax.f32 %v561, %v577
        %v596 = vmax.f32 %v564, %v580
        %v597 = vmax.f32 %v569, %v585
        %v598 = vmax.f32 %v572, %v588
        %v599 = vmax.f32 %v591, %v595
        %v600 = vmax.f32 %v592, %v596
        %v601 = vmax.f32 %v593, %v597
        %v602 = vmax.f32 %v594, %v598
        %v603 = vld [vmem:[%s2] sm:$0x1]
        %v605 = vlaneseq
        %v606 = vshrl.u32 %v605, 7
        %v607 = vsub.s32 0, %v606
        %v608 = vrot.slane %v603, %v607
        %v610 = vadd.f32 %v599, %v608
        %v611 = vadd.f32 %v600, %v608
        %v612 = vadd.f32 %v601, %v608
        %v613 = vadd.f32 %v602, %v608
        %v614 = vmax.f32 %v610, 0.0
        %v615 = vmax.f32 %v611, 0.0
        %v616 = vmax.f32 %v612, 0.0
        %v617 = vmax.f32 %v613, 0.0
        %v618 = vpack.c.bf16 %v615, %v614
        %v619 = vpack.c.bf16 %v617, %v616
        %v622 = vunpack.c.l.b16 %v618
        %v623 = vunpack.c.h.b16 %v618
        %v624 = vunpack.c.l.b16 %v619
        %v625 = vunpack.c.h.b16 %v619
        %v626 = vpack.c.b16 %v622, %v622
        %v627 = vpack.c.b16 %v623, %v623
        %v628 = vpack.c.b16 %v624, %v624
        %v629 = vpack.c.b16 %v625, %v625
        %634 = vst [vmem:[%s267] sm:$0xf] %v626
        %635 = vst [vmem:[%s267 + $0x4] sm:$0xf] %v627
        %636 = vst [vmem:[%s267 + $0x8] sm:$0xf] %v628
        %637 = vst [vmem:[%s267 + $0xc] sm:$0xf] %v629
        %s638 = smul.u32 4, %s14
        %p639 = scmp.lt.s32.totalorder %s638, 7
        %s640 = scalar_select %p639, %s638, 7
        %s641 = smul.addr %s640, 4
        %s642 = scalar_lea.vmem %s3, %s641
        // Predicated region
        $region71: #{net_forward.4} parent=65 // pred_check
          %p643 = pneg %p100
        $region72: #{net_forward.4} parent=65 // pred_check_branch
          %645 = sbr.rel (%p643) target = $region74
        $region73: #{net_forward.4} parent=65 // pred_region
          %s646 = smul.u32 4, %s14
        $region74: #{net_forward.4} parent=65 // pred_fallthru
          _
      $region66: #{net_forward.4} parent=5 // pred_fallthru
        _
      %p647 = scmp.le.s32.totalorder 2, %s9
      // Predicated region
      $region75: #{net_forward.4} parent=5 // pred_check
        %p648 = pneg %p647
      $region76: #{net_forward.4} parent=5 // pred_check_branch
        %650 = sbr.rel (%p648) target = $region78
      $region77: #{net_forward.4} parent=5 // pred_region
        %s651 = ssub.s32 %s9, 2
        // Predicated region
        $region79: #{net_forward.4} parent=77 // pred_check
          %p652 = pneg %p106
        $region80: #{net_forward.4} parent=77 // pred_check_branch
          %654 = sbr.rel (%p652) target = $region82
        $region81: #{net_forward.4} parent=77 // pred_region
          %s655 = smul.u32 4, %s15
          %p656 = scmp.lt.s32.totalorder %s655, 7
          %s657 = scalar_select %p656, %s655, 7
          %s658 = smul.addr %s657, 4
          %s659 = scalar_lea.vmem %s3, %s658
        $region82: #{net_forward.4} parent=77 // pred_fallthru
          _
      $region78: #{net_forward.4} parent=5 // pred_fallthru
        _
    $region6: #{net_forward.4} parent=1 // loop_footer
      %s13 = sadd.s32 1, %s9
    $region7: #{net_forward.4} parent=1 // loop_footer_branch
      %8 = sbr.rel target = $region3
    $region8: #{net_forward.4} parent=1 // loop_exit
      _

// kernel: net_forward.5
$region0: #{net_forward.5}
  #allocation0 [shape = 'u32[]', space=smem, size = 0x4, offset = 0x4, fixed_abs, tag = 'smem constant byte address 0x4 - core index']
  #allocation1 [shape = 'u32[144,128]{1,0:T(1,128)}', space=vmem, size = 0x12000, scoped, tag = 'internal scratch']
  %s0 = inlined_call_operand.vmem [shape: bf16[16,512], index: 0, kind: input, shape index: {}]
  %s1 = inlined_call_operand.vmem [shape: bf16[512,128], index: 1, kind: input, shape index: {}]
  %s2 = inlined_call_operand.vmem [shape: f32[1,128], index: 2, kind: input, shape index: {}]
  %s3 = inlined_call_operand.vmem [shape: bf16[128,128], index: 3, kind: input, shape index: {}]
  %s4 = inlined_call_operand.vmem [shape: f32[1,128], index: 4, kind: input, shape index: {}]
  %s5 = inlined_call_operand.vmem [shape: bf16[128,128], index: 5, kind: input, shape index: {}]
  %s6 = inlined_call_operand.vmem [shape: f32[1,128], index: 6, kind: input, shape index: {}]
  %s7 = inlined_call_operand.vmem [shape: f32[16,128], index: 7, kind: output, shape index: {}]
  %s8 = sld [smem:[#allocation0]]
  $region61: #{net_forward.5} parent=0
    _
  %s10 = ssub.s32 1, %s8
  %s11 = scalar_select 0, %s10, %s8
  loop: start=0, step=1, limit=4
  $region2: #{net_forward.5} parent=0 // loop_pre_header
    _
  $region3: #{net_forward.5} parent=0 // loop_header
    %s13 = sphi 0, %s17
    %p14 = scmp.ge.s32.totalorder %s13, 4
    %s23 = sphi 0, %s25
    %s26 = sphi 0, %s23
    %s27 = sphi 0, %s26
    %s43 = sphi 0, %s27
    %s47 = sphi 0, %s47
    %s49 = sphi 0, %s47
    %s50 = sphi 0, %s49
    %s64 = sphi 0, %s50
    %s68 = sphi 0, %s68
    %s70 = sphi 0, %s68
    %s71 = sphi 0, %s70
    %s85 = sphi 0, %s71
    %s89 = sphi 0, %s89
    %s91 = sphi 0, %s89
    %s92 = sphi 0, %s91
    %s106 = sphi 0, %s92
    %s110 = sphi 0, %s110
    %s112 = sphi 0, %s110
    %s113 = sphi 0, %s112
    %s127 = sphi 0, %s113
    %s131 = sphi 0, %s131
    %s133 = sphi 0, %s131
    %s134 = sphi 0, %s133
    %s148 = sphi 0, %s134
    %s152 = sphi 0, %s152
    %s154 = sphi 0, %s152
    %s155 = sphi 0, %s154
    %s169 = sphi 0, %s155
    %s175 = sphi 0, %s177
    %s178 = sphi 0, %s175
    %s179 = sphi 0, %s178
    %s195 = sphi 0, %s179
  $region4: #{net_forward.5} parent=0 // loop_header_branch
    %16 = sbr.rel (%p14) target = $region8
  $region5: #{net_forward.5} parent=0 // loop_body
    %s18 = ssub.s32 %s13, 1
    %s19 = ssub.s32 %s13, 2
    %s20 = sadd.s32 %s13, 1
    %s21 = ssub.s32 %s13, %s20
    %p22 = scmp.eq.s32.totalorder %s21, 0
    %s24 = sadd.s32 %s23, 1
    %s25 = scalar_select %p22, %s23, %s24
    %p28 = pneg %p22
    %p29 = scmp.eq.s32.totalorder %s13, 1
    %p30 = por %p28, %p29
    %p31 = scmp.ne.s32.totalorder %s23, %s26
    %p32 = scmp.eq.s32.totalorder %s13, 0
    %p33 = por %p31, %p32
    %p34 = scmp.ne.s32.totalorder %s23, %s26
    %p35 = scmp.eq.s32.totalorder %s18, 1
    %p36 = por %p34, %p35
    %p37 = scmp.ne.s32.totalorder %s26, %s27
    %p38 = scmp.eq.s32.totalorder %s18, 0
    %p39 = por %p37, %p38
    %p40 = scmp.ne.s32.totalorder %s26, %s27
    %p41 = scmp.eq.s32.totalorder %s19, 1
    %p42 = por %p40, %p41
    %p44 = scmp.ne.s32.totalorder %s27, %s43
    %p45 = scmp.eq.s32.totalorder %s19, 0
    %p46 = por %p44, %p45
    %s48 = sadd.s32 %s47, 1
    %p51 = scmp.eq.s32.totalorder %s13, 1
    %p52 = scmp.ne.s32.totalorder %s47, %s49
    %p53 = scmp.eq.s32.totalorder %s13, 0
    %p54 = por %p52, %p53
    %p55 = scmp.ne.s32.totalorder %s47, %s49
    %p56 = scmp.eq.s32.totalorder %s18, 1
    %p57 = por %p55, %p56
    %p58 = scmp.ne.s32.totalorder %s49, %s50
    %p59 = scmp.eq.s32.totalorder %s18, 0
    %p60 = por %p58, %p59
    %p61 = scmp.ne.s32.totalorder %s49, %s50
    %p62 = scmp.eq.s32.totalorder %s19, 1
    %p63 = por %p61, %p62
    %p65 = scmp.ne.s32.totalorder %s50, %s64
    %p66 = scmp.eq.s32.totalorder %s19, 0
    %p67 = por %p65, %p66
    %s69 = sadd.s32 %s68, 1
    %p72 = scmp.eq.s32.totalorder %s13, 1
    %p73 = scmp.ne.s32.totalorder %s68, %s70
    %p74 = scmp.eq.s32.totalorder %s13, 0
    %p75 = por %p73, %p74
    %p76 = scmp.ne.s32.totalorder %s68, %s70
    %p77 = scmp.eq.s32.totalorder %s18, 1
    %p78 = por %p76, %p77
    %p79 = scmp.ne.s32.totalorder %s70, %s71
    %p80 = scmp.eq.s32.totalorder %s18, 0
    %p81 = por %p79, %p80
    %p82 = scmp.ne.s32.totalorder %s70, %s71
    %p83 = scmp.eq.s32.totalorder %s19, 1
    %p84 = por %p82, %p83
    %p86 = scmp.ne.s32.totalorder %s71, %s85
    %p87 = scmp.eq.s32.totalorder %s19, 0
    %p88 = por %p86, %p87
    %s90 = sadd.s32 %s89, 1
    %p93 = scmp.eq.s32.totalorder %s13, 1
    %p94 = scmp.ne.s32.totalorder %s89, %s91
    %p95 = scmp.eq.s32.totalorder %s13, 0
    %p96 = por %p94, %p95
    %p97 = scmp.ne.s32.totalorder %s89, %s91
    %p98 = scmp.eq.s32.totalorder %s18, 1
    %p99 = por %p97, %p98
    %p100 = scmp.ne.s32.totalorder %s91, %s92
    %p101 = scmp.eq.s32.totalorder %s18, 0
    %p102 = por %p100, %p101
    %p103 = scmp.ne.s32.totalorder %s91, %s92
    %p104 = scmp.eq.s32.totalorder %s19, 1
    %p105 = por %p103, %p104
    %p107 = scmp.ne.s32.totalorder %s92, %s106
    %p108 = scmp.eq.s32.totalorder %s19, 0
    %p109 = por %p107, %p108
    %s111 = sadd.s32 %s110, 1
    %p114 = scmp.eq.s32.totalorder %s13, 1
    %p115 = scmp.ne.s32.totalorder %s110, %s112
    %p116 = scmp.eq.s32.totalorder %s13, 0
    %p117 = por %p115, %p116
    %p118 = scmp.ne.s32.totalorder %s110, %s112
    %p119 = scmp.eq.s32.totalorder %s18, 1
    %p120 = por %p118, %p119
    %p121 = scmp.ne.s32.totalorder %s112, %s113
    %p122 = scmp.eq.s32.totalorder %s18, 0
    %p123 = por %p121, %p122
    %p124 = scmp.ne.s32.totalorder %s112, %s113
    %p125 = scmp.eq.s32.totalorder %s19, 1
    %p126 = por %p124, %p125
    %p128 = scmp.ne.s32.totalorder %s113, %s127
    %p129 = scmp.eq.s32.totalorder %s19, 0
    %p130 = por %p128, %p129
    %s132 = sadd.s32 %s131, 1
    %p135 = scmp.eq.s32.totalorder %s13, 1
    %p136 = scmp.ne.s32.totalorder %s131, %s133
    %p137 = scmp.eq.s32.totalorder %s13, 0
    %p138 = por %p136, %p137
    %p139 = scmp.ne.s32.totalorder %s131, %s133
    %p140 = scmp.eq.s32.totalorder %s18, 1
    %p141 = por %p139, %p140
    %p142 = scmp.ne.s32.totalorder %s133, %s134
    %p143 = scmp.eq.s32.totalorder %s18, 0
    %p144 = por %p142, %p143
    %p145 = scmp.ne.s32.totalorder %s133, %s134
    %p146 = scmp.eq.s32.totalorder %s19, 1
    %p147 = por %p145, %p146
    %p149 = scmp.ne.s32.totalorder %s134, %s148
    %p150 = scmp.eq.s32.totalorder %s19, 0
    %p151 = por %p149, %p150
    %s153 = sadd.s32 %s152, 1
    %p156 = scmp.eq.s32.totalorder %s13, 1
    %p157 = scmp.ne.s32.totalorder %s152, %s154
    %p158 = scmp.eq.s32.totalorder %s13, 0
    %p159 = por %p157, %p158
    %p160 = scmp.ne.s32.totalorder %s152, %s154
    %p161 = scmp.eq.s32.totalorder %s18, 1
    %p162 = por %p160, %p161
    %p163 = scmp.ne.s32.totalorder %s154, %s155
    %p164 = scmp.eq.s32.totalorder %s18, 0
    %p165 = por %p163, %p164
    %p166 = scmp.ne.s32.totalorder %s154, %s155
    %p167 = scmp.eq.s32.totalorder %s19, 1
    %p168 = por %p166, %p167
    %p170 = scmp.ne.s32.totalorder %s155, %s169
    %p171 = scmp.eq.s32.totalorder %s19, 0
    %p172 = por %p170, %p171
    %s173 = ssub.s32 %s13, %s20
    %p174 = scmp.eq.s32.totalorder %s173, 0
    %s176 = sadd.s32 %s175, 1
    %s177 = scalar_select %p174, %s175, %s176
    %p180 = pneg %p174
    %p181 = scmp.eq.s32.totalorder %s13, 1
    %p182 = por %p180, %p181
    %p183 = scmp.ne.s32.totalorder %s175, %s178
    %p184 = scmp.eq.s32.totalorder %s13, 0
    %p185 = por %p183, %p184
    %p186 = scmp.ne.s32.totalorder %s175, %s178
    %p187 = scmp.eq.s32.totalorder %s18, 1
    %p188 = por %p186, %p187
    %p189 = scmp.ne.s32.totalorder %s178, %s179
    %p190 = scmp.eq.s32.totalorder %s18, 0
    %p191 = por %p189, %p190
    %p192 = scmp.ne.s32.totalorder %s178, %s179
    %p193 = scmp.eq.s32.totalorder %s19, 1
    %p194 = por %p192, %p193
    %p196 = scmp.ne.s32.totalorder %s179, %s195
    %p197 = scmp.eq.s32.totalorder %s19, 0
    %p198 = por %p196, %p197
    %p199 = scmp.le.s32.totalorder 1, %s13
    %p200 = scmp.lt.s32.totalorder %s13, 3
    %p201 = pnand %p199, %p200
    %p202 = pneg %p201
    // Predicated region
    $region9: #{net_forward.5} parent=5 // pred_check
      _
    $region10: #{net_forward.5} parent=5 // pred_check_branch
      %204 = sbr.rel (%p201) target = $region12
    $region11: #{net_forward.5} parent=5 // pred_region
      %s205 = ssub.s32 %s13, 1
      // Predicated region
      $region13: #{net_forward.5} parent=11 // pred_check
        %p206 = pneg %p60
      $region14: #{net_forward.5} parent=11 // pred_check_branch
        %208 = sbr.rel (%p206) target = $region16
      $region15: #{net_forward.5} parent=11 // pred_region
        _
      $region16: #{net_forward.5} parent=11 // pred_fallthru
        _
      // Predicated region
      $region17: #{net_forward.5} parent=11 // pred_check
        %p209 = pneg %p81
      $region18: #{net_forward.5} parent=11 // pred_check_branch
        %211 = sbr.rel (%p209) target = $region20
      $region19: #{net_forward.5} parent=11 // pred_region
        _
      $region20: #{net_forward.5} parent=11 // pred_fallthru
        _
      // Predicated region
      $region21: #{net_forward.5} parent=11 // pred_check
        %p212 = pneg %p102
      $region22: #{net_forward.5} parent=11 // pred_check_branch
        %214 = sbr.rel (%p212) target = $region24
      $region23: #{net_forward.5} parent=11 // pred_region
        _
      $region24: #{net_forward.5} parent=11 // pred_fallthru
        _
      // Predicated region
      $region25: #{net_forward.5} parent=11 // pred_check
        %p215 = pneg %p123
      $region26: #{net_forward.5} parent=11 // pred_check_branch
        %217 = sbr.rel (%p215) target = $region28
      $region27: #{net_forward.5} parent=11 // pred_region
        _
      $region28: #{net_forward.5} parent=11 // pred_fallthru
        _
      // Predicated region
      $region29: #{net_forward.5} parent=11 // pred_check
        %p218 = pneg %p144
      $region30: #{net_forward.5} parent=11 // pred_check_branch
        %220 = sbr.rel (%p218) target = $region32
      $region31: #{net_forward.5} parent=11 // pred_region
        _
      $region32: #{net_forward.5} parent=11 // pred_fallthru
        _
      // Predicated region
      $region33: #{net_forward.5} parent=11 // pred_check
        %p221 = pneg %p165
      $region34: #{net_forward.5} parent=11 // pred_check_branch
        %223 = sbr.rel (%p221) target = $region36
      $region35: #{net_forward.5} parent=11 // pred_region
        _
      $region36: #{net_forward.5} parent=11 // pred_fallthru
        _
    $region12: #{net_forward.5} parent=5 // pred_fallthru
      _
    %p224 = scmp.lt.s32.totalorder %s13, 2
    // Predicated region
    $region37: #{net_forward.5} parent=5 // pred_check
      %p225 = pneg %p224
    $region38: #{net_forward.5} parent=5 // pred_check_branch
      %227 = sbr.rel (%p225) target = $region40
    $region39: #{net_forward.5} parent=5 // pred_region
      // Predicated region
      $region41: #{net_forward.5} parent=39 // pred_check
        %p228 = pneg %p33
      $region42: #{net_forward.5} parent=39 // pred_check_branch
        %230 = sbr.rel (%p228) target = $region44
      $region43: #{net_forward.5} parent=39 // pred_region
        %p231 = scmp.lt.s32.totalorder %s13, 1
        %s232 = scalar_select %p231, %s13, 1
        %s233 = smul.addr %s232, 4
        %s234 = smul.addr %s233, 4
        %s235 = scalar_lea.vmem %s0, %s234
      $region44: #{net_forward.5} parent=39 // pred_fallthru
        _
    $region40: #{net_forward.5} parent=5 // pred_fallthru
      _
    %p236 = scmp.le.s32.totalorder 1, %s13
    %p237 = scmp.lt.s32.totalorder %s13, 3
    %p238 = pnand %p236, %p237
    %p239 = pneg %p238
    // Predicated region
    $region45: #{net_forward.5} parent=5 // pred_check
      _
    $region46: #{net_forward.5} parent=5 // pred_check_branch
      %241 = sbr.rel (%p238) target = $region48
    $region47: #{net_forward.5} parent=5 // pred_region
      %s242 = ssub.s32 %s13, 1
      %p243 = scmp.lt.s32.totalorder %s18, 1
      %s244 = scalar_select %p243, %s18, 1
      %s245 = smul.addr %s244, 4
      %s246 = smul.addr %s245, 4
      %s247 = scalar_lea.vmem %s0, %s246
      %p248 = pneg %p39
      %p249 = pneg %p36
      %p250 = pneg %p60
      %p251 = pneg %p57
      %p252 = pneg %p81
      %p253 = pneg %p78
      %p254 = pneg %p102
      %p255 = pneg %p99
      %p256 = pneg %p123
      %p257 = pneg %p120
      %p258 = pneg %p144
      %p259 = pneg %p141
      %p260 = pneg %p165
      %p261 = pneg %p162
      %p262 = pneg %p191
      %p263 = pneg %p188
      %p264 = scmp.lt.s32.totalorder %s18, 1
      %s265 = scalar_select %p264, %s18, 1
      %s266 = smul.addr %s265, 8
      %s267 = scalar_lea.vmem %s7, %s266
      %p268 = scmp.lt.s32.totalorder %s18, 1
      %s269 = scalar_select %p268, %s18, 1
      %s270 = smul.addr %s269, 4
      %s271 = smul.addr %s270, 4
      %s272 = scalar_lea.vmem %s0, %s271
      %p273 = scmp.lt.s32.totalorder %s18, 1
      %s274 = scalar_select %p273, %s18, 1
      %s275 = smul.addr %s274, 8
      %s276 = scalar_lea.vmem %s7, %s275
      %v278 = vld [vmem:[%s272] sm:$0xff]
      %v279 = vld [vmem:[%s272 + $0x8] sm:$0xff]
      %v280 = vld [vmem:[%s1] sm:$0xf]
      %v281 = vld [vmem:[%s1 + $0x4] sm:$0xf]
      %v282 = vld [vmem:[%s1 + $0x8] sm:$0xf]
      %v283 = vld [vmem:[%s1 + $0xc] sm:$0xf]
      %v284 = vld [vmem:[%s1 + $0x10] sm:$0xf]
      %v285 = vld [vmem:[%s1 + $0x14] sm:$0xf]
      %v286 = vld [vmem:[%s1 + $0x18] sm:$0xf]
      %v287 = vld [vmem:[%s1 + $0x1c] sm:$0xf]
      %v288 = vld [vmem:[%s1 + $0x20] sm:$0xf]
      %v289 = vld [vmem:[%s1 + $0x24] sm:$0xf]
      %v290 = vld [vmem:[%s1 + $0x28] sm:$0xf]
      %v291 = vld [vmem:[%s1 + $0x2c] sm:$0xf]
      %v292 = vld [vmem:[%s1 + $0x30] sm:$0xf]
      %v293 = vld [vmem:[%s1 + $0x34] sm:$0xf]
      %v294 = vld [vmem:[%s1 + $0x38] sm:$0xf]
      %v295 = vld [vmem:[%s1 + $0x3c] sm:$0xf]
      %v296 = vld [vmem:[%s1 + $0x40] sm:$0xf]
      %v297 = vld [vmem:[%s1 + $0x44] sm:$0xf]
      %v298 = vld [vmem:[%s1 + $0x48] sm:$0xf]
      %v299 = vld [vmem:[%s1 + $0x4c] sm:$0xf]
      %v300 = vld [vmem:[%s1 + $0x50] sm:$0xf]
      %v301 = vld [vmem:[%s1 + $0x54] sm:$0xf]
      %v302 = vld [vmem:[%s1 + $0x58] sm:$0xf]
      %v303 = vld [vmem:[%s1 + $0x5c] sm:$0xf]
      %v304 = vld [vmem:[%s1 + $0x60] sm:$0xf]
      %v305 = vld [vmem:[%s1 + $0x64] sm:$0xf]
      %v306 = vld [vmem:[%s1 + $0x68] sm:$0xf]
      %v307 = vld [vmem:[%s1 + $0x6c] sm:$0xf]
      %v308 = vld [vmem:[%s1 + $0x70] sm:$0xf]
      %v309 = vld [vmem:[%s1 + $0x74] sm:$0xf]
      %v310 = vld [vmem:[%s1 + $0x78] sm:$0xf]
      %v311 = vld [vmem:[%s1 + $0x7c] sm:$0xf]
      %v312 = vld [vmem:[%s1 + $0x80] sm:$0xf]
      %v313 = vld [vmem:[%s1 + $0x84] sm:$0xf]
      %v314 = vld [vmem:[%s1 + $0x88] sm:$0xf]
      %v315 = vld [vmem:[%s1 + $0x8c] sm:$0xf]
      %v316 = vld [vmem:[%s1 + $0x90] sm:$0xf]
      %v317 = vld [vmem:[%s1 + $0x94] sm:$0xf]
      %v318 = vld [vmem:[%s1 + $0x98] sm:$0xf]
      %v319 = vld [vmem:[%s1 + $0x9c] sm:$0xf]
      %v320 = vld [vmem:[%s1 + $0xa0] sm:$0xf]
      %v321 = vld [vmem:[%s1 + $0xa4] sm:$0xf]
      %v322 = vld [vmem:[%s1 + $0xa8] sm:$0xf]
      %v323 = vld [vmem:[%s1 + $0xac] sm:$0xf]
      %v324 = vld [vmem:[%s1 + $0xb0] sm:$0xf]
      %v325 = vld [vmem:[%s1 + $0xb4] sm:$0xf]
      %v326 = vld [vmem:[%s1 + $0xb8] sm:$0xf]
      %v327 = vld [vmem:[%s1 + $0xbc] sm:$0xf]
      %v328 = vld [vmem:[%s1 + $0xc0] sm:$0xf]
      %v329 = vld [vmem:[%s1 + $0xc4] sm:$0xf]
      %v330 = vld [vmem:[%s1 + $0xc8] sm:$0xf]
      %v331 = vld [vmem:[%s1 + $0xcc] sm:$0xf]
      %v332 = vld [vmem:[%s1 + $0xd0] sm:$0xf]
      %v333 = vld [vmem:[%s1 + $0xd4] sm:$0xf]
      %v334 = vld [vmem:[%s1 + $0xd8] sm:$0xf]
      %v335 = vld [vmem:[%s1 + $0xdc] sm:$0xf]
      %v336 = vld [vmem:[%s1 + $0xe0] sm:$0xf]
      %v337 = vld [vmem:[%s1 + $0xe4] sm:$0xf]
      %v338 = vld [vmem:[%s1 + $0xe8] sm:$0xf]
      %v339 = vld [vmem:[%s1 + $0xec] sm:$0xf]
      %v340 = vld [vmem:[%s1 + $0xf0] sm:$0xf]
      %v341 = vld [vmem:[%s1 + $0xf4] sm:$0xf]
      %v342 = vld [vmem:[%s1 + $0xf8] sm:$0xf]
      %v343 = vld [vmem:[%s1 + $0xfc] sm:$0xf]
      %v344 = vld [vmem:[%s2] sm:$0x1]
      %v346 = vlaneseq
      %v347 = vshrl.u32 %v346, 7
      %v348 = vsub.s32 0, %v347
      %v349 = vrot.slane %v344, %v348
      %v353 = vunpack.c.l.b16 %v278
      %v354 = vunpack.c.h.b16 %v278
      %v355 = vunpack.c.l.b16 %v279
      %v356 = vunpack.c.h.b16 %v279
      %v357 = vpack.c.b16 %v353, %v353
      %v358 = vpack.c.b16 %v354, %v354
      %v359 = vpack.c.b16 %v355, %v355
      %v360 = vpack.c.b16 %v356, %v356
      %v429 = vunpack.c.l.b16 %v280
      %v430 = vunpack.c.l.b16 %v281
      %v431 = vunpack.c.l.b16 %v282
      %v432 = vunpack.c.l.b16 %v283
      %v433 = vunpack.c.l.b16 %v284
      %v434 = vunpack.c.l.b16 %v285
      %v435 = vunpack.c.l.b16 %v286
      %v436 = vunpack.c.l.b16 %v287
      %v437 = vunpack.c.l.b16 %v288
      %v438 = vunpack.c.l.b16 %v289
      %v439 = vunpack.c.l.b16 %v290
      %v440 = vunpack.c.l.b16 %v291
      %v441 = vunpack.c.l.b16 %v292
      %v442 = vunpack.c.l.b16 %v293
      %v443 = vunpack.c.l.b16 %v294
      %v444 = vunpack.c.l.b16 %v295
      %v445 = vunpack.c.l.b16 %v296
      %v446 = vunpack.c.l.b16 %v297
      %v447 = vunpack.c.l.b16 %v298
      %v448 = vunpack.c.l.b16 %v299
      %v449 = vunpack.c.l.b16 %v300
      %v450 = vunpack.c.l.b16 %v301
      %v451 = vunpack.c.l.b16 %v302
      %v452 = vunpack.c.l.b16 %v303
      %v453 = vunpack.c.l.b16 %v304
      %v454 = vunpack.c.l.b16 %v305
      %v455 = vunpack.c.l.b16 %v306
      %v456 = vunpack.c.l.b16 %v307
      %v457 = vunpack.c.l.b16 %v308
      %v458 = vunpack.c.l.b16 %v309
      %v459 = vunpack.c.l.b16 %v310
      %v460 = vunpack.c.l.b16 %v311
      %v461 = vunpack.c.l.b16 %v312
      %v462 = vunpack.c.l.b16 %v313
      %v463 = vunpack.c.l.b16 %v314
      %v464 = vunpack.c.l.b16 %v315
      %v465 = vunpack.c.l.b16 %v316
      %v466 = vunpack.c.l.b16 %v317
      %v467 = vunpack.c.l.b16 %v318
      %v468 = vunpack.c.l.b16 %v319
      %v469 = vunpack.c.l.b16 %v320
      %v470 = vunpack.c.l.b16 %v321
      %v471 = vunpack.c.l.b16 %v322
      %v472 = vunpack.c.l.b16 %v323
      %v473 = vunpack.c.l.b16 %v324
      %v474 = vunpack.c.l.b16 %v325
      %v475 = vunpack.c.l.b16 %v326
      %v476 = vunpack.c.l.b16 %v327
      %v477 = vunpack.c.l.b16 %v328
      %v478 = vunpack.c.l.b16 %v329
      %v479 = vunpack.c.l.b16 %v330
      %v480 = vunpack.c.l.b16 %v331
      %v481 = vunpack.c.l.b16 %v332
      %v482 = vunpack.c.l.b16 %v333
      %v483 = vunpack.c.l.b16 %v334
      %v484 = vunpack.c.l.b16 %v335
      %v485 = vunpack.c.l.b16 %v336
      %v486 = vunpack.c.l.b16 %v337
      %v487 = vunpack.c.l.b16 %v338
      %v488 = vunpack.c.l.b16 %v339
      %v489 = vunpack.c.l.b16 %v340
      %v490 = vunpack.c.l.b16 %v341
      %v491 = vunpack.c.l.b16 %v342
      %v492 = vunpack.c.l.b16 %v343
      %v493 = vpack.c.b16 %v430, %v429
      %v494 = vpack.c.b16 %v432, %v431
      %v495 = vpack.c.b16 %v434, %v433
      %v496 = vpack.c.b16 %v436, %v435
      %v497 = vpack.c.b16 %v438, %v437
      %v498 = vpack.c.b16 %v440, %v439
      %v499 = vpack.c.b16 %v442, %v441
      %v500 = vpack.c.b16 %v444, %v443
      %v501 = vpack.c.b16 %v446, %v445
      %v502 = vpack.c.b16 %v448, %v447
      %v503 = vpack.c.b16 %v450, %v449
      %v504 = vpack.c.b16 %v452, %v451
      %v505 = vpack.c.b16 %v454, %v453
      %v506 = vpack.c.b16 %v456, %v455
      %v507 = vpack.c.b16 %v458, %v457
      %v508 = vpack.c.b16 %v460, %v459
      %v509 = vpack.c.b16 %v462, %v461
      %v510 = vpack.c.b16 %v464, %v463
      %v511 = vpack.c.b16 %v466, %v465
      %v512 = vpack.c.b16 %v468, %v467
      %v513 = vpack.c.b16 %v470, %v469
      %v514 = vpack.c.b16 %v472, %v471
      %v515 = vpack.c.b16 %v474, %v473
      %v516 = vpack.c.b16 %v476, %v475
      %v517 = vpack.c.b16 %v478, %v477
      %v518 = vpack.c.b16 %v480, %v479
      %v519 = vpack.c.b16 %v482, %v481
      %v520 = vpack.c.b16 %v484, %v483
      %v521 = vpack.c.b16 %v486, %v485
      %v522 = vpack.c.b16 %v488, %v487
      %v523 = vpack.c.b16 %v490, %v489
      %v524 = vpack.c.b16 %v492, %v491
      %557 = vmatprep.subr.bf16.mxu0 0
      %558 = vmatpush1.bf16.msra.mxu0 %v493
      %559 = vmatprep.subr.bf16.mxu0 0
      %560 = vmatpush1.bf16.msra.mxu0 %v494
      %561 = vmatprep.subr.bf16.mxu0 0
      %562 = vmatpush1.bf16.msra.mxu0 %v495
      %563 = vmatprep.subr.bf16.mxu0 0
      %564 = vmatpush1.bf16.msra.mxu0 %v496
      %565 = vmatprep.subr.bf16.mxu0 0
      %566 = vmatpush1.bf16.msra.mxu0 %v497
      %567 = vmatprep.subr.bf16.mxu0 0
      %568 = vmatpush1.bf16.msra.mxu0 %v498
      %569 = vmatprep.subr.bf16.mxu0 0
      %570 = vmatpush1.bf16.msra.mxu0 %v499
      %571 = vmatprep.subr.bf16.mxu0 0
      %572 = vmatpush1.bf16.msra.mxu0 %v500
      %573 = vmatprep.subr.bf16.mxu0 0
      %574 = vmatpush1.bf16.msra.mxu0 %v501
      %575 = vmatprep.subr.bf16.mxu0 0
      %576 = vmatpush1.bf16.msra.mxu0 %v502
      %577 = vmatprep.subr.bf16.mxu0 0
      %578 = vmatpush1.bf16.msra.mxu0 %v503
      %579 = vmatprep.subr.bf16.mxu0 0
      %580 = vmatpush1.bf16.msra.mxu0 %v504
      %581 = vmatprep.subr.bf16.mxu0 0
      %582 = vmatpush1.bf16.msra.mxu0 %v505
      %583 = vmatprep.subr.bf16.mxu0 0
      %584 = vmatpush1.bf16.msra.mxu0 %v506
      %585 = vmatprep.subr.bf16.mxu0 0
      %586 = vmatpush1.bf16.msra.mxu0 %v507
      %587 = vmatprep.subr.bf16.mxu0 0
      %588 = vmatpush1.bf16.msra.mxu0 %v508
      %589 = vmatprep.mubr.bf16.mxu0 %v358
      %590 = vmatmul.mubr.bf16.gmra.mrb[0].mxu0 %v357
      %v591 = vpop.f32.mrb[0].mxu0
      %v592 = vadd.f32 %v349, %v591
      %v593 = vpop.f32.mrb[0].mxu0
      %v594 = vpop.f32.mrb[0].mxu0
      %v595 = vpop.f32.mrb[0].mxu0
      %596 = vdwg.mxu0
      %597 = vmatprep.subr.bf16.mxu0 0
      %598 = vmatpush1.bf16.msra.mxu0 %v509
      %599 = vmatprep.subr.bf16.mxu0 0
      %600 = vmatpush1.bf16.msra.mxu0 %v510
      %601 = vmatprep.subr.bf16.mxu0 0
      %602 = vmatpush1.bf16.msra.mxu0 %v511
      %603 = vmatprep.subr.bf16.mxu0 0
      %604 = vmatpush1.bf16.msra.mxu0 %v512
      %605 = vmatprep.subr.bf16.mxu0 0
      %606 = vmatpush1.bf16.msra.mxu0 %v513
      %607 = vmatprep.subr.bf16.mxu0 0
      %608 = vmatpush1.bf16.msra.mxu0 %v514
      %609 = vmatprep.subr.bf16.mxu0 0
      %610 = vmatpush1.bf16.msra.mxu0 %v515
      %611 = vmatprep.subr.bf16.mxu0 0
      %612 = vmatpush1.bf16.msra.mxu0 %v516
      %613 = vmatprep.subr.bf16.mxu0 0
      %614 = vmatpush1.bf16.msra.mxu0 %v517
      %615 = vmatprep.subr.bf16.mxu0 0
      %616 = vmatpush1.bf16.msra.mxu0 %v518
      %617 = vmatprep.subr.bf16.mxu0 0
      %618 = vmatpush1.bf16.msra.mxu0 %v519
      %619 = vmatprep.subr.bf16.mxu0 0
      %620 = vmatpush1.bf16.msra.mxu0 %v520
      %621 = vmatprep.subr.bf16.mxu0 0
      %622 = vmatpush1.bf16.msra.mxu0 %v521
      %623 = vmatprep.subr.bf16.mxu0 0
      %624 = vmatpush1.bf16.msra.mxu0 %v522
      %625 = vmatprep.subr.bf16.mxu0 0
      %626 = vmatpush1.bf16.msra.mxu0 %v523
      %627 = vmatprep.subr.bf16.mxu0 0
      %628 = vmatpush1.bf16.msra.mxu0 %v524
      %629 = vmatprep.mubr.bf16.mxu0 %v360
      %630 = vmatmul.mubr.bf16.gmra.mrb[0].mxu0 %v359
      %v631 = vpop.f32.mrb[0].mxu0
      %v632 = vadd.f32 %v592, %v631
      %v633 = vpop.f32.mrb[0].mxu0
      %v634 = vpop.f32.mrb[0].mxu0
      %v635 = vpop.f32.mrb[0].mxu0
      %636 = vdwg.mxu0
      %v637 = vmax.f32 %v632, 0.0
      %v638 = vpack.c.bf16 %v637, %v637
      %v639 = vld [vmem:[%s3] sm:$0xf]
      %v640 = vld [vmem:[%s3 + $0x4] sm:$0xf]
      %v641 = vld [vmem:[%s3 + $0x8] sm:$0xf]
      %v642 = vld [vmem:[%s3 + $0xc] sm:$0xf]
      %v643 = vld [vmem:[%s3 + $0x10] sm:$0xf]
      %v644 = vld [vmem:[%s3 + $0x14] sm:$0xf]
      %v645 = vld [vmem:[%s3 + $0x18] sm:$0xf]
      %v646 = vld [vmem:[%s3 + $0x1c] sm:$0xf]
      %v647 = vld [vmem:[%s3 + $0x20] sm:$0xf]
      %v648 = vld [vmem:[%s3 + $0x24] sm:$0xf]
      %v649 = vld [vmem:[%s3 + $0x28] sm:$0xf]
      %v650 = vld [vmem:[%s3 + $0x2c] sm:$0xf]
      %v651 = vld [vmem:[%s3 + $0x30] sm:$0xf]
      %v652 = vld [vmem:[%s3 + $0x34] sm:$0xf]
      %v653 = vld [vmem:[%s3 + $0x38] sm:$0xf]
      %v654 = vld [vmem:[%s3 + $0x3c] sm:$0xf]
      %v655 = vld [vmem:[%s4] sm:$0x1]
      %v657 = vlaneseq
      %v658 = vshrl.u32 %v657, 7
      %v659 = vsub.s32 0, %v658
      %v660 = vrot.slane %v655, %v659
      %v678 = vunpack.c.l.b16 %v639
      %v679 = vunpack.c.l.b16 %v640
      %v680 = vunpack.c.l.b16 %v641
      %v681 = vunpack.c.l.b16 %v642
      %v682 = vunpack.c.l.b16 %v643
      %v683 = vunpack.c.l.b16 %v644
      %v684 = vunpack.c.l.b16 %v645
      %v685 = vunpack.c.l.b16 %v646
      %v686 = vunpack.c.l.b16 %v647
      %v687 = vunpack.c.l.b16 %v648
      %v688 = vunpack.c.l.b16 %v649
      %v689 = vunpack.c.l.b16 %v650
      %v690 = vunpack.c.l.b16 %v651
      %v691 = vunpack.c.l.b16 %v652
      %v692 = vunpack.c.l.b16 %v653
      %v693 = vunpack.c.l.b16 %v654
      %v694 = vpack.c.b16 %v679, %v678
      %v695 = vpack.c.b16 %v681, %v680
      %v696 = vpack.c.b16 %v683, %v682
      %v697 = vpack.c.b16 %v685, %v684
      %v698 = vpack.c.b16 %v687, %v686
      %v699 = vpack.c.b16 %v689, %v688
      %v700 = vpack.c.b16 %v691, %v690
      %v701 = vpack.c.b16 %v693, %v692
      %710 = vmatprep.subr.bf16.mxu0 0
      %711 = vmatpush1.bf16.msra.mxu0 %v694
      %712 = vmatprep.subr.bf16.mxu0 0
      %713 = vmatpush1.bf16.msra.mxu0 %v695
      %714 = vmatprep.subr.bf16.mxu0 0
      %715 = vmatpush1.bf16.msra.mxu0 %v696
      %716 = vmatprep.subr.bf16.mxu0 0
      %717 = vmatpush1.bf16.msra.mxu0 %v697
      %718 = vmatprep.subr.bf16.mxu0 0
      %719 = vmatpush1.bf16.msra.mxu0 %v698
      %720 = vmatprep.subr.bf16.mxu0 0
      %721 = vmatpush1.bf16.msra.mxu0 %v699
      %722 = vmatprep.subr.bf16.mxu0 0
      %723 = vmatpush1.bf16.msra.mxu0 %v700
      %724 = vmatprep.subr.bf16.mxu0 0
      %725 = vmatpush1.bf16.msra.mxu0 %v701
      %726 = vmatprep.subr.bf16.mxu0 0
      %727 = vmatpush1.bf16.msra.mxu0 0
      %728 = vmatprep.subr.bf16.mxu0 0
      %729 = vmatpush1.bf16.msra.mxu0 0
      %730 = vmatprep.subr.bf16.mxu0 0
      %731 = vmatpush1.bf16.msra.mxu0 0
      %732 = vmatprep.subr.bf16.mxu0 0
      %733 = vmatpush1.bf16.msra.mxu0 0
      %734 = vmatprep.subr.bf16.mxu0 0
      %735 = vmatpush1.bf16.msra.mxu0 0
      %736 = vmatprep.subr.bf16.mxu0 0
      %737 = vmatpush1.bf16.msra.mxu0 0
      %738 = vmatprep.subr.bf16.mxu0 0
      %739 = vmatpush1.bf16.msra.mxu0 0
      %740 = vmatprep.subr.bf16.mxu0 0
      %741 = vmatpush1.bf16.msra.mxu0 0
      %742 = vmatprep.mubr.bf16.mxu0 0
      %743 = vmatmul.mubr.bf16.gmra.mrb[0].mxu0 %v638
      %v744 = vpop.f32.mrb[0].mxu0
      %v745 = vadd.f32 %v660, %v744
      %v746 = vpop.f32.mrb[0].mxu0
      %v747 = vpop.f32.mrb[0].mxu0
      %v748 = vpop.f32.mrb[0].mxu0
      %749 = vdwg.mxu0
      %v750 = vmax.f32 %v745, 0.0
      %v751 = vpack.c.bf16 %v750, %v750
      %v752 = vld [vmem:[%s5] sm:$0xf]
      %v753 = vld [vmem:[%s5 + $0x4] sm:$0xf]
      %v754 = vld [vmem:[%s5 + $0x8] sm:$0xf]
      %v755 = vld [vmem:[%s5 + $0xc] sm:$0xf]
      %v756 = vld [vmem:[%s5 + $0x10] sm:$0xf]
      %v757 = vld [vmem:[%s5 + $0x14] sm:$0xf]
      %v758 = vld [vmem:[%s5 + $0x18] sm:$0xf]
      %v759 = vld [vmem:[%s5 + $0x1c] sm:$0xf]
      %v760 = vld [vmem:[%s5 + $0x20] sm:$0xf]
      %v761 = vld [vmem:[%s5 + $0x24] sm:$0xf]
      %v762 = vld [vmem:[%s5 + $0x28] sm:$0xf]
      %v763 = vld [vmem:[%s5 + $0x2c] sm:$0xf]
      %v764 = vld [vmem:[%s5 + $0x30] sm:$0xf]
      %v765 = vld [vmem:[%s5 + $0x34] sm:$0xf]
      %v766 = vld [vmem:[%s5 + $0x38] sm:$0xf]
      %v767 = vld [vmem:[%s5 + $0x3c] sm:$0xf]
      %v768 = vld [vmem:[%s6] sm:$0x1]
      %v770 = vlaneseq
      %v771 = vshrl.u32 %v770, 7
      %v772 = vsub.s32 0, %v771
      %v773 = vrot.slane %v768, %v772
      %v791 = vunpack.c.l.b16 %v752
      %v792 = vunpack.c.l.b16 %v753
      %v793 = vunpack.c.l.b16 %v754
      %v794 = vunpack.c.l.b16 %v755
      %v795 = vunpack.c.l.b16 %v756
      %v796 = vunpack.c.l.b16 %v757
      %v797 = vunpack.c.l.b16 %v758
      %v798 = vunpack.c.l.b16 %v759
      %v799 = vunpack.c.l.b16 %v760
      %v800 = vunpack.c.l.b16 %v761
      %v801 = vunpack.c.l.b16 %v762
      %v802 = vunpack.c.l.b16 %v763
      %v803 = vunpack.c.l.b16 %v764
      %v804 = vunpack.c.l.b16 %v765
      %v805 = vunpack.c.l.b16 %v766
      %v806 = vunpack.c.l.b16 %v767
      %v807 = vpack.c.b16 %v792, %v791
      %v808 = vpack.c.b16 %v794, %v793
      %v809 = vpack.c.b16 %v796, %v795
      %v810 = vpack.c.b16 %v798, %v797
      %v811 = vpack.c.b16 %v800, %v799
      %v812 = vpack.c.b16 %v802, %v801
      %v813 = vpack.c.b16 %v804, %v803
      %v814 = vpack.c.b16 %v806, %v805
      %823 = vmatprep.subr.bf16.mxu0 0
      %824 = vmatpush1.bf16.msra.mxu0 %v807
      %825 = vmatprep.subr.bf16.mxu0 0
      %826 = vmatpush1.bf16.msra.mxu0 %v808
      %827 = vmatprep.subr.bf16.mxu0 0
      %828 = vmatpush1.bf16.msra.mxu0 %v809
      %829 = vmatprep.subr.bf16.mxu0 0
      %830 = vmatpush1.bf16.msra.mxu0 %v810
      %831 = vmatprep.subr.bf16.mxu0 0
      %832 = vmatpush1.bf16.msra.mxu0 %v811
      %833 = vmatprep.subr.bf16.mxu0 0
      %834 = vmatpush1.bf16.msra.mxu0 %v812
      %835 = vmatprep.subr.bf16.mxu0 0
      %836 = vmatpush1.bf16.msra.mxu0 %v813
      %837 = vmatprep.subr.bf16.mxu0 0
      %838 = vmatpush1.bf16.msra.mxu0 %v814
      %839 = vmatprep.subr.bf16.mxu0 0
      %840 = vmatpush1.bf16.msra.mxu0 0
      %841 = vmatprep.subr.bf16.mxu0 0
      %842 = vmatpush1.bf16.msra.mxu0 0
      %843 = vmatprep.subr.bf16.mxu0 0
      %844 = vmatpush1.bf16.msra.mxu0 0
      %845 = vmatprep.subr.bf16.mxu0 0
      %846 = vmatpush1.bf16.msra.mxu0 0
      %847 = vmatprep.subr.bf16.mxu0 0
      %848 = vmatpush1.bf16.msra.mxu0 0
      %849 = vmatprep.subr.bf16.mxu0 0
      %850 = vmatpush1.bf16.msra.mxu0 0
      %851 = vmatprep.subr.bf16.mxu0 0
      %852 = vmatpush1.bf16.msra.mxu0 0
      %853 = vmatprep.subr.bf16.mxu0 0
      %854 = vmatpush1.bf16.msra.mxu0 0
      %855 = vmatprep.mubr.bf16.mxu0 0
      %856 = vmatmul.mubr.bf16.gmra.mrb[0].mxu0 %v751
      %v857 = vpop.f32.mrb[0].mxu0
      %v858 = vadd.f32 %v773, %v857
      %v859 = vpop.f32.mrb[0].mxu0
      %v860 = vpop.f32.mrb[0].mxu0
      %v861 = vpop.f32.mrb[0].mxu0
      %862 = vdwg.mxu0
      %863 = vst [vmem:[%s276] sm:$0xff] %v858
      %p864 = scmp.lt.s32.totalorder %s18, 1
      %s865 = scalar_select %p864, %s18, 1
      %s866 = smul.addr %s865, 8
      %s867 = scalar_lea.vmem %s7, %s866
      // Predicated region
      $region49: #{net_forward.5} parent=47 // pred_check
        %p868 = pneg %p188
      $region50: #{net_forward.5} parent=47 // pred_check_branch
        %870 = sbr.rel (%p868) target = $region52
      $region51: #{net_forward.5} parent=47 // pred_region
        _
      $region52: #{net_forward.5} parent=47 // pred_fallthru
        _
    $region48: #{net_forward.5} parent=5 // pred_fallthru
      _
    %p871 = scmp.le.s32.totalorder 2, %s13
    // Predicated region
    $region53: #{net_forward.5} parent=5 // pred_check
      %p872 = pneg %p871
    $region54: #{net_forward.5} parent=5 // pred_check_branch
      %874 = sbr.rel (%p872) target = $region56
    $region55: #{net_forward.5} parent=5 // pred_region
      %s875 = ssub.s32 %s13, 2
      // Predicated region
      $region57: #{net_forward.5} parent=55 // pred_check
        %p876 = pneg %p194
      $region58: #{net_forward.5} parent=55 // pred_check_branch
        %878 = sbr.rel (%p876) target = $region60
      $region59: #{net_forward.5} parent=55 // pred_region
        %p879 = scmp.lt.s32.totalorder %s19, 1
        %s880 = scalar_select %p879, %s19, 1
        %s881 = smul.addr %s880, 8
        %s882 = scalar_lea.vmem %s7, %s881
      $region60: #{net_forward.5} parent=55 // pred_fallthru
        _
    $region56: #{net_forward.5} parent=5 // pred_fallthru
      _
  $region6: #{net_forward.5} parent=0 // loop_footer
    %s17 = sadd.s32 1, %s13
  $region7: #{net_forward.5} parent=0 // loop_footer_branch
    %12 = sbr.rel target = $region3
  $region8: #{net_forward.5} parent=0 // loop_exit
    _

</llo_original>
